<compile_context>
chip_gen: v7x
topology: tpu7x:2x2x1
jax: 0.10.0
libtpu: 0.0.40
codegen_flags: <defaults>
</compile_context>

<pallas_src>
import math

import jax
import jax.numpy as jnp
from jax import lax
from jax.experimental import pallas as pl
from jax.experimental.pallas import tpu as pltpu

# ---------------- small config (consistent with ViTLucid.__init__/forward) ----
IMG = 16             # img_size
PATCH = 4            # patch_size
CHANNELS = 1         # module hard-codes channels = 1
HIDDEN = 32          # hidden_size (scaled down from 768)
MLP_DIM = 64         # mlp_dim
NUM_LAYERS = 2       # num_layers
NUM_HEADS = 2        # num_heads
DIM_HEAD = 64        # hard-coded dim_head=64 in the module's Transformer(...)
INNER = NUM_HEADS * DIM_HEAD            # 128
NUM_CLASSES = 2
PATCH_DIM = CHANNELS * PATCH * PATCH    # 16
GRID_H = IMG // PATCH
GRID_W = IMG // PATCH
N_PATCHES = GRID_H * GRID_W             # 16
SEQ = N_PATCHES + 1                     # 17 (+1 cls token)
TEMPERATURE = 10000.0
POS_SCALE = 1.0
EPS = 1e-5
ATTN_SCALE = DIM_HEAD ** -0.5
NEG_INF = -1e30


# ---------------- in-kernel helpers -------------------------------------------
def _layernorm(x, g, b):
    mu = jnp.mean(x, axis=-1, keepdims=True)
    var = jnp.mean(jnp.square(x - mu), axis=-1, keepdims=True)
    return (x - mu) * lax.rsqrt(var + EPS) * g + b


def _gelu_exact(x):
    # torch nn.GELU() default = exact erf formulation
    return 0.5 * x * (1.0 + lax.erf(x / math.sqrt(2.0)))


# ---------------- fused forward kernel -----------------------------------------
def _make_vit_kernel(B):
    BS = B * SEQ

    def kernel(patches_ref, pos_ref, bias_ref, cls_ref,
               ln1g, ln1b, w_emb, b_emb, ln2g, ln2b,
               a_lng, a_lnb, w_qkv, w_out, b_out,
               f_lng, f_lnb, w1, b1, w2, b2,
               fin_g, fin_b, w_head, b_head,
               o_ref, x_scr):
        # ---- patch embedding: LN -> Linear -> LN (batch folded into sublanes).
        t = _layernorm(patches_ref[...], ln1g[...], ln1b[...])          # (B*N, P)
        t = jnp.dot(t, w_emb[...], preferred_element_type=jnp.float32) + b_emb[...]
        tok = _layernorm(t, ln2g[...], ln2b[...])                       # (B*N, D)

        # ---- prepend cls token and add positional embedding (dropout = identity).
        for b in range(B):
            x_scr[b * SEQ:b * SEQ + 1, :] = cls_ref[...] + pos_ref[0:1, :]
            x_scr[b * SEQ + 1:(b + 1) * SEQ, :] = (
                tok[b * N_PATCHES:(b + 1) * N_PATCHES, :] + pos_ref[1:, :])
        x = x_scr[...]                                                  # (B*SEQ, D)

        attn_bias = bias_ref[...]   # (B*SEQ, B*SEQ) block-diagonal additive mask

        # ---- transformer layers (unrolled; pre-norm attention + pre-norm MLP).
        for l in range(NUM_LAYERS):
            # multi-head self-attention + residual
            xn = _layernorm(x, a_lng[l], a_lnb[l])
            qkv = jnp.dot(xn, w_qkv[l],
                          preferred_element_type=jnp.float32)           # (B*S, 3*INNER)
            wo = w_out[l]                                               # (INNER, D)
            y = b_out[l]                                                # (1, D), broadcasts
            for h in range(NUM_HEADS):
                q = qkv[:, h * DIM_HEAD:(h + 1) * DIM_HEAD]             # (B*S, Dh)
                k = qkv[:, INNER + h * DIM_HEAD:INNER + (h + 1) * DIM_HEAD]
                v = qkv[:, 2 * INNER + h * DIM_HEAD:2 * INNER + (h + 1) * DIM_HEAD]
                s = jnp.dot(q, k.T, preferred_element_type=jnp.float32)
                s = s * ATTN_SCALE + attn_bias                          # (B*S, B*S)
                s = s - jnp.max(s, axis=-1, keepdims=True)
                p = jnp.exp(s)
                p = p * pl.reciprocal(jnp.sum(p, axis=-1, keepdims=True), approx=True)
                o = jnp.dot(p, v, preferred_element_type=jnp.float32)   # (B*S, Dh)
                # accumulate output projection per head (no lane concat)
                y = y + jnp.dot(o, wo[h * DIM_HEAD:(h + 1) * DIM_HEAD, :],
                                preferred_element_type=jnp.float32)
            x = x + y
            # MLP + residual
            xn = _layernorm(x, f_lng[l], f_lnb[l])
            hdn = _gelu_exact(jnp.dot(xn, w1[l],
                                      preferred_element_type=jnp.float32) + b1[l])
            x = x + jnp.dot(hdn, w2[l], preferred_element_type=jnp.float32) + b2[l]

        # ---- final LayerNorm + classification head on the cls token only.
        cls_rows = jnp.concatenate([x[b * SEQ:b * SEQ + 1, :] for b in range(B)],
                                   axis=0)                              # (B, D)
        cls_n = _layernorm(cls_rows, fin_g[...], fin_b[...])
        o_ref[...] = (jnp.dot(cls_n, w_head[...], preferred_element_type=jnp.float32)
                      + b_head[...]).astype(o_ref.dtype)

    return kernel


# ---------------- plain-JAX glue -----------------------------------------------
def to_patches(img):
    # einops 'b c (h p1) (w p2) -> b (h w) (p1 p2 c)', folded to (B*N, patch_dim)
    B = img.shape[0]
    x = img.reshape(B, CHANNELS, GRID_H, PATCH, GRID_W, PATCH)
    x = jnp.transpose(x, (0, 2, 4, 3, 5, 1))              # (B, h, w, p1, p2, c)
    return x.reshape(B * N_PATCHES, PATCH * PATCH * CHANNELS)


def build_attn_bias(B):
    # block-diagonal additive bias: tokens attend only within their own image
    tok_batch = jnp.repeat(jnp.arange(B, dtype=jnp.int32), SEQ)
    same = tok_batch[:, None] == tok_batch[None, :]
    return jnp.where(same, 0.0, NEG_INF).astype(jnp.float32)


def build_pos_embedding():
    # TODO(synk): exact PositionalEmbedding(posenc, ...) implementation not
    # provided; using a standard 2D sin-cos embedding (temperature=10000,
    # scale=1) with a zero embedding for the cls token (n_tokens=1).
    d4 = HIDDEN // 4
    omega = 1.0 / (TEMPERATURE ** (jnp.arange(d4, dtype=jnp.float32) / d4))
    yy, xx = jnp.meshgrid(jnp.arange(GRID_H, dtype=jnp.float32),
                          jnp.arange(GRID_W, dtype=jnp.float32), indexing="ij")
    yy = yy.reshape(-1)[:, None] * omega[None, :] * POS_SCALE
    xx = xx.reshape(-1)[:, None] * omega[None, :] * POS_SCALE
    pos = jnp.concatenate([jnp.sin(xx), jnp.cos(xx), jnp.sin(yy), jnp.cos(yy)], axis=1)
    cls_pos = jnp.zeros((1, HIDDEN), jnp.float32)
    return jnp.concatenate([cls_pos, pos], axis=0)         # (SEQ, HIDDEN)


def init_params(key):
    def nrm(k, shape, s=0.02):
        return s * jax.random.normal(k, shape, jnp.float32)

    ks = jax.random.split(key, 8)
    L = NUM_LAYERS
    return {
        "ln1_g": jnp.ones((1, PATCH_DIM), jnp.float32),
        "ln1_b": jnp.zeros((1, PATCH_DIM), jnp.float32),
        "w_embed": nrm(ks[0], (PATCH_DIM, HIDDEN)),
        "b_embed": jnp.zeros((1, HIDDEN), jnp.float32),
        "ln2_g": jnp.ones((1, HIDDEN), jnp.float32),
        "ln2_b": jnp.zeros((1, HIDDEN), jnp.float32),
        "cls_token": jax.random.normal(ks[1], (1, HIDDEN), jnp.float32),
        "pos": build_pos_embedding(),                      # precomputed once
        # layer-stacked transformer weights (indexed with static l in-kernel)
        "attn_ln_g": jnp.ones((L, 1, HIDDEN), jnp.float32),
        "attn_ln_b": jnp.zeros((L, 1, HIDDEN), jnp.float32),
        "w_qkv": nrm(ks[2], (L, HIDDEN, 3 * INNER)),       # bias=False (lucidrains)
        "w_out": nrm(ks[3], (L, INNER, HIDDEN)),
        "b_out": jnp.zeros((L, 1, HIDDEN), jnp.float32),
        "ff_ln_g": jnp.ones((L, 1, HIDDEN), jnp.float32),
        "ff_ln_b": jnp.zeros((L, 1, HIDDEN), jnp.float32),
        "w1": nrm(ks[4], (L, HIDDEN, MLP_DIM)),
        "b1": jnp.zeros((L, 1, MLP_DIM), jnp.float32),
        "w2": nrm(ks[5], (L, MLP_DIM, HIDDEN)),
        "b2": jnp.zeros((L, 1, HIDDEN), jnp.float32),
        "final_ln_g": jnp.ones((1, HIDDEN), jnp.float32),
        "final_ln_b": jnp.zeros((1, HIDDEN), jnp.float32),
        "w_head": nrm(ks[6], (HIDDEN, NUM_CLASSES)),
        "b_head": jnp.zeros((1, NUM_CLASSES), jnp.float32),
    }


def _full_spec(x):
    nd = x.ndim
    return pl.BlockSpec(x.shape, lambda i, _nd=nd: (0,) * _nd)


def vit_forward(img, p):
    B = img.shape[0]
    patches = to_patches(img)                              # (B*N, PATCH_DIM)
    attn_bias = build_attn_bias(B)                         # (B*SEQ, B*SEQ), const
    operands = (
        patches, p["pos"], attn_bias, p["cls_token"],
        p["ln1_g"], p["ln1_b"], p["w_embed"], p["b_embed"], p["ln2_g"], p["ln2_b"],
        p["attn_ln_g"], p["attn_ln_b"], p["w_qkv"], p["w_out"], p["b_out"],
        p["ff_ln_g"], p["ff_ln_b"], p["w1"], p["b1"], p["w2"], p["b2"],
        p["final_ln_g"], p["final_ln_b"], p["w_head"], p["b_head"],
    )
    return pl.pallas_call(
        _make_vit_kernel(B),
        out_shape=jax.ShapeDtypeStruct((B, NUM_CLASSES), jnp.float32),
        grid=(1,),
        in_specs=[_full_spec(x) for x in operands],
        out_specs=pl.BlockSpec((B, NUM_CLASSES), lambda i: (0, 0)),
        scratch_shapes=[pltpu.VMEM((B * SEQ, HIDDEN), jnp.float32)],
        compiler_params=pltpu.CompilerParams(dimension_semantics=("arbitrary",)),
    )(*operands)


if __name__ == "__main__":
    key = jax.random.PRNGKey(0)
    k_img, k_par = jax.random.split(key)
    img = jax.random.normal(k_img, (2, CHANNELS, IMG, IMG), jnp.float32)
    params = init_params(k_par)

    fwd = jax.jit(vit_forward)
    out = fwd(img, params)
    out = jax.block_until_ready(out)
    assert out.shape == (2, NUM_CLASSES) and out.dtype == jnp.float32
    assert bool(jnp.all(jnp.isfinite(out)))
    print("KERNEL_OK")
</pallas_src>

<mosaic_0001>
module attributes {stable_mosaic.version = 11 : i64} {
  func.func @kernel(%arg0: i32, %arg1: memref<32x16xf32, #tpu.memory_space<vmem>>, %arg2: memref<17x32xf32, #tpu.memory_space<vmem>>, %arg3: memref<34x34xf32, #tpu.memory_space<vmem>>, %arg4: memref<1x32xf32, #tpu.memory_space<vmem>>, %arg5: memref<1x16xf32, #tpu.memory_space<vmem>>, %arg6: memref<1x16xf32, #tpu.memory_space<vmem>>, %arg7: memref<16x32xf32, #tpu.memory_space<vmem>>, %arg8: memref<1x32xf32, #tpu.memory_space<vmem>>, %arg9: memref<1x32xf32, #tpu.memory_space<vmem>>, %arg10: memref<1x32xf32, #tpu.memory_space<vmem>>, %arg11: memref<2x1x32xf32, #tpu.memory_space<vmem>>, %arg12: memref<2x1x32xf32, #tpu.memory_space<vmem>>, %arg13: memref<2x32x384xf32, #tpu.memory_space<vmem>>, %arg14: memref<2x128x32xf32, #tpu.memory_space<vmem>>, %arg15: memref<2x1x32xf32, #tpu.memory_space<vmem>>, %arg16: memref<2x1x32xf32, #tpu.memory_space<vmem>>, %arg17: memref<2x1x32xf32, #tpu.memory_space<vmem>>, %arg18: memref<2x32x64xf32, #tpu.memory_space<vmem>>, %arg19: memref<2x1x64xf32, #tpu.memory_space<vmem>>, %arg20: memref<2x64x32xf32, #tpu.memory_space<vmem>>, %arg21: memref<2x1x32xf32, #tpu.memory_space<vmem>>, %arg22: memref<1x32xf32, #tpu.memory_space<vmem>>, %arg23: memref<1x32xf32, #tpu.memory_space<vmem>>, %arg24: memref<32x2xf32, #tpu.memory_space<vmem>>, %arg25: memref<1x2xf32, #tpu.memory_space<vmem>>, %arg26: memref<2x2xf32, #tpu.memory_space<vmem>>, %arg27: memref<34x32xf32, #tpu.memory_space<vmem>>) attributes {dimension_semantics = [#tpu.dimension_semantics<arbitrary>], iteration_bounds = array<i64: 1>, scalar_prefetch = 0 : i64, scratch_operands = 1 : i64, tpu.core_type = #tpu.core_type<tc>, window_params = [{pipeline_mode = #tpu.pipeline_mode<synchronous>, transform_indices = @transform_0, window_bounds = array<i64: 32, 16>}, {pipeline_mode = #tpu.pipeline_mode<synchronous>, transform_indices = @transform_1, window_bounds = array<i64: 17, 32>}, {pipeline_mode = #tpu.pipeline_mode<synchronous>, transform_indices = @transform_2, window_bounds = array<i64: 34, 34>}, {pipeline_mode = #tpu.pipeline_mode<synchronous>, transform_indices = @transform_3, window_bounds = array<i64: 1, 32>}, {pipeline_mode = #tpu.pipeline_mode<synchronous>, transform_indices = @transform_4, window_bounds = array<i64: 1, 16>}, {pipeline_mode = #tpu.pipeline_mode<synchronous>, transform_indices = @transform_5, window_bounds = array<i64: 1, 16>}, {pipeline_mode = #tpu.pipeline_mode<synchronous>, transform_indices = @transform_6, window_bounds = array<i64: 16, 32>}, {pipeline_mode = #tpu.pipeline_mode<synchronous>, transform_indices = @transform_7, window_bounds = array<i64: 1, 32>}, {pipeline_mode = #tpu.pipeline_mode<synchronous>, transform_indices = @transform_8, window_bounds = array<i64: 1, 32>}, {pipeline_mode = #tpu.pipeline_mode<synchronous>, transform_indices = @transform_9, window_bounds = array<i64: 1, 32>}, {pipeline_mode = #tpu.pipeline_mode<synchronous>, transform_indices = @transform_10, window_bounds = array<i64: 2, 1, 32>}, {pipeline_mode = #tpu.pipeline_mode<synchronous>, transform_indices = @transform_11, window_bounds = array<i64: 2, 1, 32>}, {pipeline_mode = #tpu.pipeline_mode<synchronous>, transform_indices = @transform_12, window_bounds = array<i64: 2, 32, 384>}, {pipeline_mode = #tpu.pipeline_mode<synchronous>, transform_indices = @transform_13, window_bounds = array<i64: 2, 128, 32>}, {pipeline_mode = #tpu.pipeline_mode<synchronous>, transform_indices = @transform_14, window_bounds = array<i64: 2, 1, 32>}, {pipeline_mode = #tpu.pipeline_mode<synchronous>, transform_indices = @transform_15, window_bounds = array<i64: 2, 1, 32>}, {pipeline_mode = #tpu.pipeline_mode<synchronous>, transform_indices = @transform_16, window_bounds = array<i64: 2, 1, 32>}, {pipeline_mode = #tpu.pipeline_mode<synchronous>, transform_indices = @transform_17, window_bounds = array<i64: 2, 32, 64>}, {pipeline_mode = #tpu.pipeline_mode<synchronous>, transform_indices = @transform_18, window_bounds = array<i64: 2, 1, 64>}, {pipeline_mode = #tpu.pipeline_mode<synchronous>, transform_indices = @transform_19, window_bounds = array<i64: 2, 64, 32>}, {pipeline_mode = #tpu.pipeline_mode<synchronous>, transform_indices = @transform_20, window_bounds = array<i64: 2, 1, 32>}, {pipeline_mode = #tpu.pipeline_mode<synchronous>, transform_indices = @transform_21, window_bounds = array<i64: 1, 32>}, {pipeline_mode = #tpu.pipeline_mode<synchronous>, transform_indices = @transform_22, window_bounds = array<i64: 1, 32>}, {pipeline_mode = #tpu.pipeline_mode<synchronous>, transform_indices = @transform_23, window_bounds = array<i64: 32, 2>}, {pipeline_mode = #tpu.pipeline_mode<synchronous>, transform_indices = @transform_24, window_bounds = array<i64: 1, 2>}, {pipeline_mode = #tpu.pipeline_mode<synchronous>, transform_indices = @transform_25, window_bounds = array<i64: 2, 2>}]} {
    %c0 = arith.constant 0 : index
    %c0_0 = arith.constant 0 : index
    %0 = vector.load %arg1[%c0, %c0_0] : memref<32x16xf32, #tpu.memory_space<vmem>>, vector<32x16xf32>
    %c0_1 = arith.constant 0 : index
    %c0_2 = arith.constant 0 : index
    %1 = vector.load %arg5[%c0_1, %c0_2] : memref<1x16xf32, #tpu.memory_space<vmem>>, vector<1x16xf32>
    %c0_3 = arith.constant 0 : index
    %c0_4 = arith.constant 0 : index
    %2 = vector.load %arg6[%c0_3, %c0_4] : memref<1x16xf32, #tpu.memory_space<vmem>>, vector<1x16xf32>
    %cst = arith.constant dense<0.000000e+00> : vector<32xf32>
    %3 = vector.multi_reduction <add>, %0, %cst [1] : vector<32x16xf32> to vector<32xf32>
    %4 = vector.shape_cast %3 : vector<32xf32> to vector<32x1xf32>
    %cst_5 = arith.constant 1.600000e+01 : f32
    %5 = vector.broadcast %cst_5 : f32 to vector<32x1xf32>
    %6 = arith.divf %4, %5 : vector<32x1xf32>
    %7 = vector.broadcast %6 : vector<32x1xf32> to vector<32x16xf32>
    %8 = arith.subf %0, %7 : vector<32x16xf32>
    %9 = arith.mulf %8, %8 : vector<32x16xf32>
    %cst_6 = arith.constant dense<0.000000e+00> : vector<32xf32>
    %10 = vector.multi_reduction <add>, %9, %cst_6 [1] : vector<32x16xf32> to vector<32xf32>
    %11 = vector.shape_cast %10 : vector<32xf32> to vector<32x1xf32>
    %cst_7 = arith.constant 1.600000e+01 : f32
    %12 = vector.broadcast %cst_7 : f32 to vector<32x1xf32>
    %13 = arith.divf %11, %12 : vector<32x1xf32>
    %14 = vector.broadcast %6 : vector<32x1xf32> to vector<32x16xf32>
    %15 = arith.subf %0, %14 : vector<32x16xf32>
    %cst_8 = arith.constant 9.99999974E-6 : f32
    %16 = vector.broadcast %cst_8 : f32 to vector<32x1xf32>
    %17 = arith.addf %13, %16 : vector<32x1xf32>
    %18 = math.rsqrt %17 : vector<32x1xf32>
    %19 = vector.broadcast %18 : vector<32x1xf32> to vector<32x16xf32>
    %20 = arith.mulf %15, %19 : vector<32x16xf32>
    %21 = vector.broadcast %1 : vector<1x16xf32> to vector<32x16xf32>
    %22 = arith.mulf %20, %21 : vector<32x16xf32>
    %23 = vector.broadcast %2 : vector<1x16xf32> to vector<32x16xf32>
    %24 = arith.addf %22, %23 : vector<32x16xf32>
    %c0_9 = arith.constant 0 : index
    %c0_10 = arith.constant 0 : index
    %25 = vector.load %arg7[%c0_9, %c0_10] : memref<16x32xf32, #tpu.memory_space<vmem>>, vector<16x32xf32>
    %cst_11 = arith.constant dense<0.000000e+00> : vector<32x32xf32>
    %26 = tpu.matmul %24, %25, %cst_11 {dimension_numbers = #tpu.dot_dimension_numbers<[1], [0], [0], [1], [0, 0, 1, 1], [], []>} : vector<32x16xf32>, vector<16x32xf32>, vector<32x32xf32> -> vector<32x32xf32>
    %c0_12 = arith.constant 0 : index
    %c0_13 = arith.constant 0 : index
    %27 = vector.load %arg8[%c0_12, %c0_13] : memref<1x32xf32, #tpu.memory_space<vmem>>, vector<1x32xf32>
    %28 = vector.broadcast %27 : vector<1x32xf32> to vector<32x32xf32>
    %29 = arith.addf %26, %28 : vector<32x32xf32>
    %c0_14 = arith.constant 0 : index
    %c0_15 = arith.constant 0 : index
    %30 = vector.load %arg9[%c0_14, %c0_15] : memref<1x32xf32, #tpu.memory_space<vmem>>, vector<1x32xf32>
    %c0_16 = arith.constant 0 : index
    %c0_17 = arith.constant 0 : index
    %31 = vector.load %arg10[%c0_16, %c0_17] : memref<1x32xf32, #tpu.memory_space<vmem>>, vector<1x32xf32>
    %cst_18 = arith.constant dense<0.000000e+00> : vector<32xf32>
    %32 = vector.multi_reduction <add>, %29, %cst_18 [1] : vector<32x32xf32> to vector<32xf32>
    %33 = vector.shape_cast %32 : vector<32xf32> to vector<32x1xf32>
    %cst_19 = arith.constant 3.200000e+01 : f32
    %34 = vector.broadcast %cst_19 : f32 to vector<32x1xf32>
    %35 = arith.divf %33, %34 : vector<32x1xf32>
    %36 = vector.broadcast %35 : vector<32x1xf32> to vector<32x32xf32>
    %37 = arith.subf %29, %36 : vector<32x32xf32>
    %38 = arith.mulf %37, %37 : vector<32x32xf32>
    %cst_20 = arith.constant dense<0.000000e+00> : vector<32xf32>
    %39 = vector.multi_reduction <add>, %38, %cst_20 [1] : vector<32x32xf32> to vector<32xf32>
    %40 = vector.shape_cast %39 : vector<32xf32> to vector<32x1xf32>
    %cst_21 = arith.constant 3.200000e+01 : f32
    %41 = vector.broadcast %cst_21 : f32 to vector<32x1xf32>
    %42 = arith.divf %40, %41 : vector<32x1xf32>
    %43 = vector.broadcast %35 : vector<32x1xf32> to vector<32x32xf32>
    %44 = arith.subf %29, %43 : vector<32x32xf32>
    %cst_22 = arith.constant 9.99999974E-6 : f32
    %45 = vector.broadcast %cst_22 : f32 to vector<32x1xf32>
    %46 = arith.addf %42, %45 : vector<32x1xf32>
    %47 = math.rsqrt %46 : vector<32x1xf32>
    %48 = vector.broadcast %47 : vector<32x1xf32> to vector<32x32xf32>
    %49 = arith.mulf %44, %48 : vector<32x32xf32>
    %50 = vector.broadcast %30 : vector<1x32xf32> to vector<32x32xf32>
    %51 = arith.mulf %49, %50 : vector<32x32xf32>
    %52 = vector.broadcast %31 : vector<1x32xf32> to vector<32x32xf32>
    %53 = arith.addf %51, %52 : vector<32x32xf32>
    %c0_23 = arith.constant 0 : index
    %c0_24 = arith.constant 0 : index
    %54 = vector.load %arg4[%c0_23, %c0_24] : memref<1x32xf32, #tpu.memory_space<vmem>>, vector<1x32xf32>
    %c0_25 = arith.constant 0 : index
    %c0_26 = arith.constant 0 : index
    %55 = vector.load %arg2[%c0_25, %c0_26] : memref<17x32xf32, #tpu.memory_space<vmem>>, vector<1x32xf32>
    %56 = arith.addf %54, %55 : vector<1x32xf32>
    %c0_27 = arith.constant 0 : index
    %c0_28 = arith.constant 0 : index
    %57 = vector.load %arg27[%c0_27, %c0_28] : memref<34x32xf32, #tpu.memory_space<vmem>>, vector<1x32xf32>
    tpu.vector_store %arg27[%c0_27, %c0_28], %56 {strides = array<i32>} : memref<34x32xf32, #tpu.memory_space<vmem>>, vector<1x32xf32>,
    %58 = vector.extract_strided_slice %53 {offsets = [0, 0], sizes = [16, 32], strides = [1, 1]} : vector<32x32xf32> to vector<16x32xf32>
    %c1 = arith.constant 1 : index
    %c0_29 = arith.constant 0 : index
    %59 = vector.load %arg2[%c1, %c0_29] : memref<17x32xf32, #tpu.memory_space<vmem>>, vector<16x32xf32>
    %60 = arith.addf %58, %59 : vector<16x32xf32>
    %c1_30 = arith.constant 1 : index
    %c0_31 = arith.constant 0 : index
    %61 = vector.load %arg27[%c1_30, %c0_31] : memref<34x32xf32, #tpu.memory_space<vmem>>, vector<16x32xf32>
    tpu.vector_store %arg27[%c1_30, %c0_31], %60 {strides = array<i32>} : memref<34x32xf32, #tpu.memory_space<vmem>>, vector<16x32xf32>,
    %c0_32 = arith.constant 0 : index
    %c0_33 = arith.constant 0 : index
    %62 = vector.load %arg4[%c0_32, %c0_33] : memref<1x32xf32, #tpu.memory_space<vmem>>, vector<1x32xf32>
    %c0_34 = arith.constant 0 : index
    %c0_35 = arith.constant 0 : index
    %63 = vector.load %arg2[%c0_34, %c0_35] : memref<17x32xf32, #tpu.memory_space<vmem>>, vector<1x32xf32>
    %64 = arith.addf %62, %63 : vector<1x32xf32>
    %c17 = arith.constant 17 : index
    %c0_36 = arith.constant 0 : index
    %65 = vector.load %arg27[%c17, %c0_36] : memref<34x32xf32, #tpu.memory_space<vmem>>, vector<1x32xf32>
    tpu.vector_store %arg27[%c17, %c0_36], %64 {strides = array<i32>} : memref<34x32xf32, #tpu.memory_space<vmem>>, vector<1x32xf32>,
    %66 = vector.extract_strided_slice %53 {offsets = [16, 0], sizes = [16, 32], strides = [1, 1]} : vector<32x32xf32> to vector<16x32xf32>
    %c1_37 = arith.constant 1 : index
    %c0_38 = arith.constant 0 : index
    %67 = vector.load %arg2[%c1_37, %c0_38] : memref<17x32xf32, #tpu.memory_space<vmem>>, vector<16x32xf32>
    %68 = arith.addf %66, %67 : vector<16x32xf32>
    %c18 = arith.constant 18 : index
    %c0_39 = arith.constant 0 : index
    %69 = vector.load %arg27[%c18, %c0_39] : memref<34x32xf32, #tpu.memory_space<vmem>>, vector<16x32xf32>
    tpu.vector_store %arg27[%c18, %c0_39], %68 {strides = array<i32>} : memref<34x32xf32, #tpu.memory_space<vmem>>, vector<16x32xf32>,
    %c0_40 = arith.constant 0 : index
    %c0_41 = arith.constant 0 : index
    %70 = vector.load %arg27[%c0_40, %c0_41] : memref<34x32xf32, #tpu.memory_space<vmem>>, vector<34x32xf32>
    %c0_42 = arith.constant 0 : index
    %c0_43 = arith.constant 0 : index
    %71 = vector.load %arg3[%c0_42, %c0_43] : memref<34x34xf32, #tpu.memory_space<vmem>>, vector<34x34xf32>
    %c0_44 = arith.constant 0 : index
    %c0_45 = arith.constant 0 : index
    %c0_46 = arith.constant 0 : index
    %72 = vector.load %arg11[%c0_44, %c0_45, %c0_46] : memref<2x1x32xf32, #tpu.memory_space<vmem>>, vector<1x1x32xf32>
    %73 = vector.shape_cast %72 : vector<1x1x32xf32> to vector<1x32xf32>
    %c0_47 = arith.constant 0 : index
    %c0_48 = arith.constant 0 : index
    %c0_49 = arith.constant 0 : index
    %74 = vector.load %arg12[%c0_47, %c0_48, %c0_49] : memref<2x1x32xf32, #tpu.memory_space<vmem>>, vector<1x1x32xf32>
    %75 = vector.shape_cast %74 : vector<1x1x32xf32> to vector<1x32xf32>
    %cst_50 = arith.constant dense<0.000000e+00> : vector<34xf32>
    %76 = vector.multi_reduction <add>, %70, %cst_50 [1] : vector<34x32xf32> to vector<34xf32>
    %77 = vector.shape_cast %76 : vector<34xf32> to vector<34x1xf32>
    %cst_51 = arith.constant 3.200000e+01 : f32
    %78 = vector.broadcast %cst_51 : f32 to vector<34x1xf32>
    %79 = arith.divf %77, %78 : vector<34x1xf32>
    %80 = vector.broadcast %79 : vector<34x1xf32> to vector<34x32xf32>
    %81 = arith.subf %70, %80 : vector<34x32xf32>
    %82 = arith.mulf %81, %81 : vector<34x32xf32>
    %cst_52 = arith.constant dense<0.000000e+00> : vector<34xf32>
    %83 = vector.multi_reduction <add>, %82, %cst_52 [1] : vector<34x32xf32> to vector<34xf32>
    %84 = vector.shape_cast %83 : vector<34xf32> to vector<34x1xf32>
    %cst_53 = arith.constant 3.200000e+01 : f32
    %85 = vector.broadcast %cst_53 : f32 to vector<34x1xf32>
    %86 = arith.divf %84, %85 : vector<34x1xf32>
    %87 = vector.broadcast %79 : vector<34x1xf32> to vector<34x32xf32>
    %88 = arith.subf %70, %87 : vector<34x32xf32>
    %cst_54 = arith.constant 9.99999974E-6 : f32
    %89 = vector.broadcast %cst_54 : f32 to vector<34x1xf32>
    %90 = arith.addf %86, %89 : vector<34x1xf32>
    %91 = math.rsqrt %90 : vector<34x1xf32>
    %92 = vector.broadcast %91 : vector<34x1xf32> to vector<34x32xf32>
    %93 = arith.mulf %88, %92 : vector<34x32xf32>
    %94 = vector.broadcast %73 : vector<1x32xf32> to vector<34x32xf32>
    %95 = arith.mulf %93, %94 : vector<34x32xf32>
    %96 = vector.broadcast %75 : vector<1x32xf32> to vector<34x32xf32>
    %97 = arith.addf %95, %96 : vector<34x32xf32>
    %c0_55 = arith.constant 0 : index
    %c0_56 = arith.constant 0 : index
    %c0_57 = arith.constant 0 : index
    %98 = vector.load %arg13[%c0_55, %c0_56, %c0_57] : memref<2x32x384xf32, #tpu.memory_space<vmem>>, vector<1x32x384xf32>
    %99 = vector.shape_cast %98 : vector<1x32x384xf32> to vector<32x384xf32>
    %cst_58 = arith.constant dense<0.000000e+00> : vector<34x384xf32>
    %100 = tpu.matmul %97, %99, %cst_58 {dimension_numbers = #tpu.dot_dimension_numbers<[1], [0], [0], [1], [0, 0, 1, 1], [], []>} : vector<34x32xf32>, vector<32x384xf32>, vector<34x384xf32> -> vector<34x384xf32>
    %c0_59 = arith.constant 0 : index
    %c0_60 = arith.constant 0 : index
    %c0_61 = arith.constant 0 : index
    %101 = vector.load %arg14[%c0_59, %c0_60, %c0_61] : memref<2x128x32xf32, #tpu.memory_space<vmem>>, vector<1x128x32xf32>
    %102 = vector.shape_cast %101 : vector<1x128x32xf32> to vector<128x32xf32>
    %c0_62 = arith.constant 0 : index
    %c0_63 = arith.constant 0 : index
    %c0_64 = arith.constant 0 : index
    %103 = vector.load %arg15[%c0_62, %c0_63, %c0_64] : memref<2x1x32xf32, #tpu.memory_space<vmem>>, vector<1x1x32xf32>
    %104 = vector.shape_cast %103 : vector<1x1x32xf32> to vector<1x32xf32>
    %105 = vector.extract_strided_slice %100 {offsets = [0, 0], sizes = [34, 64], strides = [1, 1]} : vector<34x384xf32> to vector<34x64xf32>
    %106 = vector.extract_strided_slice %100 {offsets = [0, 128], sizes = [34, 64], strides = [1, 1]} : vector<34x384xf32> to vector<34x64xf32>
    %107 = vector.extract_strided_slice %100 {offsets = [0, 256], sizes = [34, 64], strides = [1, 1]} : vector<34x384xf32> to vector<34x64xf32>
    %108 = tpu.transpose %106, [1, 0] : vector<34x64xf32> -> vector<64x34xf32>
    %cst_65 = arith.constant dense<0.000000e+00> : vector<34x34xf32>
    %109 = tpu.matmul %105, %108, %cst_65 {dimension_numbers = #tpu.dot_dimension_numbers<[1], [0], [0], [1], [0, 0, 1, 1], [], []>} : vector<34x64xf32>, vector<64x34xf32>, vector<34x34xf32> -> vector<34x34xf32>
    %cst_66 = arith.constant 1.250000e-01 : f32
    %110 = vector.broadcast %cst_66 : f32 to vector<34x34xf32>
    %111 = arith.mulf %109, %110 : vector<34x34xf32>
    %112 = arith.addf %111, %71 : vector<34x34xf32>
    %cst_67 = arith.constant dense<0xFF800000> : vector<34xf32>
    %113 = vector.multi_reduction <maximumf>, %112, %cst_67 [1] : vector<34x34xf32> to vector<34xf32>
    %114 = vector.shape_cast %113 : vector<34xf32> to vector<34x1xf32>
    %115 = vector.broadcast %114 : vector<34x1xf32> to vector<34x34xf32>
    %116 = arith.subf %112, %115 : vector<34x34xf32>
    %117 = math.exp %116 : vector<34x34xf32>
    %cst_68 = arith.constant dense<0.000000e+00> : vector<34xf32>
    %118 = vector.multi_reduction <add>, %117, %cst_68 [1] : vector<34x34xf32> to vector<34xf32>
    %119 = vector.shape_cast %118 : vector<34xf32> to vector<34x1xf32>
    %120 = tpu.reciprocal %119 {approx = true} : vector<34x1xf32> -> vector<34x1xf32>
    %121 = vector.broadcast %120 : vector<34x1xf32> to vector<34x34xf32>
    %122 = arith.mulf %117, %121 : vector<34x34xf32>
    %cst_69 = arith.constant dense<0.000000e+00> : vector<34x64xf32>
    %123 = tpu.matmul %122, %107, %cst_69 {dimension_numbers = #tpu.dot_dimension_numbers<[1], [0], [0], [1], [0, 0, 1, 1], [], []>} : vector<34x34xf32>, vector<34x64xf32>, vector<34x64xf32> -> vector<34x64xf32>
    %124 = vector.extract_strided_slice %102 {offsets = [0, 0], sizes = [64, 32], strides = [1, 1]} : vector<128x32xf32> to vector<64x32xf32>
    %cst_70 = arith.constant dense<0.000000e+00> : vector<34x32xf32>
    %125 = tpu.matmul %123, %124, %cst_70 {dimension_numbers = #tpu.dot_dimension_numbers<[1], [0], [0], [1], [0, 0, 1, 1], [], []>} : vector<34x64xf32>, vector<64x32xf32>, vector<34x32xf32> -> vector<34x32xf32>
    %126 = vector.broadcast %104 : vector<1x32xf32> to vector<34x32xf32>
    %127 = arith.addf %126, %125 : vector<34x32xf32>
    %128 = vector.extract_strided_slice %100 {offsets = [0, 64], sizes = [34, 64], strides = [1, 1]} : vector<34x384xf32> to vector<34x64xf32>
    %129 = vector.extract_strided_slice %100 {offsets = [0, 192], sizes = [34, 64], strides = [1, 1]} : vector<34x384xf32> to vector<34x64xf32>
    %130 = vector.extract_strided_slice %100 {offsets = [0, 320], sizes = [34, 64], strides = [1, 1]} : vector<34x384xf32> to vector<34x64xf32>
    %131 = tpu.transpose %129, [1, 0] : vector<34x64xf32> -> vector<64x34xf32>
    %cst_71 = arith.constant dense<0.000000e+00> : vector<34x34xf32>
    %132 = tpu.matmul %128, %131, %cst_71 {dimension_numbers = #tpu.dot_dimension_numbers<[1], [0], [0], [1], [0, 0, 1, 1], [], []>} : vector<34x64xf32>, vector<64x34xf32>, vector<34x34xf32> -> vector<34x34xf32>
    %cst_72 = arith.constant 1.250000e-01 : f32
    %133 = vector.broadcast %cst_72 : f32 to vector<34x34xf32>
    %134 = arith.mulf %132, %133 : vector<34x34xf32>
    %135 = arith.addf %134, %71 : vector<34x34xf32>
    %cst_73 = arith.constant dense<0xFF800000> : vector<34xf32>
    %136 = vector.multi_reduction <maximumf>, %135, %cst_73 [1] : vector<34x34xf32> to vector<34xf32>
    %137 = vector.shape_cast %136 : vector<34xf32> to vector<34x1xf32>
    %138 = vector.broadcast %137 : vector<34x1xf32> to vector<34x34xf32>
    %139 = arith.subf %135, %138 : vector<34x34xf32>
    %140 = math.exp %139 : vector<34x34xf32>
    %cst_74 = arith.constant dense<0.000000e+00> : vector<34xf32>
    %141 = vector.multi_reduction <add>, %140, %cst_74 [1] : vector<34x34xf32> to vector<34xf32>
    %142 = vector.shape_cast %141 : vector<34xf32> to vector<34x1xf32>
    %143 = tpu.reciprocal %142 {approx = true} : vector<34x1xf32> -> vector<34x1xf32>
    %144 = vector.broadcast %143 : vector<34x1xf32> to vector<34x34xf32>
    %145 = arith.mulf %140, %144 : vector<34x34xf32>
    %cst_75 = arith.constant dense<0.000000e+00> : vector<34x64xf32>
    %146 = tpu.matmul %145, %130, %cst_75 {dimension_numbers = #tpu.dot_dimension_numbers<[1], [0], [0], [1], [0, 0, 1, 1], [], []>} : vector<34x34xf32>, vector<34x64xf32>, vector<34x64xf32> -> vector<34x64xf32>
    %147 = vector.extract_strided_slice %102 {offsets = [64, 0], sizes = [64, 32], strides = [1, 1]} : vector<128x32xf32> to vector<64x32xf32>
    %cst_76 = arith.constant dense<0.000000e+00> : vector<34x32xf32>
    %148 = tpu.matmul %146, %147, %cst_76 {dimension_numbers = #tpu.dot_dimension_numbers<[1], [0], [0], [1], [0, 0, 1, 1], [], []>} : vector<34x64xf32>, vector<64x32xf32>, vector<34x32xf32> -> vector<34x32xf32>
    %149 = arith.addf %127, %148 : vector<34x32xf32>
    %150 = arith.addf %70, %149 : vector<34x32xf32>
    %c0_77 = arith.constant 0 : index
    %c0_78 = arith.constant 0 : index
    %c0_79 = arith.constant 0 : index
    %151 = vector.load %arg16[%c0_77, %c0_78, %c0_79] : memref<2x1x32xf32, #tpu.memory_space<vmem>>, vector<1x1x32xf32>
    %152 = vector.shape_cast %151 : vector<1x1x32xf32> to vector<1x32xf32>
    %c0_80 = arith.constant 0 : index
    %c0_81 = arith.constant 0 : index
    %c0_82 = arith.constant 0 : index
    %153 = vector.load %arg17[%c0_80, %c0_81, %c0_82] : memref<2x1x32xf32, #tpu.memory_space<vmem>>, vector<1x1x32xf32>
    %154 = vector.shape_cast %153 : vector<1x1x32xf32> to vector<1x32xf32>
    %cst_83 = arith.constant dense<0.000000e+00> : vector<34xf32>
    %155 = vector.multi_reduction <add>, %150, %cst_83 [1] : vector<34x32xf32> to vector<34xf32>
    %156 = vector.shape_cast %155 : vector<34xf32> to vector<34x1xf32>
    %cst_84 = arith.constant 3.200000e+01 : f32
    %157 = vector.broadcast %cst_84 : f32 to vector<34x1xf32>
    %158 = arith.divf %156, %157 : vector<34x1xf32>
    %159 = vector.broadcast %158 : vector<34x1xf32> to vector<34x32xf32>
    %160 = arith.subf %150, %159 : vector<34x32xf32>
    %161 = arith.mulf %160, %160 : vector<34x32xf32>
    %cst_85 = arith.constant dense<0.000000e+00> : vector<34xf32>
    %162 = vector.multi_reduction <add>, %161, %cst_85 [1] : vector<34x32xf32> to vector<34xf32>
    %163 = vector.shape_cast %162 : vector<34xf32> to vector<34x1xf32>
    %cst_86 = arith.constant 3.200000e+01 : f32
    %164 = vector.broadcast %cst_86 : f32 to vector<34x1xf32>
    %165 = arith.divf %163, %164 : vector<34x1xf32>
    %166 = vector.broadcast %158 : vector<34x1xf32> to vector<34x32xf32>
    %167 = arith.subf %150, %166 : vector<34x32xf32>
    %cst_87 = arith.constant 9.99999974E-6 : f32
    %168 = vector.broadcast %cst_87 : f32 to vector<34x1xf32>
    %169 = arith.addf %165, %168 : vector<34x1xf32>
    %170 = math.rsqrt %169 : vector<34x1xf32>
    %171 = vector.broadcast %170 : vector<34x1xf32> to vector<34x32xf32>
    %172 = arith.mulf %167, %171 : vector<34x32xf32>
    %173 = vector.broadcast %152 : vector<1x32xf32> to vector<34x32xf32>
    %174 = arith.mulf %172, %173 : vector<34x32xf32>
    %175 = vector.broadcast %154 : vector<1x32xf32> to vector<34x32xf32>
    %176 = arith.addf %174, %175 : vector<34x32xf32>
    %c0_88 = arith.constant 0 : index
    %c0_89 = arith.constant 0 : index
    %c0_90 = arith.constant 0 : index
    %177 = vector.load %arg18[%c0_88, %c0_89, %c0_90] : memref<2x32x64xf32, #tpu.memory_space<vmem>>, vector<1x32x64xf32>
    %178 = vector.shape_cast %177 : vector<1x32x64xf32> to vector<32x64xf32>
    %cst_91 = arith.constant dense<0.000000e+00> : vector<34x64xf32>
    %179 = tpu.matmul %176, %178, %cst_91 {dimension_numbers = #tpu.dot_dimension_numbers<[1], [0], [0], [1], [0, 0, 1, 1], [], []>} : vector<34x32xf32>, vector<32x64xf32>, vector<34x64xf32> -> vector<34x64xf32>
    %c0_92 = arith.constant 0 : index
    %c0_93 = arith.constant 0 : index
    %c0_94 = arith.constant 0 : index
    %180 = vector.load %arg19[%c0_92, %c0_93, %c0_94] : memref<2x1x64xf32, #tpu.memory_space<vmem>>, vector<1x1x64xf32>
    %181 = vector.shape_cast %180 : vector<1x1x64xf32> to vector<1x64xf32>
    %182 = vector.broadcast %181 : vector<1x64xf32> to vector<34x64xf32>
    %183 = arith.addf %179, %182 : vector<34x64xf32>
    %cst_95 = arith.constant 5.000000e-01 : f32
    %184 = vector.broadcast %cst_95 : f32 to vector<34x64xf32>
    %185 = arith.mulf %184, %183 : vector<34x64xf32>
    %cst_96 = arith.constant 1.41421354 : f32
    %186 = vector.broadcast %cst_96 : f32 to vector<34x64xf32>
    %187 = arith.divf %183, %186 : vector<34x64xf32>
    %188 = math.erf %187 : vector<34x64xf32>
    %cst_97 = arith.constant 1.000000e+00 : f32
    %189 = vector.broadcast %cst_97 : f32 to vector<34x64xf32>
    %190 = arith.addf %189, %188 : vector<34x64xf32>
    %191 = arith.mulf %185, %190 : vector<34x64xf32>
    %c0_98 = arith.constant 0 : index
    %c0_99 = arith.constant 0 : index
    %c0_100 = arith.constant 0 : index
    %192 = vector.load %arg20[%c0_98, %c0_99, %c0_100] : memref<2x64x32xf32, #tpu.memory_space<vmem>>, vector<1x64x32xf32>
    %193 = vector.shape_cast %192 : vector<1x64x32xf32> to vector<64x32xf32>
    %cst_101 = arith.constant dense<0.000000e+00> : vector<34x32xf32>
    %194 = tpu.matmul %191, %193, %cst_101 {dimension_numbers = #tpu.dot_dimension_numbers<[1], [0], [0], [1], [0, 0, 1, 1], [], []>} : vector<34x64xf32>, vector<64x32xf32>, vector<34x32xf32> -> vector<34x32xf32>
    %195 = arith.addf %150, %194 : vector<34x32xf32>
    %c0_102 = arith.constant 0 : index
    %c0_103 = arith.constant 0 : index
    %c0_104 = arith.constant 0 : index
    %196 = vector.load %arg21[%c0_102, %c0_103, %c0_104] : memref<2x1x32xf32, #tpu.memory_space<vmem>>, vector<1x1x32xf32>
    %197 = vector.shape_cast %196 : vector<1x1x32xf32> to vector<1x32xf32>
    %198 = vector.broadcast %197 : vector<1x32xf32> to vector<34x32xf32>
    %199 = arith.addf %195, %198 : vector<34x32xf32>
    %c1_105 = arith.constant 1 : index
    %c0_106 = arith.constant 0 : index
    %c0_107 = arith.constant 0 : index
    %200 = vector.load %arg11[%c1_105, %c0_106, %c0_107] : memref<2x1x32xf32, #tpu.memory_space<vmem>>, vector<1x1x32xf32>
    %201 = vector.shape_cast %200 : vector<1x1x32xf32> to vector<1x32xf32>
    %c1_108 = arith.constant 1 : index
    %c0_109 = arith.constant 0 : index
    %c0_110 = arith.constant 0 : index
    %202 = vector.load %arg12[%c1_108, %c0_109, %c0_110] : memref<2x1x32xf32, #tpu.memory_space<vmem>>, vector<1x1x32xf32>
    %203 = vector.shape_cast %202 : vector<1x1x32xf32> to vector<1x32xf32>
    %cst_111 = arith.constant dense<0.000000e+00> : vector<34xf32>
    %204 = vector.multi_reduction <add>, %199, %cst_111 [1] : vector<34x32xf32> to vector<34xf32>
    %205 = vector.shape_cast %204 : vector<34xf32> to vector<34x1xf32>
    %cst_112 = arith.constant 3.200000e+01 : f32
    %206 = vector.broadcast %cst_112 : f32 to vector<34x1xf32>
    %207 = arith.divf %205, %206 : vector<34x1xf32>
    %208 = vector.broadcast %207 : vector<34x1xf32> to vector<34x32xf32>
    %209 = arith.subf %199, %208 : vector<34x32xf32>
    %210 = arith.mulf %209, %209 : vector<34x32xf32>
    %cst_113 = arith.constant dense<0.000000e+00> : vector<34xf32>
    %211 = vector.multi_reduction <add>, %210, %cst_113 [1] : vector<34x32xf32> to vector<34xf32>
    %212 = vector.shape_cast %211 : vector<34xf32> to vector<34x1xf32>
    %cst_114 = arith.constant 3.200000e+01 : f32
    %213 = vector.broadcast %cst_114 : f32 to vector<34x1xf32>
    %214 = arith.divf %212, %213 : vector<34x1xf32>
    %215 = vector.broadcast %207 : vector<34x1xf32> to vector<34x32xf32>
    %216 = arith.subf %199, %215 : vector<34x32xf32>
    %cst_115 = arith.constant 9.99999974E-6 : f32
    %217 = vector.broadcast %cst_115 : f32 to vector<34x1xf32>
    %218 = arith.addf %214, %217 : vector<34x1xf32>
    %219 = math.rsqrt %218 : vector<34x1xf32>
    %220 = vector.broadcast %219 : vector<34x1xf32> to vector<34x32xf32>
    %221 = arith.mulf %216, %220 : vector<34x32xf32>
    %222 = vector.broadcast %201 : vector<1x32xf32> to vector<34x32xf32>
    %223 = arith.mulf %221, %222 : vector<34x32xf32>
    %224 = vector.broadcast %203 : vector<1x32xf32> to vector<34x32xf32>
    %225 = arith.addf %223, %224 : vector<34x32xf32>
    %c1_116 = arith.constant 1 : index
    %c0_117 = arith.constant 0 : index
    %c0_118 = arith.constant 0 : index
    %226 = vector.load %arg13[%c1_116, %c0_117, %c0_118] : memref<2x32x384xf32, #tpu.memory_space<vmem>>, vector<1x32x384xf32>
    %227 = vector.shape_cast %226 : vector<1x32x384xf32> to vector<32x384xf32>
    %cst_119 = arith.constant dense<0.000000e+00> : vector<34x384xf32>
    %228 = tpu.matmul %225, %227, %cst_119 {dimension_numbers = #tpu.dot_dimension_numbers<[1], [0], [0], [1], [0, 0, 1, 1], [], []>} : vector<34x32xf32>, vector<32x384xf32>, vector<34x384xf32> -> vector<34x384xf32>
    %c1_120 = arith.constant 1 : index
    %c0_121 = arith.constant 0 : index
    %c0_122 = arith.constant 0 : index
    %229 = vector.load %arg14[%c1_120, %c0_121, %c0_122] : memref<2x128x32xf32, #tpu.memory_space<vmem>>, vector<1x128x32xf32>
    %230 = vector.shape_cast %229 : vector<1x128x32xf32> to vector<128x32xf32>
    %c1_123 = arith.constant 1 : index
    %c0_124 = arith.constant 0 : index
    %c0_125 = arith.constant 0 : index
    %231 = vector.load %arg15[%c1_123, %c0_124, %c0_125] : memref<2x1x32xf32, #tpu.memory_space<vmem>>, vector<1x1x32xf32>
    %232 = vector.shape_cast %231 : vector<1x1x32xf32> to vector<1x32xf32>
    %233 = vector.extract_strided_slice %228 {offsets = [0, 0], sizes = [34, 64], strides = [1, 1]} : vector<34x384xf32> to vector<34x64xf32>
    %234 = vector.extract_strided_slice %228 {offsets = [0, 128], sizes = [34, 64], strides = [1, 1]} : vector<34x384xf32> to vector<34x64xf32>
    %235 = vector.extract_strided_slice %228 {offsets = [0, 256], sizes = [34, 64], strides = [1, 1]} : vector<34x384xf32> to vector<34x64xf32>
    %236 = tpu.transpose %234, [1, 0] : vector<34x64xf32> -> vector<64x34xf32>
    %cst_126 = arith.constant dense<0.000000e+00> : vector<34x34xf32>
    %237 = tpu.matmul %233, %236, %cst_126 {dimension_numbers = #tpu.dot_dimension_numbers<[1], [0], [0], [1], [0, 0, 1, 1], [], []>} : vector<34x64xf32>, vector<64x34xf32>, vector<34x34xf32> -> vector<34x34xf32>
    %cst_127 = arith.constant 1.250000e-01 : f32
    %238 = vector.broadcast %cst_127 : f32 to vector<34x34xf32>
    %239 = arith.mulf %237, %238 : vector<34x34xf32>
    %240 = arith.addf %239, %71 : vector<34x34xf32>
    %cst_128 = arith.constant dense<0xFF800000> : vector<34xf32>
    %241 = vector.multi_reduction <maximumf>, %240, %cst_128 [1] : vector<34x34xf32> to vector<34xf32>
    %242 = vector.shape_cast %241 : vector<34xf32> to vector<34x1xf32>
    %243 = vector.broadcast %242 : vector<34x1xf32> to vector<34x34xf32>
    %244 = arith.subf %240, %243 : vector<34x34xf32>
    %245 = math.exp %244 : vector<34x34xf32>
    %cst_129 = arith.constant dense<0.000000e+00> : vector<34xf32>
    %246 = vector.multi_reduction <add>, %245, %cst_129 [1] : vector<34x34xf32> to vector<34xf32>
    %247 = vector.shape_cast %246 : vector<34xf32> to vector<34x1xf32>
    %248 = tpu.reciprocal %247 {approx = true} : vector<34x1xf32> -> vector<34x1xf32>
    %249 = vector.broadcast %248 : vector<34x1xf32> to vector<34x34xf32>
    %250 = arith.mulf %245, %249 : vector<34x34xf32>
    %cst_130 = arith.constant dense<0.000000e+00> : vector<34x64xf32>
    %251 = tpu.matmul %250, %235, %cst_130 {dimension_numbers = #tpu.dot_dimension_numbers<[1], [0], [0], [1], [0, 0, 1, 1], [], []>} : vector<34x34xf32>, vector<34x64xf32>, vector<34x64xf32> -> vector<34x64xf32>
    %252 = vector.extract_strided_slice %230 {offsets = [0, 0], sizes = [64, 32], strides = [1, 1]} : vector<128x32xf32> to vector<64x32xf32>
    %cst_131 = arith.constant dense<0.000000e+00> : vector<34x32xf32>
    %253 = tpu.matmul %251, %252, %cst_131 {dimension_numbers = #tpu.dot_dimension_numbers<[1], [0], [0], [1], [0, 0, 1, 1], [], []>} : vector<34x64xf32>, vector<64x32xf32>, vector<34x32xf32> -> vector<34x32xf32>
    %254 = vector.broadcast %232 : vector<1x32xf32> to vector<34x32xf32>
    %255 = arith.addf %254, %253 : vector<34x32xf32>
    %256 = vector.extract_strided_slice %228 {offsets = [0, 64], sizes = [34, 64], strides = [1, 1]} : vector<34x384xf32> to vector<34x64xf32>
    %257 = vector.extract_strided_slice %228 {offsets = [0, 192], sizes = [34, 64], strides = [1, 1]} : vector<34x384xf32> to vector<34x64xf32>
    %258 = vector.extract_strided_slice %228 {offsets = [0, 320], sizes = [34, 64], strides = [1, 1]} : vector<34x384xf32> to vector<34x64xf32>
    %259 = tpu.transpose %257, [1, 0] : vector<34x64xf32> -> vector<64x34xf32>
    %cst_132 = arith.constant dense<0.000000e+00> : vector<34x34xf32>
    %260 = tpu.matmul %256, %259, %cst_132 {dimension_numbers = #tpu.dot_dimension_numbers<[1], [0], [0], [1], [0, 0, 1, 1], [], []>} : vector<34x64xf32>, vector<64x34xf32>, vector<34x34xf32> -> vector<34x34xf32>
    %cst_133 = arith.constant 1.250000e-01 : f32
    %261 = vector.broadcast %cst_133 : f32 to vector<34x34xf32>
    %262 = arith.mulf %260, %261 : vector<34x34xf32>
    %263 = arith.addf %262, %71 : vector<34x34xf32>
    %cst_134 = arith.constant dense<0xFF800000> : vector<34xf32>
    %264 = vector.multi_reduction <maximumf>, %263, %cst_134 [1] : vector<34x34xf32> to vector<34xf32>
    %265 = vector.shape_cast %264 : vector<34xf32> to vector<34x1xf32>
    %266 = vector.broadcast %265 : vector<34x1xf32> to vector<34x34xf32>
    %267 = arith.subf %263, %266 : vector<34x34xf32>
    %268 = math.exp %267 : vector<34x34xf32>
    %cst_135 = arith.constant dense<0.000000e+00> : vector<34xf32>
    %269 = vector.multi_reduction <add>, %268, %cst_135 [1] : vector<34x34xf32> to vector<34xf32>
    %270 = vector.shape_cast %269 : vector<34xf32> to vector<34x1xf32>
    %271 = tpu.reciprocal %270 {approx = true} : vector<34x1xf32> -> vector<34x1xf32>
    %272 = vector.broadcast %271 : vector<34x1xf32> to vector<34x34xf32>
    %273 = arith.mulf %268, %272 : vector<34x34xf32>
    %cst_136 = arith.constant dense<0.000000e+00> : vector<34x64xf32>
    %274 = tpu.matmul %273, %258, %cst_136 {dimension_numbers = #tpu.dot_dimension_numbers<[1], [0], [0], [1], [0, 0, 1, 1], [], []>} : vector<34x34xf32>, vector<34x64xf32>, vector<34x64xf32> -> vector<34x64xf32>
    %275 = vector.extract_strided_slice %230 {offsets = [64, 0], sizes = [64, 32], strides = [1, 1]} : vector<128x32xf32> to vector<64x32xf32>
    %cst_137 = arith.constant dense<0.000000e+00> : vector<34x32xf32>
    %276 = tpu.matmul %274, %275, %cst_137 {dimension_numbers = #tpu.dot_dimension_numbers<[1], [0], [0], [1], [0, 0, 1, 1], [], []>} : vector<34x64xf32>, vector<64x32xf32>, vector<34x32xf32> -> vector<34x32xf32>
    %277 = arith.addf %255, %276 : vector<34x32xf32>
    %278 = arith.addf %199, %277 : vector<34x32xf32>
    %c1_138 = arith.constant 1 : index
    %c0_139 = arith.constant 0 : index
    %c0_140 = arith.constant 0 : index
    %279 = vector.load %arg16[%c1_138, %c0_139, %c0_140] : memref<2x1x32xf32, #tpu.memory_space<vmem>>, vector<1x1x32xf32>
    %280 = vector.shape_cast %279 : vector<1x1x32xf32> to vector<1x32xf32>
    %c1_141 = arith.constant 1 : index
    %c0_142 = arith.constant 0 : index
    %c0_143 = arith.constant 0 : index
    %281 = vector.load %arg17[%c1_141, %c0_142, %c0_143] : memref<2x1x32xf32, #tpu.memory_space<vmem>>, vector<1x1x32xf32>
    %282 = vector.shape_cast %281 : vector<1x1x32xf32> to vector<1x32xf32>
    %cst_144 = arith.constant dense<0.000000e+00> : vector<34xf32>
    %283 = vector.multi_reduction <add>, %278, %cst_144 [1] : vector<34x32xf32> to vector<34xf32>
    %284 = vector.shape_cast %283 : vector<34xf32> to vector<34x1xf32>
    %cst_145 = arith.constant 3.200000e+01 : f32
    %285 = vector.broadcast %cst_145 : f32 to vector<34x1xf32>
    %286 = arith.divf %284, %285 : vector<34x1xf32>
    %287 = vector.broadcast %286 : vector<34x1xf32> to vector<34x32xf32>
    %288 = arith.subf %278, %287 : vector<34x32xf32>
    %289 = arith.mulf %288, %288 : vector<34x32xf32>
    %cst_146 = arith.constant dense<0.000000e+00> : vector<34xf32>
    %290 = vector.multi_reduction <add>, %289, %cst_146 [1] : vector<34x32xf32> to vector<34xf32>
    %291 = vector.shape_cast %290 : vector<34xf32> to vector<34x1xf32>
    %cst_147 = arith.constant 3.200000e+01 : f32
    %292 = vector.broadcast %cst_147 : f32 to vector<34x1xf32>
    %293 = arith.divf %291, %292 : vector<34x1xf32>
    %294 = vector.broadcast %286 : vector<34x1xf32> to vector<34x32xf32>
    %295 = arith.subf %278, %294 : vector<34x32xf32>
    %cst_148 = arith.constant 9.99999974E-6 : f32
    %296 = vector.broadcast %cst_148 : f32 to vector<34x1xf32>
    %297 = arith.addf %293, %296 : vector<34x1xf32>
    %298 = math.rsqrt %297 : vector<34x1xf32>
    %299 = vector.broadcast %298 : vector<34x1xf32> to vector<34x32xf32>
    %300 = arith.mulf %295, %299 : vector<34x32xf32>
    %301 = vector.broadcast %280 : vector<1x32xf32> to vector<34x32xf32>
    %302 = arith.mulf %300, %301 : vector<34x32xf32>
    %303 = vector.broadcast %282 : vector<1x32xf32> to vector<34x32xf32>
    %304 = arith.addf %302, %303 : vector<34x32xf32>
    %c1_149 = arith.constant 1 : index
    %c0_150 = arith.constant 0 : index
    %c0_151 = arith.constant 0 : index
    %305 = vector.load %arg18[%c1_149, %c0_150, %c0_151] : memref<2x32x64xf32, #tpu.memory_space<vmem>>, vector<1x32x64xf32>
    %306 = vector.shape_cast %305 : vector<1x32x64xf32> to vector<32x64xf32>
    %cst_152 = arith.constant dense<0.000000e+00> : vector<34x64xf32>
    %307 = tpu.matmul %304, %306, %cst_152 {dimension_numbers = #tpu.dot_dimension_numbers<[1], [0], [0], [1], [0, 0, 1, 1], [], []>} : vector<34x32xf32>, vector<32x64xf32>, vector<34x64xf32> -> vector<34x64xf32>
    %c1_153 = arith.constant 1 : index
    %c0_154 = arith.constant 0 : index
    %c0_155 = arith.constant 0 : index
    %308 = vector.load %arg19[%c1_153, %c0_154, %c0_155] : memref<2x1x64xf32, #tpu.memory_space<vmem>>, vector<1x1x64xf32>
    %309 = vector.shape_cast %308 : vector<1x1x64xf32> to vector<1x64xf32>
    %310 = vector.broadcast %309 : vector<1x64xf32> to vector<34x64xf32>
    %311 = arith.addf %307, %310 : vector<34x64xf32>
    %cst_156 = arith.constant 5.000000e-01 : f32
    %312 = vector.broadcast %cst_156 : f32 to vector<34x64xf32>
    %313 = arith.mulf %312, %311 : vector<34x64xf32>
    %cst_157 = arith.constant 1.41421354 : f32
    %314 = vector.broadcast %cst_157 : f32 to vector<34x64xf32>
    %315 = arith.divf %311, %314 : vector<34x64xf32>
    %316 = math.erf %315 : vector<34x64xf32>
    %cst_158 = arith.constant 1.000000e+00 : f32
    %317 = vector.broadcast %cst_158 : f32 to vector<34x64xf32>
    %318 = arith.addf %317, %316 : vector<34x64xf32>
    %319 = arith.mulf %313, %318 : vector<34x64xf32>
    %c1_159 = arith.constant 1 : index
    %c0_160 = arith.constant 0 : index
    %c0_161 = arith.constant 0 : index
    %320 = vector.load %arg20[%c1_159, %c0_160, %c0_161] : memref<2x64x32xf32, #tpu.memory_space<vmem>>, vector<1x64x32xf32>
    %321 = vector.shape_cast %320 : vector<1x64x32xf32> to vector<64x32xf32>
    %cst_162 = arith.constant dense<0.000000e+00> : vector<34x32xf32>
    %322 = tpu.matmul %319, %321, %cst_162 {dimension_numbers = #tpu.dot_dimension_numbers<[1], [0], [0], [1], [0, 0, 1, 1], [], []>} : vector<34x64xf32>, vector<64x32xf32>, vector<34x32xf32> -> vector<34x32xf32>
    %323 = arith.addf %278, %322 : vector<34x32xf32>
    %c1_163 = arith.constant 1 : index
    %c0_164 = arith.constant 0 : index
    %c0_165 = arith.constant 0 : index
    %324 = vector.load %arg21[%c1_163, %c0_164, %c0_165] : memref<2x1x32xf32, #tpu.memory_space<vmem>>, vector<1x1x32xf32>
    %325 = vector.shape_cast %324 : vector<1x1x32xf32> to vector<1x32xf32>
    %326 = vector.broadcast %325 : vector<1x32xf32> to vector<34x32xf32>
    %327 = arith.addf %323, %326 : vector<34x32xf32>
    %328 = vector.extract_strided_slice %327 {offsets = [0, 0], sizes = [1, 32], strides = [1, 1]} : vector<34x32xf32> to vector<1x32xf32>
    %329 = vector.extract_strided_slice %327 {offsets = [17, 0], sizes = [1, 32], strides = [1, 1]} : vector<34x32xf32> to vector<1x32xf32>
    %330 = tpu.concatenate %328, %329 in 0 : vector<1x32xf32>, vector<1x32xf32> -> vector<2x32xf32>
    %c0_166 = arith.constant 0 : index
    %c0_167 = arith.constant 0 : index
    %331 = vector.load %arg22[%c0_166, %c0_167] : memref<1x32xf32, #tpu.memory_space<vmem>>, vector<1x32xf32>
    %c0_168 = arith.constant 0 : index
    %c0_169 = arith.constant 0 : index
    %332 = vector.load %arg23[%c0_168, %c0_169] : memref<1x32xf32, #tpu.memory_space<vmem>>, vector<1x32xf32>
    %cst_170 = arith.constant dense<0.000000e+00> : vector<2xf32>
    %333 = vector.multi_reduction <add>, %330, %cst_170 [1] : vector<2x32xf32> to vector<2xf32>
    %334 = vector.shape_cast %333 : vector<2xf32> to vector<2x1xf32>
    %cst_171 = arith.constant 3.200000e+01 : f32
    %335 = vector.broadcast %cst_171 : f32 to vector<2x1xf32>
    %336 = arith.divf %334, %335 : vector<2x1xf32>
    %337 = vector.broadcast %336 : vector<2x1xf32> to vector<2x32xf32>
    %338 = arith.subf %330, %337 : vector<2x32xf32>
    %339 = arith.mulf %338, %338 : vector<2x32xf32>
    %cst_172 = arith.constant dense<0.000000e+00> : vector<2xf32>
    %340 = vector.multi_reduction <add>, %339, %cst_172 [1] : vector<2x32xf32> to vector<2xf32>
    %341 = vector.shape_cast %340 : vector<2xf32> to vector<2x1xf32>
    %cst_173 = arith.constant 3.200000e+01 : f32
    %342 = vector.broadcast %cst_173 : f32 to vector<2x1xf32>
    %343 = arith.divf %341, %342 : vector<2x1xf32>
    %344 = vector.broadcast %336 : vector<2x1xf32> to vector<2x32xf32>
    %345 = arith.subf %330, %344 : vector<2x32xf32>
    %cst_174 = arith.constant 9.99999974E-6 : f32
    %346 = vector.broadcast %cst_174 : f32 to vector<2x1xf32>
    %347 = arith.addf %343, %346 : vector<2x1xf32>
    %348 = math.rsqrt %347 : vector<2x1xf32>
    %349 = vector.broadcast %348 : vector<2x1xf32> to vector<2x32xf32>
    %350 = arith.mulf %345, %349 : vector<2x32xf32>
    %351 = vector.broadcast %331 : vector<1x32xf32> to vector<2x32xf32>
    %352 = arith.mulf %350, %351 : vector<2x32xf32>
    %353 = vector.broadcast %332 : vector<1x32xf32> to vector<2x32xf32>
    %354 = arith.addf %352, %353 : vector<2x32xf32>
    %c0_175 = arith.constant 0 : index
    %c0_176 = arith.constant 0 : index
    %355 = vector.load %arg24[%c0_175, %c0_176] : memref<32x2xf32, #tpu.memory_space<vmem>>, vector<32x2xf32>
    %cst_177 = arith.constant dense<0.000000e+00> : vector<2x2xf32>
    %356 = tpu.matmul %354, %355, %cst_177 {dimension_numbers = #tpu.dot_dimension_numbers<[1], [0], [0], [1], [0, 0, 1, 1], [], []>} : vector<2x32xf32>, vector<32x2xf32>, vector<2x2xf32> -> vector<2x2xf32>
    %c0_178 = arith.constant 0 : index
    %c0_179 = arith.constant 0 : index
    %357 = vector.load %arg25[%c0_178, %c0_179] : memref<1x2xf32, #tpu.memory_space<vmem>>, vector<1x2xf32>
    %358 = vector.broadcast %357 : vector<1x2xf32> to vector<2x2xf32>
    %359 = arith.addf %356, %358 : vector<2x2xf32>
    %c0_180 = arith.constant 0 : index
    %c0_181 = arith.constant 0 : index
    %360 = vector.load %arg26[%c0_180, %c0_181] : memref<2x2xf32, #tpu.memory_space<vmem>>, vector<2x2xf32>
    tpu.vector_store %arg26[%c0_180, %c0_181], %359 {strides = array<i32>} : memref<2x2xf32, #tpu.memory_space<vmem>>, vector<2x2xf32>,
    return
  }
  func.func @transform_0(%arg0: i32) -> (i32, i32) {
    %c0_i32 = arith.constant 0 : i32
    %c0_i32_0 = arith.constant 0 : i32
    %c0_i32_1 = arith.constant 0 : i32
    return %c0_i32, %c0_i32_0 : i32, i32
  }
  func.func @transform_1(%arg0: i32) -> (i32, i32) {
    %c0_i32 = arith.constant 0 : i32
    %c0_i32_0 = arith.constant 0 : i32
    %c0_i32_1 = arith.constant 0 : i32
    return %c0_i32, %c0_i32_0 : i32, i32
  }
  func.func @transform_2(%arg0: i32) -> (i32, i32) {
    %c0_i32 = arith.constant 0 : i32
    %c0_i32_0 = arith.constant 0 : i32
    %c0_i32_1 = arith.constant 0 : i32
    return %c0_i32, %c0_i32_0 : i32, i32
  }
  func.func @transform_3(%arg0: i32) -> (i32, i32) {
    %c0_i32 = arith.constant 0 : i32
    %c0_i32_0 = arith.constant 0 : i32
    %c0_i32_1 = arith.constant 0 : i32
    return %c0_i32, %c0_i32_0 : i32, i32
  }
  func.func @transform_4(%arg0: i32) -> (i32, i32) {
    %c0_i32 = arith.constant 0 : i32
    %c0_i32_0 = arith.constant 0 : i32
    %c0_i32_1 = arith.constant 0 : i32
    return %c0_i32, %c0_i32_0 : i32, i32
  }
  func.func @transform_5(%arg0: i32) -> (i32, i32) {
    %c0_i32 = arith.constant 0 : i32
    %c0_i32_0 = arith.constant 0 : i32
    %c0_i32_1 = arith.constant 0 : i32
    return %c0_i32, %c0_i32_0 : i32, i32
  }
  func.func @transform_6(%arg0: i32) -> (i32, i32) {
    %c0_i32 = arith.constant 0 : i32
    %c0_i32_0 = arith.constant 0 : i32
    %c0_i32_1 = arith.constant 0 : i32
    return %c0_i32, %c0_i32_0 : i32, i32
  }
  func.func @transform_7(%arg0: i32) -> (i32, i32) {
    %c0_i32 = arith.constant 0 : i32
    %c0_i32_0 = arith.constant 0 : i32
    %c0_i32_1 = arith.constant 0 : i32
    return %c0_i32, %c0_i32_0 : i32, i32
  }
  func.func @transform_8(%arg0: i32) -> (i32, i32) {
    %c0_i32 = arith.constant 0 : i32
    %c0_i32_0 = arith.constant 0 : i32
    %c0_i32_1 = arith.constant 0 : i32
    return %c0_i32, %c0_i32_0 : i32, i32
  }
  func.func @transform_9(%arg0: i32) -> (i32, i32) {
    %c0_i32 = arith.constant 0 : i32
    %c0_i32_0 = arith.constant 0 : i32
    %c0_i32_1 = arith.constant 0 : i32
    return %c0_i32, %c0_i32_0 : i32, i32
  }
  func.func @transform_10(%arg0: i32) -> (i32, i32, i32) {
    %c0_i32 = arith.constant 0 : i32
    %c0_i32_0 = arith.constant 0 : i32
    %c0_i32_1 = arith.constant 0 : i32
    %c0_i32_2 = arith.constant 0 : i32
    return %c0_i32, %c0_i32_0, %c0_i32_1 : i32, i32, i32
  }
  func.func @transform_11(%arg0: i32) -> (i32, i32, i32) {
    %c0_i32 = arith.constant 0 : i32
    %c0_i32_0 = arith.constant 0 : i32
    %c0_i32_1 = arith.constant 0 : i32
    %c0_i32_2 = arith.constant 0 : i32
    return %c0_i32, %c0_i32_0, %c0_i32_1 : i32, i32, i32
  }
  func.func @transform_12(%arg0: i32) -> (i32, i32, i32) {
    %c0_i32 = arith.constant 0 : i32
    %c0_i32_0 = arith.constant 0 : i32
    %c0_i32_1 = arith.constant 0 : i32
    %c0_i32_2 = arith.constant 0 : i32
    return %c0_i32, %c0_i32_0, %c0_i32_1 : i32, i32, i32
  }
  func.func @transform_13(%arg0: i32) -> (i32, i32, i32) {
    %c0_i32 = arith.constant 0 : i32
    %c0_i32_0 = arith.constant 0 : i32
    %c0_i32_1 = arith.constant 0 : i32
    %c0_i32_2 = arith.constant 0 : i32
    return %c0_i32, %c0_i32_0, %c0_i32_1 : i32, i32, i32
  }
  func.func @transform_14(%arg0: i32) -> (i32, i32, i32) {
    %c0_i32 = arith.constant 0 : i32
    %c0_i32_0 = arith.constant 0 : i32
    %c0_i32_1 = arith.constant 0 : i32
    %c0_i32_2 = arith.constant 0 : i32
    return %c0_i32, %c0_i32_0, %c0_i32_1 : i32, i32, i32
  }
  func.func @transform_15(%arg0: i32) -> (i32, i32, i32) {
    %c0_i32 = arith.constant 0 : i32
    %c0_i32_0 = arith.constant 0 : i32
    %c0_i32_1 = arith.constant 0 : i32
    %c0_i32_2 = arith.constant 0 : i32
    return %c0_i32, %c0_i32_0, %c0_i32_1 : i32, i32, i32
  }
  func.func @transform_16(%arg0: i32) -> (i32, i32, i32) {
    %c0_i32 = arith.constant 0 : i32
    %c0_i32_0 = arith.constant 0 : i32
    %c0_i32_1 = arith.constant 0 : i32
    %c0_i32_2 = arith.constant 0 : i32
    return %c0_i32, %c0_i32_0, %c0_i32_1 : i32, i32, i32
  }
  func.func @transform_17(%arg0: i32) -> (i32, i32, i32) {
    %c0_i32 = arith.constant 0 : i32
    %c0_i32_0 = arith.constant 0 : i32
    %c0_i32_1 = arith.constant 0 : i32
    %c0_i32_2 = arith.constant 0 : i32
    return %c0_i32, %c0_i32_0, %c0_i32_1 : i32, i32, i32
  }
  func.func @transform_18(%arg0: i32) -> (i32, i32, i32) {
    %c0_i32 = arith.constant 0 : i32
    %c0_i32_0 = arith.constant 0 : i32
    %c0_i32_1 = arith.constant 0 : i32
    %c0_i32_2 = arith.constant 0 : i32
    return %c0_i32, %c0_i32_0, %c0_i32_1 : i32, i32, i32
  }
  func.func @transform_19(%arg0: i32) -> (i32, i32, i32) {
    %c0_i32 = arith.constant 0 : i32
    %c0_i32_0 = arith.constant 0 : i32
    %c0_i32_1 = arith.constant 0 : i32
    %c0_i32_2 = arith.constant 0 : i32
    return %c0_i32, %c0_i32_0, %c0_i32_1 : i32, i32, i32
  }
  func.func @transform_20(%arg0: i32) -> (i32, i32, i32) {
    %c0_i32 = arith.constant 0 : i32
    %c0_i32_0 = arith.constant 0 : i32
    %c0_i32_1 = arith.constant 0 : i32
    %c0_i32_2 = arith.constant 0 : i32
    return %c0_i32, %c0_i32_0, %c0_i32_1 : i32, i32, i32
  }
  func.func @transform_21(%arg0: i32) -> (i32, i32) {
    %c0_i32 = arith.constant 0 : i32
    %c0_i32_0 = arith.constant 0 : i32
    %c0_i32_1 = arith.constant 0 : i32
    return %c0_i32, %c0_i32_0 : i32, i32
  }
  func.func @transform_22(%arg0: i32) -> (i32, i32) {
    %c0_i32 = arith.constant 0 : i32
    %c0_i32_0 = arith.constant 0 : i32
    %c0_i32_1 = arith.constant 0 : i32
    return %c0_i32, %c0_i32_0 : i32, i32
  }
  func.func @transform_23(%arg0: i32) -> (i32, i32) {
    %c0_i32 = arith.constant 0 : i32
    %c0_i32_0 = arith.constant 0 : i32
    %c0_i32_1 = arith.constant 0 : i32
    return %c0_i32, %c0_i32_0 : i32, i32
  }
  func.func @transform_24(%arg0: i32) -> (i32, i32) {
    %c0_i32 = arith.constant 0 : i32
    %c0_i32_0 = arith.constant 0 : i32
    %c0_i32_1 = arith.constant 0 : i32
    return %c0_i32, %c0_i32_0 : i32, i32
  }
  func.func @transform_25(%arg0: i32) -> (i32, i32) {
    %c0_i32 = arith.constant 0 : i32
    %c0_i32_0 = arith.constant 0 : i32
    %c0_i32_1 = arith.constant 0 : i32
    return %c0_i32, %c0_i32_0 : i32, i32
  }
}

</mosaic_0001>

<llo_original>
// kernel: eq.8
$region0: #{eq.8}
  %s0 = inlined_call_operand.vmem [shape: s32[2,17], index: 0, kind: input, shape index: {}]
  %s1 = inlined_call_operand.vmem [shape: s32[34], index: 1, kind: output, shape index: {}]
  $region1: #{eq.8} parent=0
    #allocation0 [shape = 'u8[4096]{0}', space=vmem, size = 0x1000, scoped, tag = 'scoped mem for output reshape']
    #allocation1 [shape = 'u8[4096]{0}', space=vmem, size = 0x1000, scoped, tag = 'scoped mem for input reshape']
    %s3 = sshllo.u32 0, 2
    %v4 = vld [vmem:[%s0] sm:%s3]
    %5 = vst [vmem:[#allocation1] sm:%s3] %v4
    %v6 = vld [vmem:[#allocation1] sm:$0x1]
    %vm7 = vcmask 138240
    %8 = vst.msk [vmem:[#allocation0] sm:$0x1] %vm7, %v6
    %s9 = scalar_lea.vmem [#allocation1], 1
    %v10 = vld [vmem:[%s9] sm:$0x1]
    %11 = vrot.lane.b32.xlu0 %v10, 17
    %v12 = vpop.permute.xlu0 %11
    %vm13 = vcmask 277640
    %14 = vst.msk [vmem:[#allocation0] sm:$0x1] %vm13, %v12
    %s16 = sshllo.u32 0, 1
    %v18 = vld [vmem:[#allocation0] sm:%s16]
    %s19 = sshllo.u32 0, 1
    %20 = vst [vmem:[%s1] sm:%s19] %v18

// kernel: vit_forward.1
$region0: #{vit_forward.1}
  #allocation0 [shape = 'u32[]', space=smem, size = 0x4, offset = 0x4, fixed_abs, tag = 'smem constant byte address 0x4 - core index']
  #allocation1 [shape = 'u32[144,128]{1,0:T(1,128)}', space=vmem, size = 0x12000, scoped, tag = 'internal scratch']
  #allocation2 [shape = 'f32[34,32]{1,0:T(8,128)}', space=vmem, size = 0x5000, scoped, tag = 'scratch operand']
  %s0 = inlined_call_operand.vmem [shape: f32[32,16], index: 0, kind: input, shape index: {}]
  %s1 = inlined_call_operand.vmem [shape: f32[17,32], index: 1, kind: input, shape index: {}]
  %s2 = inlined_call_operand.vmem [shape: f32[34,34], index: 2, kind: input, shape index: {}]
  %s3 = inlined_call_operand.vmem [shape: f32[1,32], index: 3, kind: input, shape index: {}]
  %s4 = inlined_call_operand.vmem [shape: f32[1,16], index: 4, kind: input, shape index: {}]
  %s5 = inlined_call_operand.vmem [shape: f32[1,16], index: 5, kind: input, shape index: {}]
  %s6 = inlined_call_operand.vmem [shape: f32[16,32], index: 6, kind: input, shape index: {}]
  %s7 = inlined_call_operand.vmem [shape: f32[1,32], index: 7, kind: input, shape index: {}]
  %s8 = inlined_call_operand.vmem [shape: f32[1,32], index: 8, kind: input, shape index: {}]
  %s9 = inlined_call_operand.vmem [shape: f32[1,32], index: 9, kind: input, shape index: {}]
  %s10 = inlined_call_operand.vmem [shape: f32[2,1,32], index: 10, kind: input, shape index: {}]
  %s11 = inlined_call_operand.vmem [shape: f32[2,1,32], index: 11, kind: input, shape index: {}]
  %s12 = inlined_call_operand.vmem [shape: f32[2,32,384], index: 12, kind: input, shape index: {}]
  %s13 = inlined_call_operand.vmem [shape: f32[2,128,32], index: 13, kind: input, shape index: {}]
  %s14 = inlined_call_operand.vmem [shape: f32[2,1,32], index: 14, kind: input, shape index: {}]
  %s15 = inlined_call_operand.vmem [shape: f32[2,1,32], index: 15, kind: input, shape index: {}]
  %s16 = inlined_call_operand.vmem [shape: f32[2,1,32], index: 16, kind: input, shape index: {}]
  %s17 = inlined_call_operand.vmem [shape: f32[2,32,64], index: 17, kind: input, shape index: {}]
  %s18 = inlined_call_operand.vmem [shape: f32[2,1,64], index: 18, kind: input, shape index: {}]
  %s19 = inlined_call_operand.vmem [shape: f32[2,64,32], index: 19, kind: input, shape index: {}]
  %s20 = inlined_call_operand.vmem [shape: f32[2,1,32], index: 20, kind: input, shape index: {}]
  %s21 = inlined_call_operand.vmem [shape: f32[1,32], index: 21, kind: input, shape index: {}]
  %s22 = inlined_call_operand.vmem [shape: f32[1,32], index: 22, kind: input, shape index: {}]
  %s23 = inlined_call_operand.vmem [shape: f32[32,2], index: 23, kind: input, shape index: {}]
  %s24 = inlined_call_operand.vmem [shape: f32[1,2], index: 24, kind: input, shape index: {}]
  %s25 = inlined_call_operand.hbm [shape: f32[2,2], index: 25, kind: output, shape index: {}]
  %s26 = sld [smem:[#allocation0]]
  $region110: #{vit_forward.1} parent=0
    _
  %s28 = ssub.s32 1, %s26
  %s29 = scalar_select 0, %s28, %s26
  $region1: #{vit_forward.1} parent=0
    #allocation3 [shape = 'u8[1024]{0}', space=vmem, size = 0x400, scoped, tag = 'output window, operand 0, single buffered']
    #allocation4 [shape = 's32[1]{0}', space=sflag, size = 0x4, scoped, tag = 'scoped memory for vit_forward.1']
    %30 = vsyncpa [#allocation4], 0
    // Predicated region
    $region2: #{vit_forward.1} parent=1 // pred_check
      _
    $region3: #{vit_forward.1} parent=1 // pred_check_branch
      %32 = sbr.rel (0) target = $region5
    $region4: #{vit_forward.1} parent=1 // pred_region
      _
    $region5: #{vit_forward.1} parent=1 // pred_fallthru
      _
    // Predicated region
    $region6: #{vit_forward.1} parent=1 // pred_check
      _
    $region7: #{vit_forward.1} parent=1 // pred_check_branch
      %34 = sbr.rel (0) target = $region9
    $region8: #{vit_forward.1} parent=1 // pred_region
      _
    $region9: #{vit_forward.1} parent=1 // pred_fallthru
      _
    // Predicated region
    $region10: #{vit_forward.1} parent=1 // pred_check
      _
    $region11: #{vit_forward.1} parent=1 // pred_check_branch
      %36 = sbr.rel (0) target = $region13
    $region12: #{vit_forward.1} parent=1 // pred_region
      _
    $region13: #{vit_forward.1} parent=1 // pred_fallthru
      _
    // Predicated region
    $region14: #{vit_forward.1} parent=1 // pred_check
      _
    $region15: #{vit_forward.1} parent=1 // pred_check_branch
      %38 = sbr.rel (0) target = $region17
    $region16: #{vit_forward.1} parent=1 // pred_region
      _
    $region17: #{vit_forward.1} parent=1 // pred_fallthru
      _
    // Predicated region
    $region18: #{vit_forward.1} parent=1 // pred_check
      _
    $region19: #{vit_forward.1} parent=1 // pred_check_branch
      %40 = sbr.rel (0) target = $region21
    $region20: #{vit_forward.1} parent=1 // pred_region
      _
    $region21: #{vit_forward.1} parent=1 // pred_fallthru
      _
    // Predicated region
    $region22: #{vit_forward.1} parent=1 // pred_check
      _
    $region23: #{vit_forward.1} parent=1 // pred_check_branch
      %42 = sbr.rel (0) target = $region25
    $region24: #{vit_forward.1} parent=1 // pred_region
      _
    $region25: #{vit_forward.1} parent=1 // pred_fallthru
      _
    // Predicated region
    $region26: #{vit_forward.1} parent=1 // pred_check
      _
    $region27: #{vit_forward.1} parent=1 // pred_check_branch
      %44 = sbr.rel (0) target = $region29
    $region28: #{vit_forward.1} parent=1 // pred_region
      _
    $region29: #{vit_forward.1} parent=1 // pred_fallthru
      _
    // Predicated region
    $region30: #{vit_forward.1} parent=1 // pred_check
      _
    $region31: #{vit_forward.1} parent=1 // pred_check_branch
      %46 = sbr.rel (0) target = $region33
    $region32: #{vit_forward.1} parent=1 // pred_region
      _
    $region33: #{vit_forward.1} parent=1 // pred_fallthru
      _
    // Predicated region
    $region34: #{vit_forward.1} parent=1 // pred_check
      _
    $region35: #{vit_forward.1} parent=1 // pred_check_branch
      %48 = sbr.rel (0) target = $region37
    $region36: #{vit_forward.1} parent=1 // pred_region
      _
    $region37: #{vit_forward.1} parent=1 // pred_fallthru
      _
    // Predicated region
    $region38: #{vit_forward.1} parent=1 // pred_check
      _
    $region39: #{vit_forward.1} parent=1 // pred_check_branch
      %50 = sbr.rel (0) target = $region41
    $region40: #{vit_forward.1} parent=1 // pred_region
      _
    $region41: #{vit_forward.1} parent=1 // pred_fallthru
      _
    // Predicated region
    $region42: #{vit_forward.1} parent=1 // pred_check
      _
    $region43: #{vit_forward.1} parent=1 // pred_check_branch
      %52 = sbr.rel (0) target = $region45
    $region44: #{vit_forward.1} parent=1 // pred_region
      _
    $region45: #{vit_forward.1} parent=1 // pred_fallthru
      _
    // Predicated region
    $region46: #{vit_forward.1} parent=1 // pred_check
      _
    $region47: #{vit_forward.1} parent=1 // pred_check_branch
      %54 = sbr.rel (0) target = $region49
    $region48: #{vit_forward.1} parent=1 // pred_region
      _
    $region49: #{vit_forward.1} parent=1 // pred_fallthru
      _
    // Predicated region
    $region50: #{vit_forward.1} parent=1 // pred_check
      _
    $region51: #{vit_forward.1} parent=1 // pred_check_branch
      %56 = sbr.rel (0) target = $region53
    $region52: #{vit_forward.1} parent=1 // pred_region
      _
    $region53: #{vit_forward.1} parent=1 // pred_fallthru
      _
    // Predicated region
    $region54: #{vit_forward.1} parent=1 // pred_check
      _
    $region55: #{vit_forward.1} parent=1 // pred_check_branch
      %58 = sbr.rel (0) target = $region57
    $region56: #{vit_forward.1} parent=1 // pred_region
      _
    $region57: #{vit_forward.1} parent=1 // pred_fallthru
      _
    // Predicated region
    $region58: #{vit_forward.1} parent=1 // pred_check
      _
    $region59: #{vit_forward.1} parent=1 // pred_check_branch
      %60 = sbr.rel (0) target = $region61
    $region60: #{vit_forward.1} parent=1 // pred_region
      _
    $region61: #{vit_forward.1} parent=1 // pred_fallthru
      _
    // Predicated region
    $region62: #{vit_forward.1} parent=1 // pred_check
      _
    $region63: #{vit_forward.1} parent=1 // pred_check_branch
      %62 = sbr.rel (0) target = $region65
    $region64: #{vit_forward.1} parent=1 // pred_region
      _
    $region65: #{vit_forward.1} parent=1 // pred_fallthru
      _
    // Predicated region
    $region66: #{vit_forward.1} parent=1 // pred_check
      _
    $region67: #{vit_forward.1} parent=1 // pred_check_branch
      %64 = sbr.rel (0) target = $region69
    $region68: #{vit_forward.1} parent=1 // pred_region
      _
    $region69: #{vit_forward.1} parent=1 // pred_fallthru
      _
    // Predicated region
    $region70: #{vit_forward.1} parent=1 // pred_check
      _
    $region71: #{vit_forward.1} parent=1 // pred_check_branch
      %66 = sbr.rel (0) target = $region73
    $region72: #{vit_forward.1} parent=1 // pred_region
      _
    $region73: #{vit_forward.1} parent=1 // pred_fallthru
      _
    // Predicated region
    $region74: #{vit_forward.1} parent=1 // pred_check
      _
    $region75: #{vit_forward.1} parent=1 // pred_check_branch
      %68 = sbr.rel (0) target = $region77
    $region76: #{vit_forward.1} parent=1 // pred_region
      _
    $region77: #{vit_forward.1} parent=1 // pred_fallthru
      _
    // Predicated region
    $region78: #{vit_forward.1} parent=1 // pred_check
      _
    $region79: #{vit_forward.1} parent=1 // pred_check_branch
      %70 = sbr.rel (0) target = $region81
    $region80: #{vit_forward.1} parent=1 // pred_region
      _
    $region81: #{vit_forward.1} parent=1 // pred_fallthru
      _
    // Predicated region
    $region82: #{vit_forward.1} parent=1 // pred_check
      _
    $region83: #{vit_forward.1} parent=1 // pred_check_branch
      %72 = sbr.rel (0) target = $region85
    $region84: #{vit_forward.1} parent=1 // pred_region
      _
    $region85: #{vit_forward.1} parent=1 // pred_fallthru
      _
    // Predicated region
    $region86: #{vit_forward.1} parent=1 // pred_check
      _
    $region87: #{vit_forward.1} parent=1 // pred_check_branch
      %74 = sbr.rel (0) target = $region89
    $region88: #{vit_forward.1} parent=1 // pred_region
      _
    $region89: #{vit_forward.1} parent=1 // pred_fallthru
      _
    // Predicated region
    $region90: #{vit_forward.1} parent=1 // pred_check
      _
    $region91: #{vit_forward.1} parent=1 // pred_check_branch
      %76 = sbr.rel (0) target = $region93
    $region92: #{vit_forward.1} parent=1 // pred_region
      _
    $region93: #{vit_forward.1} parent=1 // pred_fallthru
      _
    // Predicated region
    $region94: #{vit_forward.1} parent=1 // pred_check
      _
    $region95: #{vit_forward.1} parent=1 // pred_check_branch
      %78 = sbr.rel (0) target = $region97
    $region96: #{vit_forward.1} parent=1 // pred_region
      _
    $region97: #{vit_forward.1} parent=1 // pred_fallthru
      _
    // Predicated region
    $region98: #{vit_forward.1} parent=1 // pred_check
      _
    $region99: #{vit_forward.1} parent=1 // pred_check_branch
      %80 = sbr.rel (0) target = $region101
    $region100: #{vit_forward.1} parent=1 // pred_region
      _
    $region101: #{vit_forward.1} parent=1 // pred_fallthru
      _
    %v81 = vld [vmem:[%s0] sm:$0xff]
    %v82 = vld [vmem:[%s0 + $0x8] sm:$0xff]
    %v83 = vld [vmem:[%s0 + $0x10] sm:$0xff]
    %v84 = vld [vmem:[%s0 + $0x18] sm:$0xff]
    %v85 = vld [vmem:[%s4] sm:$0x1]
    %v86 = vld [vmem:[%s5] sm:$0x1]
    %vm87 = vcmask 130048
    %v88 = vsel %vm87, %v81, 0.0
    %89 = vadd.xlane.f32.xlu0 %v88
    %v90 = vpop.xlane.xlu0 %89
    %v91 = vsel %vm87, %v82, 0.0
    %92 = vadd.xlane.f32.xlu0 %v91
    %v93 = vpop.xlane.xlu0 %92
    %v94 = vsel %vm87, %v83, 0.0
    %95 = vadd.xlane.f32.xlu0 %v94
    %v96 = vpop.xlane.xlu0 %95
    %v97 = vsel %vm87, %v84, 0.0
    %98 = vadd.xlane.f32.xlu0 %v97
    %v99 = vpop.xlane.xlu0 %98
    %v100 = vrcp.pop 16.0
    %v101 = vmul.f32 %v90, %v100
    %v102 = vmul.f32 %v93, %v100
    %v103 = vmul.f32 %v96, %v100
    %v104 = vmul.f32 %v99, %v100
    %v105 = vsub.f32 %v81, %v101
    %v106 = vsub.f32 %v82, %v102
    %v107 = vsub.f32 %v83, %v103
    %v108 = vsub.f32 %v84, %v104
    %v109 = vmul.f32 %v105, %v105
    %v110 = vmul.f32 %v106, %v106
    %v111 = vmul.f32 %v107, %v107
    %v112 = vmul.f32 %v108, %v108
    %v113 = vsel %vm87, %v109, 0.0
    %114 = vadd.xlane.f32.xlu0 %v113
    %v115 = vpop.xlane.xlu0 %114
    %v116 = vsel %vm87, %v110, 0.0
    %117 = vadd.xlane.f32.xlu0 %v116
    %v118 = vpop.xlane.xlu0 %117
    %v119 = vsel %vm87, %v111, 0.0
    %120 = vadd.xlane.f32.xlu0 %v119
    %v121 = vpop.xlane.xlu0 %120
    %v122 = vsel %vm87, %v112, 0.0
    %123 = vadd.xlane.f32.xlu0 %v122
    %v124 = vpop.xlane.xlu0 %123
    %v125 = vmul.f32 %v115, %v100
    %v126 = vmul.f32 %v118, %v100
    %v127 = vmul.f32 %v121, %v100
    %v128 = vmul.f32 %v124, %v100
    %v129 = vadd.f32 %v125, 1e-05
    %v130 = vadd.f32 %v126, 1e-05
    %v131 = vadd.f32 %v127, 1e-05
    %v132 = vadd.f32 %v128, 1e-05
    %v133 = vrsqrt.pop %v129
    %v134 = vrsqrt.pop %v130
    %v135 = vrsqrt.pop %v131
    %v136 = vrsqrt.pop %v132
    %v137 = vmul.f32 %v105, %v133
    %v138 = vmul.f32 %v106, %v134
    %v139 = vmul.f32 %v107, %v135
    %v140 = vmul.f32 %v108, %v136
    %v142 = vlaneseq
    %v143 = vshrl.u32 %v142, 7
    %v144 = vsub.s32 0, %v143
    %v145 = vrot.slane %v85, %v144
    %v147 = vmul.f32 %v137, %v145
    %v148 = vmul.f32 %v138, %v145
    %v149 = vmul.f32 %v139, %v145
    %v150 = vmul.f32 %v140, %v145
    %v152 = vlaneseq
    %v153 = vshrl.u32 %v152, 7
    %v154 = vsub.s32 0, %v153
    %v155 = vrot.slane %v86, %v154
    %v157 = vadd.f32 %v147, %v155
    %v158 = vadd.f32 %v148, %v155
    %v159 = vadd.f32 %v149, %v155
    %v160 = vadd.f32 %v150, %v155
    %v161 = vld [vmem:[%s6] sm:$0xff]
    %v162 = vld [vmem:[%s6 + $0x8] sm:$0xff]
    %v163 = vld [vmem:[%s7] sm:$0x1]
    %v165 = vlaneseq
    %v166 = vshrl.u32 %v165, 7
    %v167 = vsub.s32 0, %v166
    %v168 = vrot.slane %v163, %v167
    %v171 = vsel %vm87, %v157, 0
    %v174 = vsel %vm87, %v158, 0
    %v177 = vsel %vm87, %v159, 0
    %v180 = vsel %vm87, %v160, 0
    %182 = vmatprep.subr.mxu0 0.0
    %183 = vmatpush1.msra.mxu0 %v161
    %184 = vmatprep.subr.mxu0 0.0
    %185 = vmatpush1.msra.mxu0 %v162
    %186 = vmatprep.subr.mxu0 0.0
    %187 = vmatpush1.msra.mxu0 0.0
    %188 = vmatprep.subr.mxu0 0.0
    %189 = vmatpush1.msra.mxu0 0.0
    %190 = vmatprep.subr.mxu0 0.0
    %191 = vmatpush1.msra.mxu0 0.0
    %192 = vmatprep.subr.mxu0 0.0
    %193 = vmatpush1.msra.mxu0 0.0
    %194 = vmatprep.subr.mxu0 0.0
    %195 = vmatpush1.msra.mxu0 0.0
    %196 = vmatprep.subr.mxu0 0.0
    %197 = vmatpush1.msra.mxu0 0.0
    %198 = vmatprep.subr.mxu0 0.0
    %199 = vmatpush1.msra.mxu0 0.0
    %200 = vmatprep.subr.mxu0 0.0
    %201 = vmatpush1.msra.mxu0 0.0
    %202 = vmatprep.subr.mxu0 0.0
    %203 = vmatpush1.msra.mxu0 0.0
    %204 = vmatprep.subr.mxu0 0.0
    %205 = vmatpush1.msra.mxu0 0.0
    %206 = vmatprep.subr.mxu0 0.0
    %207 = vmatpush1.msra.mxu0 0.0
    %208 = vmatprep.subr.mxu0 0.0
    %209 = vmatpush1.msra.mxu0 0.0
    %210 = vmatprep.subr.mxu0 0.0
    %211 = vmatpush1.msra.mxu0 0.0
    %212 = vmatprep.subr.mxu0 0.0
    %213 = vmatpush1.msra.mxu0 0.0
    %214 = vmatprep.subr.mxu0 0.0
    %215 = vmatpush1.msra.mxu0 0.0
    %216 = vmatprep.subr.mxu0 0.0
    %217 = vmatpush1.msra.mxu0 0.0
    %218 = vmatprep.subr.mxu0 0.0
    %219 = vmatpush1.msra.mxu0 0.0
    %220 = vmatprep.subr.mxu0 0.0
    %221 = vmatpush1.msra.mxu0 0.0
    %222 = vmatprep.subr.mxu0 0.0
    %223 = vmatpush1.msra.mxu0 0.0
    %224 = vmatprep.subr.mxu0 0.0
    %225 = vmatpush1.msra.mxu0 0.0
    %226 = vmatprep.subr.mxu0 0.0
    %227 = vmatpush1.msra.mxu0 0.0
    %228 = vmatprep.subr.mxu0 0.0
    %229 = vmatpush1.msra.mxu0 0.0
    %230 = vmatprep.subr.mxu0 0.0
    %231 = vmatpush1.msra.mxu0 0.0
    %232 = vmatprep.subr.mxu0 0.0
    %233 = vmatpush1.msra.mxu0 0.0
    %234 = vmatprep.subr.mxu0 0.0
    %235 = vmatpush1.msra.mxu0 0.0
    %236 = vmatprep.subr.mxu0 0.0
    %237 = vmatpush1.msra.mxu0 0.0
    %238 = vmatprep.subr.mxu0 0.0
    %239 = vmatpush1.msra.mxu0 0.0
    %240 = vmatprep.subr.mxu0 0.0
    %241 = vmatpush1.msra.mxu0 0.0
    %242 = vmatprep.subr.mxu0 0.0
    %243 = vmatpush1.msra.mxu0 0.0
    %244 = vmatprep.subr.mxu0 0.0
    %245 = vmatpush1.msra.mxu0 0.0
    %246 = vmatprep.mubr.f32.mxu0 0.0
    %247 = vmatmul.mubr.f32.gmra.mrb[0].mxu0 %v171
    %v248 = vpop.f32.mrb[0].mxu0
    %v249 = vadd.f32 %v168, %v248
    %v250 = vpop.f32.mrb[0].mxu0
    %251 = vmatprep.mubr.f32.mxu0 0.0
    %252 = vmatmul.mubr.f32.gmra.mrb[0].mxu0 %v174
    %v253 = vpop.f32.mrb[0].mxu0
    %v254 = vadd.f32 %v168, %v253
    %v255 = vpop.f32.mrb[0].mxu0
    %256 = vmatprep.mubr.f32.mxu0 0.0
    %257 = vmatmul.mubr.f32.gmra.mrb[0].mxu0 %v177
    %v258 = vpop.f32.mrb[0].mxu0
    %v259 = vadd.f32 %v168, %v258
    %v260 = vpop.f32.mrb[0].mxu0
    %261 = vmatprep.mubr.f32.mxu0 0.0
    %262 = vmatmul.mubr.f32.gmra.mrb[0].mxu0 %v180
    %v263 = vpop.f32.mrb[0].mxu0
    %v264 = vadd.f32 %v168, %v263
    %v265 = vpop.f32.mrb[0].mxu0
    %266 = vdwg.mxu0
    %v267 = vld [vmem:[%s8] sm:$0x1]
    %v268 = vld [vmem:[%s9] sm:$0x1]
    %vm269 = vcmask 261120
    %v270 = vsel %vm269, %v249, 0.0
    %271 = vadd.xlane.f32.xlu0 %v270
    %v272 = vpop.xlane.xlu0 %271
    %v273 = vsel %vm269, %v254, 0.0
    %274 = vadd.xlane.f32.xlu0 %v273
    %v275 = vpop.xlane.xlu0 %274
    %v276 = vsel %vm269, %v259, 0.0
    %277 = vadd.xlane.f32.xlu0 %v276
    %v278 = vpop.xlane.xlu0 %277
    %v279 = vsel %vm269, %v264, 0.0
    %280 = vadd.xlane.f32.xlu0 %v279
    %v281 = vpop.xlane.xlu0 %280
    %v282 = vrcp.pop 32.0
    %v283 = vmul.f32 %v272, %v282
    %v284 = vmul.f32 %v275, %v282
    %v285 = vmul.f32 %v278, %v282
    %v286 = vmul.f32 %v281, %v282
    %v287 = vsub.f32 %v249, %v283
    %v288 = vsub.f32 %v254, %v284
    %v289 = vsub.f32 %v259, %v285
    %v290 = vsub.f32 %v264, %v286
    %v291 = vmul.f32 %v287, %v287
    %v292 = vmul.f32 %v288, %v288
    %v293 = vmul.f32 %v289, %v289
    %v294 = vmul.f32 %v290, %v290
    %v295 = vsel %vm269, %v291, 0.0
    %296 = vadd.xlane.f32.xlu0 %v295
    %v297 = vpop.xlane.xlu0 %296
    %v298 = vsel %vm269, %v292, 0.0
    %299 = vadd.xlane.f32.xlu0 %v298
    %v300 = vpop.xlane.xlu0 %299
    %v301 = vsel %vm269, %v293, 0.0
    %302 = vadd.xlane.f32.xlu0 %v301
    %v303 = vpop.xlane.xlu0 %302
    %v304 = vsel %vm269, %v294, 0.0
    %305 = vadd.xlane.f32.xlu0 %v304
    %v306 = vpop.xlane.xlu0 %305
    %v307 = vmul.f32 %v297, %v282
    %v308 = vmul.f32 %v300, %v282
    %v309 = vmul.f32 %v303, %v282
    %v310 = vmul.f32 %v306, %v282
    %v311 = vadd.f32 %v307, 1e-05
    %v312 = vadd.f32 %v308, 1e-05
    %v313 = vadd.f32 %v309, 1e-05
    %v314 = vadd.f32 %v310, 1e-05
    %v315 = vrsqrt.pop %v311
    %v316 = vrsqrt.pop %v312
    %v317 = vrsqrt.pop %v313
    %v318 = vrsqrt.pop %v314
    %v319 = vmul.f32 %v287, %v315
    %v320 = vmul.f32 %v288, %v316
    %v321 = vmul.f32 %v289, %v317
    %v322 = vmul.f32 %v290, %v318
    %v324 = vlaneseq
    %v325 = vshrl.u32 %v324, 7
    %v326 = vsub.s32 0, %v325
    %v327 = vrot.slane %v267, %v326
    %v329 = vmul.f32 %v319, %v327
    %v330 = vmul.f32 %v320, %v327
    %v331 = vmul.f32 %v321, %v327
    %v332 = vmul.f32 %v322, %v327
    %v334 = vlaneseq
    %v335 = vshrl.u32 %v334, 7
    %v336 = vsub.s32 0, %v335
    %v337 = vrot.slane %v268, %v336
    %v339 = vadd.f32 %v329, %v337
    %v340 = vadd.f32 %v330, %v337
    %v341 = vadd.f32 %v331, %v337
    %v342 = vadd.f32 %v332, %v337
    %v343 = vld [vmem:[%s3] sm:$0x1]
    %v344 = vld [vmem:[%s1] sm:$0x1]
    %v345 = vadd.f32 %v343, %v344
    %vm346 = vcmask 253952
    %347 = vst.msk [vmem:[#allocation2] sm:$0x1] %vm346, %v345
    %v348 = vld [vmem:[%s1 + $0x1] sm:$0xff]
    %v349 = vld [vmem:[%s1 + $0x9] sm:$0xff]
    %v350 = vadd.f32 %v339, %v348
    %v351 = vadd.f32 %v340, %v349
    %352 = vst.msk [vmem:[#allocation2 + $0x1] sm:$0xff] %vm269, %v350
    %353 = vst.msk [vmem:[#allocation2 + $0x9] sm:$0xff] %vm269, %v351
    %v354 = vld [vmem:[%s3] sm:$0x1]
    %v355 = vld [vmem:[%s1] sm:$0x1]
    %v356 = vadd.f32 %v354, %v355
    %357 = vst.msk [vmem:[#allocation2 + $0x11] sm:$0x1] %vm346, %v356
    %v358 = vld [vmem:[%s1 + $0x1] sm:$0xff]
    %v359 = vld [vmem:[%s1 + $0x9] sm:$0xff]
    %v360 = vadd.f32 %v341, %v358
    %v361 = vadd.f32 %v342, %v359
    %362 = vst.msk [vmem:[#allocation2 + $0x12] sm:$0xff] %vm269, %v360
    %363 = vst.msk [vmem:[#allocation2 + $0x1a] sm:$0xff] %vm269, %v361
    %v364 = vld [vmem:[#allocation2] sm:$0xff]
    %v365 = vld [vmem:[#allocation2 + $0x8] sm:$0xff]
    %v366 = vld [vmem:[#allocation2 + $0x10] sm:$0xff]
    %v367 = vld [vmem:[#allocation2 + $0x18] sm:$0xff]
    %v368 = vld [vmem:[#allocation2 + $0x20] sm:$0x3]
    %v369 = vld [vmem:[%s2] sm:$0xff]
    %v370 = vld [vmem:[%s2 + $0x8] sm:$0xff]
    %v371 = vld [vmem:[%s2 + $0x10] sm:$0xff]
    %v372 = vld [vmem:[%s2 + $0x18] sm:$0xff]
    %v373 = vld [vmem:[%s2 + $0x20] sm:$0x3]
    %v374 = vld [vmem:[%s10] sm:$0x1]
    %v375 = vld [vmem:[%s11] sm:$0x1]
    %v376 = vsel %vm269, %v364, 0.0
    %377 = vadd.xlane.f32.xlu0 %v376
    %v378 = vpop.xlane.xlu0 %377
    %v379 = vsel %vm269, %v365, 0.0
    %380 = vadd.xlane.f32.xlu0 %v379
    %v381 = vpop.xlane.xlu0 %380
    %v382 = vsel %vm269, %v366, 0.0
    %383 = vadd.xlane.f32.xlu0 %v382
    %v384 = vpop.xlane.xlu0 %383
    %v385 = vsel %vm269, %v367, 0.0
    %386 = vadd.xlane.f32.xlu0 %v385
    %v387 = vpop.xlane.xlu0 %386
    %vm388 = vcmask 254976
    %v389 = vsel %vm388, %v368, 0.0
    %390 = vadd.xlane.f32.xlu0 %v389
    %v391 = vpop.xlane.xlu0 %390
    %v392 = vmul.f32 %v378, %v282
    %v393 = vmul.f32 %v381, %v282
    %v394 = vmul.f32 %v384, %v282
    %v395 = vmul.f32 %v387, %v282
    %v396 = vmul.f32 %v391, %v282
    %v397 = vsub.f32 %v364, %v392
    %v398 = vsub.f32 %v365, %v393
    %v399 = vsub.f32 %v366, %v394
    %v400 = vsub.f32 %v367, %v395
    %v401 = vsub.f32 %v368, %v396
    %v402 = vmul.f32 %v397, %v397
    %v403 = vmul.f32 %v398, %v398
    %v404 = vmul.f32 %v399, %v399
    %v405 = vmul.f32 %v400, %v400
    %v406 = vmul.f32 %v401, %v401
    %v407 = vsel %vm269, %v402, 0.0
    %408 = vadd.xlane.f32.xlu0 %v407
    %v409 = vpop.xlane.xlu0 %408
    %v410 = vsel %vm269, %v403, 0.0
    %411 = vadd.xlane.f32.xlu0 %v410
    %v412 = vpop.xlane.xlu0 %411
    %v413 = vsel %vm269, %v404, 0.0
    %414 = vadd.xlane.f32.xlu0 %v413
    %v415 = vpop.xlane.xlu0 %414
    %v416 = vsel %vm269, %v405, 0.0
    %417 = vadd.xlane.f32.xlu0 %v416
    %v418 = vpop.xlane.xlu0 %417
    %v419 = vsel %vm388, %v406, 0.0
    %420 = vadd.xlane.f32.xlu0 %v419
    %v421 = vpop.xlane.xlu0 %420
    %v422 = vmul.f32 %v409, %v282
    %v423 = vmul.f32 %v412, %v282
    %v424 = vmul.f32 %v415, %v282
    %v425 = vmul.f32 %v418, %v282
    %v426 = vmul.f32 %v421, %v282
    %v427 = vadd.f32 %v422, 1e-05
    %v428 = vadd.f32 %v423, 1e-05
    %v429 = vadd.f32 %v424, 1e-05
    %v430 = vadd.f32 %v425, 1e-05
    %v431 = vadd.f32 %v426, 1e-05
    %v432 = vrsqrt.pop %v427
    %v433 = vrsqrt.pop %v428
    %v434 = vrsqrt.pop %v429
    %v435 = vrsqrt.pop %v430
    %v436 = vrsqrt.pop %v431
    %v437 = vmul.f32 %v397, %v432
    %v438 = vmul.f32 %v398, %v433
    %v439 = vmul.f32 %v399, %v434
    %v440 = vmul.f32 %v400, %v435
    %v441 = vmul.f32 %v401, %v436
    %v443 = vlaneseq
    %v444 = vshrl.u32 %v443, 7
    %v445 = vsub.s32 0, %v444
    %v446 = vrot.slane %v374, %v445
    %v448 = vmul.f32 %v437, %v446
    %v449 = vmul.f32 %v438, %v446
    %v450 = vmul.f32 %v439, %v446
    %v451 = vmul.f32 %v440, %v446
    %v452 = vmul.f32 %v441, %v446
    %v454 = vlaneseq
    %v455 = vshrl.u32 %v454, 7
    %v456 = vsub.s32 0, %v455
    %v457 = vrot.slane %v375, %v456
    %v459 = vadd.f32 %v448, %v457
    %v460 = vadd.f32 %v449, %v457
    %v461 = vadd.f32 %v450, %v457
    %v462 = vadd.f32 %v451, %v457
    %v463 = vadd.f32 %v452, %v457
    %v464 = vld [vmem:[%s12] sm:$0xff]
    %v465 = vld [vmem:[%s12 + $0x8] sm:$0xff]
    %v466 = vld [vmem:[%s12 + $0x10] sm:$0xff]
    %v467 = vld [vmem:[%s12 + $0x18] sm:$0xff]
    %v468 = vld [vmem:[%s12 + $0x20] sm:$0xff]
    %v469 = vld [vmem:[%s12 + $0x28] sm:$0xff]
    %v470 = vld [vmem:[%s12 + $0x30] sm:$0xff]
    %v471 = vld [vmem:[%s12 + $0x38] sm:$0xff]
    %v472 = vld [vmem:[%s12 + $0x40] sm:$0xff]
    %v473 = vld [vmem:[%s12 + $0x48] sm:$0xff]
    %v474 = vld [vmem:[%s12 + $0x50] sm:$0xff]
    %v475 = vld [vmem:[%s12 + $0x58] sm:$0xff]
    %v477 = vsel %vm269, %v459, 0
    %v480 = vsel %vm269, %v460, 0
    %v483 = vsel %vm269, %v461, 0
    %v486 = vsel %vm269, %v462, 0
    %v489 = vsel %vm269, %v463, 0
    %491 = vmatprep.subr.mxu0 %v465
    %492 = vmatpush1.msra.mxu0 %v464
    %493 = vmatprep.subr.mxu0 %v468
    %494 = vmatpush1.msra.mxu0 %v467
    %495 = vmatprep.subr.mxu0 %v471
    %496 = vmatpush1.msra.mxu0 %v470
    %497 = vmatprep.subr.mxu0 %v474
    %498 = vmatpush1.msra.mxu0 %v473
    %499 = vmatprep.subr.mxu0 0.0
    %500 = vmatpush1.msra.mxu0 0.0
    %501 = vmatprep.subr.mxu0 0.0
    %502 = vmatpush1.msra.mxu0 0.0
    %503 = vmatprep.subr.mxu0 0.0
    %504 = vmatpush1.msra.mxu0 0.0
    %505 = vmatprep.subr.mxu0 0.0
    %506 = vmatpush1.msra.mxu0 0.0
    %507 = vmatprep.subr.mxu0 0.0
    %508 = vmatpush1.msra.mxu0 0.0
    %509 = vmatprep.subr.mxu0 0.0
    %510 = vmatpush1.msra.mxu0 0.0
    %511 = vmatprep.subr.mxu0 0.0
    %512 = vmatpush1.msra.mxu0 0.0
    %513 = vmatprep.subr.mxu0 0.0
    %514 = vmatpush1.msra.mxu0 0.0
    %515 = vmatprep.subr.mxu0 0.0
    %516 = vmatpush1.msra.mxu0 0.0
    %517 = vmatprep.subr.mxu0 0.0
    %518 = vmatpush1.msra.mxu0 0.0
    %519 = vmatprep.subr.mxu0 0.0
    %520 = vmatpush1.msra.mxu0 0.0
    %521 = vmatprep.subr.mxu0 0.0
    %522 = vmatpush1.msra.mxu0 0.0
    %523 = vmatprep.subr.mxu0 0.0
    %524 = vmatpush1.msra.mxu0 0.0
    %525 = vmatprep.subr.mxu0 0.0
    %526 = vmatpush1.msra.mxu0 0.0
    %527 = vmatprep.subr.mxu0 0.0
    %528 = vmatpush1.msra.mxu0 0.0
    %529 = vmatprep.subr.mxu0 0.0
    %530 = vmatpush1.msra.mxu0 0.0
    %531 = vmatprep.subr.mxu0 0.0
    %532 = vmatpush1.msra.mxu0 0.0
    %533 = vmatprep.subr.mxu0 0.0
    %534 = vmatpush1.msra.mxu0 0.0
    %535 = vmatprep.subr.mxu0 0.0
    %536 = vmatpush1.msra.mxu0 0.0
    %537 = vmatprep.subr.mxu0 0.0
    %538 = vmatpush1.msra.mxu0 0.0
    %539 = vmatprep.subr.mxu0 0.0
    %540 = vmatpush1.msra.mxu0 0.0
    %541 = vmatprep.subr.mxu0 0.0
    %542 = vmatpush1.msra.mxu0 0.0
    %543 = vmatprep.subr.mxu0 0.0
    %544 = vmatpush1.msra.mxu0 0.0
    %545 = vmatprep.subr.mxu0 0.0
    %546 = vmatpush1.msra.mxu0 0.0
    %547 = vmatprep.subr.mxu0 0.0
    %548 = vmatpush1.msra.mxu0 0.0
    %549 = vmatprep.subr.mxu0 0.0
    %550 = vmatpush1.msra.mxu0 0.0
    %551 = vmatprep.subr.mxu0 0.0
    %552 = vmatpush1.msra.mxu0 0.0
    %553 = vmatprep.subr.mxu0 0.0
    %554 = vmatpush1.msra.mxu0 0.0
    %555 = vmatprep.mubr.f32.mxu0 0.0
    %556 = vmatmul.mubr.f32.gmra.mrb[0].mxu0 %v477
    %v557 = vpop.f32.mrb[0].mxu0
    %v558 = vadd.f32 0.0, %v557
    %v559 = vpop.f32.mrb[0].mxu0
    %v560 = vadd.f32 0.0, %v559
    %561 = vmatprep.mubr.f32.mxu0 0.0
    %562 = vmatmul.mubr.f32.gmra.mrb[0].mxu0 %v480
    %v563 = vpop.f32.mrb[0].mxu0
    %v564 = vadd.f32 0.0, %v563
    %v565 = vpop.f32.mrb[0].mxu0
    %v566 = vadd.f32 0.0, %v565
    %567 = vmatprep.mubr.f32.mxu0 0.0
    %568 = vmatmul.mubr.f32.gmra.mrb[0].mxu0 %v483
    %v569 = vpop.f32.mrb[0].mxu0
    %v570 = vadd.f32 0.0, %v569
    %v571 = vpop.f32.mrb[0].mxu0
    %v572 = vadd.f32 0.0, %v571
    %573 = vmatprep.mubr.f32.mxu0 0.0
    %574 = vmatmul.mubr.f32.gmra.mrb[0].mxu0 %v486
    %v575 = vpop.f32.mrb[0].mxu0
    %v576 = vadd.f32 0.0, %v575
    %v577 = vpop.f32.mrb[0].mxu0
    %v578 = vadd.f32 0.0, %v577
    %579 = vmatprep.mubr.f32.mxu0 0.0
    %580 = vmatmul.mubr.f32.gmra.mrb[0].mxu0 %v489
    %v581 = vpop.f32.mrb[0].mxu0
    %v582 = vadd.f32 0.0, %v581
    %v583 = vpop.f32.mrb[0].mxu0
    %v584 = vadd.f32 0.0, %v583
    %585 = vdwg.mxu0
    %586 = vmatprep.subr.mxu0 0.0
    %587 = vmatpush1.msra.mxu0 %v466
    %588 = vmatprep.subr.mxu0 0.0
    %589 = vmatpush1.msra.mxu0 %v469
    %590 = vmatprep.subr.mxu0 0.0
    %591 = vmatpush1.msra.mxu0 %v472
    %592 = vmatprep.subr.mxu0 0.0
    %593 = vmatpush1.msra.mxu0 %v475
    %594 = vmatprep.subr.mxu0 0.0
    %595 = vmatpush1.msra.mxu0 0.0
    %596 = vmatprep.subr.mxu0 0.0
    %597 = vmatpush1.msra.mxu0 0.0
    %598 = vmatprep.subr.mxu0 0.0
    %599 = vmatpush1.msra.mxu0 0.0
    %600 = vmatprep.subr.mxu0 0.0
    %601 = vmatpush1.msra.mxu0 0.0
    %602 = vmatprep.subr.mxu0 0.0
    %603 = vmatpush1.msra.mxu0 0.0
    %604 = vmatprep.subr.mxu0 0.0
    %605 = vmatpush1.msra.mxu0 0.0
    %606 = vmatprep.subr.mxu0 0.0
    %607 = vmatpush1.msra.mxu0 0.0
    %608 = vmatprep.subr.mxu0 0.0
    %609 = vmatpush1.msra.mxu0 0.0
    %610 = vmatprep.subr.mxu0 0.0
    %611 = vmatpush1.msra.mxu0 0.0
    %612 = vmatprep.subr.mxu0 0.0
    %613 = vmatpush1.msra.mxu0 0.0
    %614 = vmatprep.subr.mxu0 0.0
    %615 = vmatpush1.msra.mxu0 0.0
    %616 = vmatprep.subr.mxu0 0.0
    %617 = vmatpush1.msra.mxu0 0.0
    %618 = vmatprep.subr.mxu0 0.0
    %619 = vmatpush1.msra.mxu0 0.0
    %620 = vmatprep.subr.mxu0 0.0
    %621 = vmatpush1.msra.mxu0 0.0
    %622 = vmatprep.subr.mxu0 0.0
    %623 = vmatpush1.msra.mxu0 0.0
    %624 = vmatprep.subr.mxu0 0.0
    %625 = vmatpush1.msra.mxu0 0.0
    %626 = vmatprep.subr.mxu0 0.0
    %627 = vmatpush1.msra.mxu0 0.0
    %628 = vmatprep.subr.mxu0 0.0
    %629 = vmatpush1.msra.mxu0 0.0
    %630 = vmatprep.subr.mxu0 0.0
    %631 = vmatpush1.msra.mxu0 0.0
    %632 = vmatprep.subr.mxu0 0.0
    %633 = vmatpush1.msra.mxu0 0.0
    %634 = vmatprep.subr.mxu0 0.0
    %635 = vmatpush1.msra.mxu0 0.0
    %636 = vmatprep.subr.mxu0 0.0
    %637 = vmatpush1.msra.mxu0 0.0
    %638 = vmatprep.subr.mxu0 0.0
    %639 = vmatpush1.msra.mxu0 0.0
    %640 = vmatprep.subr.mxu0 0.0
    %641 = vmatpush1.msra.mxu0 0.0
    %642 = vmatprep.subr.mxu0 0.0
    %643 = vmatpush1.msra.mxu0 0.0
    %644 = vmatprep.subr.mxu0 0.0
    %645 = vmatpush1.msra.mxu0 0.0
    %646 = vmatprep.subr.mxu0 0.0
    %647 = vmatpush1.msra.mxu0 0.0
    %648 = vmatprep.subr.mxu0 0.0
    %649 = vmatpush1.msra.mxu0 0.0
    %650 = vmatprep.mubr.f32.mxu0 0.0
    %651 = vmatmul.mubr.f32.gmra.mrb[0].mxu0 %v477
    %v652 = vpop.f32.mrb[0].mxu0
    %v653 = vadd.f32 0.0, %v652
    %v654 = vpop.f32.mrb[0].mxu0
    %655 = vmatprep.mubr.f32.mxu0 0.0
    %656 = vmatmul.mubr.f32.gmra.mrb[0].mxu0 %v480
    %v657 = vpop.f32.mrb[0].mxu0
    %v658 = vadd.f32 0.0, %v657
    %v659 = vpop.f32.mrb[0].mxu0
    %660 = vmatprep.mubr.f32.mxu0 0.0
    %661 = vmatmul.mubr.f32.gmra.mrb[0].mxu0 %v483
    %v662 = vpop.f32.mrb[0].mxu0
    %v663 = vadd.f32 0.0, %v662
    %v664 = vpop.f32.mrb[0].mxu0
    %665 = vmatprep.mubr.f32.mxu0 0.0
    %666 = vmatmul.mubr.f32.gmra.mrb[0].mxu0 %v486
    %v667 = vpop.f32.mrb[0].mxu0
    %v668 = vadd.f32 0.0, %v667
    %v669 = vpop.f32.mrb[0].mxu0
    %670 = vmatprep.mubr.f32.mxu0 0.0
    %671 = vmatmul.mubr.f32.gmra.mrb[0].mxu0 %v489
    %v672 = vpop.f32.mrb[0].mxu0
    %v673 = vadd.f32 0.0, %v672
    %v674 = vpop.f32.mrb[0].mxu0
    %675 = vdwg.mxu0
    %v676 = vld [vmem:[%s13] sm:$0xff]
    %v677 = vld [vmem:[%s13 + $0x8] sm:$0xff]
    %v678 = vld [vmem:[%s13 + $0x10] sm:$0xff]
    %v679 = vld [vmem:[%s13 + $0x18] sm:$0xff]
    %v680 = vld [vmem:[%s13 + $0x20] sm:$0xff]
    %v681 = vld [vmem:[%s13 + $0x28] sm:$0xff]
    %v682 = vld [vmem:[%s13 + $0x30] sm:$0xff]
    %v683 = vld [vmem:[%s13 + $0x38] sm:$0xff]
    %v684 = vld [vmem:[%s13 + $0x40] sm:$0xff]
    %v685 = vld [vmem:[%s13 + $0x48] sm:$0xff]
    %v686 = vld [vmem:[%s13 + $0x50] sm:$0xff]
    %v687 = vld [vmem:[%s13 + $0x58] sm:$0xff]
    %v688 = vld [vmem:[%s13 + $0x60] sm:$0xff]
    %v689 = vld [vmem:[%s13 + $0x68] sm:$0xff]
    %v690 = vld [vmem:[%s13 + $0x70] sm:$0xff]
    %v691 = vld [vmem:[%s13 + $0x78] sm:$0xff]
    %v692 = vld [vmem:[%s14] sm:$0x1]
    %vm693 = vcmask 523264
    %v695 = vsel %vm693, %v558, 0
    %v698 = vsel %vm693, %v564, 0
    %v701 = vsel %vm693, %v570, 0
    %v704 = vsel %vm693, %v576, 0
    %v707 = vsel %vm693, %v582, 0
    %v710 = vsel %vm693, %v560, 0
    %v713 = vsel %vm693, %v566, 0
    %v716 = vsel %vm693, %v572, 0
    %v719 = vsel %vm693, %v578, 0
    %v722 = vsel %vm693, %v584, 0
    %724 = vmatprep.subr.mxu0 0.0
    %725 = vmatpush1.xpose.msra.mxu0 %v710
    %726 = vmatprep.subr.mxu0 0.0
    %727 = vmatpush1.xpose.msra.mxu0 %v713
    %728 = vmatprep.subr.mxu0 0.0
    %729 = vmatpush1.xpose.msra.mxu0 %v716
    %730 = vmatprep.subr.mxu0 0.0
    %731 = vmatpush1.xpose.msra.mxu0 %v719
    %732 = vmatprep.subr.mxu0 0.0
    %733 = vmatpush1.xpose.msra.mxu0 %v722
    %734 = vmatprep.subr.mxu0 0.0
    %735 = vmatpush1.xpose.msra.mxu0 0.0
    %736 = vmatprep.subr.mxu0 0.0
    %737 = vmatpush1.xpose.msra.mxu0 0.0
    %738 = vmatprep.subr.mxu0 0.0
    %739 = vmatpush1.xpose.msra.mxu0 0.0
    %740 = vmatprep.subr.mxu0 0.0
    %741 = vmatpush1.xpose.msra.mxu0 0.0
    %742 = vmatprep.subr.mxu0 0.0
    %743 = vmatpush1.xpose.msra.mxu0 0.0
    %744 = vmatprep.subr.mxu0 0.0
    %745 = vmatpush1.xpose.msra.mxu0 0.0
    %746 = vmatprep.subr.mxu0 0.0
    %747 = vmatpush1.xpose.msra.mxu0 0.0
    %748 = vmatprep.subr.mxu0 0.0
    %749 = vmatpush1.xpose.msra.mxu0 0.0
    %750 = vmatprep.subr.mxu0 0.0
    %751 = vmatpush1.xpose.msra.mxu0 0.0
    %752 = vmatprep.subr.mxu0 0.0
    %753 = vmatpush1.xpose.msra.mxu0 0.0
    %754 = vmatprep.subr.mxu0 0.0
    %755 = vmatpush1.xpose.msra.mxu0 0.0
    %756 = vmatprep.subr.mxu0 0.0
    %757 = vmatpush1.xpose.msra.mxu0 0.0
    %758 = vmatprep.subr.mxu0 0.0
    %759 = vmatpush1.xpose.msra.mxu0 0.0
    %760 = vmatprep.subr.mxu0 0.0
    %761 = vmatpush1.xpose.msra.mxu0 0.0
    %762 = vmatprep.subr.mxu0 0.0
    %763 = vmatpush1.xpose.msra.mxu0 0.0
    %764 = vmatprep.subr.mxu0 0.0
    %765 = vmatpush1.xpose.msra.mxu0 0.0
    %766 = vmatprep.subr.mxu0 0.0
    %767 = vmatpush1.xpose.msra.mxu0 0.0
    %768 = vmatprep.subr.mxu0 0.0
    %769 = vmatpush1.xpose.msra.mxu0 0.0
    %770 = vmatprep.subr.mxu0 0.0
    %771 = vmatpush1.xpose.msra.mxu0 0.0
    %772 = vmatprep.subr.mxu0 0.0
    %773 = vmatpush1.xpose.msra.mxu0 0.0
    %774 = vmatprep.subr.mxu0 0.0
    %775 = vmatpush1.xpose.msra.mxu0 0.0
    %776 = vmatprep.subr.mxu0 0.0
    %777 = vmatpush1.xpose.msra.mxu0 0.0
    %778 = vmatprep.subr.mxu0 0.0
    %779 = vmatpush1.xpose.msra.mxu0 0.0
    %780 = vmatprep.subr.mxu0 0.0
    %781 = vmatpush1.xpose.msra.mxu0 0.0
    %782 = vmatprep.subr.mxu0 0.0
    %783 = vmatpush1.xpose.msra.mxu0 0.0
    %784 = vmatprep.subr.mxu0 0.0
    %785 = vmatpush1.xpose.msra.mxu0 0.0
    %786 = vmatprep.subr.mxu0 0.0
    %787 = vmatpush1.xpose.msra.mxu0 0.0
    %788 = vmatprep.mubr.f32.mxu0 0.0
    %789 = vmatmul.mubr.f32.gmra.mrb[0].mxu0 %v695
    %v790 = vpop.f32.mrb[0].mxu0
    %v791 = vadd.f32 0.0, %v790
    %v792 = vpop.f32.mrb[0].mxu0
    %793 = vmatprep.mubr.f32.mxu0 0.0
    %794 = vmatmul.mubr.f32.gmra.mrb[0].mxu0 %v698
    %v795 = vpop.f32.mrb[0].mxu0
    %v796 = vadd.f32 0.0, %v795
    %v797 = vpop.f32.mrb[0].mxu0
    %798 = vmatprep.mubr.f32.mxu0 0.0
    %799 = vmatmul.mubr.f32.gmra.mrb[0].mxu0 %v701
    %v800 = vpop.f32.mrb[0].mxu0
    %v801 = vadd.f32 0.0, %v800
    %v802 = vpop.f32.mrb[0].mxu0
    %803 = vmatprep.mubr.f32.mxu0 0.0
    %804 = vmatmul.mubr.f32.gmra.mrb[0].mxu0 %v704
    %v805 = vpop.f32.mrb[0].mxu0
    %v806 = vadd.f32 0.0, %v805
    %v807 = vpop.f32.mrb[0].mxu0
    %808 = vmatprep.mubr.f32.mxu0 0.0
    %809 = vmatmul.mubr.f32.gmra.mrb[0].mxu0 %v707
    %v810 = vpop.f32.mrb[0].mxu0
    %v811 = vadd.f32 0.0, %v810
    %v812 = vpop.f32.mrb[0].mxu0
    %813 = vdwg.mxu0
    %v814 = vmul.f32 %v791, 0.125
    %v815 = vmul.f32 %v796, 0.125
    %v816 = vmul.f32 %v801, 0.125
    %v817 = vmul.f32 %v806, 0.125
    %v818 = vmul.f32 %v811, 0.125
    %v819 = vadd.f32 %v814, %v369
    %v820 = vadd.f32 %v815, %v370
    %v821 = vadd.f32 %v816, %v371
    %v822 = vadd.f32 %v817, %v372
    %v823 = vadd.f32 %v818, %v373
    %vm824 = vcmask 277504
    %v825 = vsel %vm824, %v819, -inf
    %826 = vmax.xlane.f32.xlu0 %v825
    %v827 = vpop.xlane.xlu0 %826
    %v828 = vsel %vm824, %v820, -inf
    %829 = vmax.xlane.f32.xlu0 %v828
    %v830 = vpop.xlane.xlu0 %829
    %v831 = vsel %vm824, %v821, -inf
    %832 = vmax.xlane.f32.xlu0 %v831
    %v833 = vpop.xlane.xlu0 %832
    %v834 = vsel %vm824, %v822, -inf
    %835 = vmax.xlane.f32.xlu0 %v834
    %v836 = vpop.xlane.xlu0 %835
    %vm837 = vcmask 271360
    %v838 = vsel %vm837, %v823, -inf
    %839 = vmax.xlane.f32.xlu0 %v838
    %v840 = vpop.xlane.xlu0 %839
    %v841 = vsub.f32 %v819, %v827
    %v842 = vsub.f32 %v820, %v830
    %v843 = vsub.f32 %v821, %v833
    %v844 = vsub.f32 %v822, %v836
    %v845 = vsub.f32 %v823, %v840
    %v846 = vmul.f32 %v841, 1.442695
    %v847 = vpow.pop %v846
    %v848 = vmul.f32 %v842, 1.442695
    %v849 = vpow.pop %v848
    %v850 = vmul.f32 %v843, 1.442695
    %v851 = vpow.pop %v850
    %v852 = vmul.f32 %v844, 1.442695
    %v853 = vpow.pop %v852
    %v854 = vmul.f32 %v845, 1.442695
    %v855 = vpow.pop %v854
    %v856 = vsel %vm824, %v847, 0.0
    %857 = vadd.xlane.f32.xlu0 %v856
    %v858 = vpop.xlane.xlu0 %857
    %v859 = vsel %vm824, %v849, 0.0
    %860 = vadd.xlane.f32.xlu0 %v859
    %v861 = vpop.xlane.xlu0 %860
    %v862 = vsel %vm824, %v851, 0.0
    %863 = vadd.xlane.f32.xlu0 %v862
    %v864 = vpop.xlane.xlu0 %863
    %v865 = vsel %vm824, %v853, 0.0
    %866 = vadd.xlane.f32.xlu0 %v865
    %v867 = vpop.xlane.xlu0 %866
    %v868 = vsel %vm837, %v855, 0.0
    %869 = vadd.xlane.f32.xlu0 %v868
    %v870 = vpop.xlane.xlu0 %869
    %v871 = vrcp.pop %v858
    %v872 = vrcp.pop %v861
    %v873 = vrcp.pop %v864
    %v874 = vrcp.pop %v867
    %v875 = vrcp.pop %v870
    %v876 = vmul.f32 %v847, %v871
    %v877 = vmul.f32 %v849, %v872
    %v878 = vmul.f32 %v851, %v873
    %v879 = vmul.f32 %v853, %v874
    %v880 = vmul.f32 %v855, %v875
    %v882 = vsel %vm824, %v876, 0
    %v885 = vsel %vm824, %v877, 0
    %v888 = vsel %vm824, %v878, 0
    %v891 = vsel %vm824, %v879, 0
    %v894 = vsel %vm824, %v880, 0
    %vm896 = vcmask 1041408
    %v898 = vsel %vm896, %v673, 0
    %900 = vmatprep.subr.mxu0 0.0
    %901 = vmatpush1.msra.mxu0 %v653
    %902 = vmatprep.subr.mxu0 0.0
    %903 = vmatpush1.msra.mxu0 %v658
    %904 = vmatprep.subr.mxu0 0.0
    %905 = vmatpush1.msra.mxu0 %v663
    %906 = vmatprep.subr.mxu0 0.0
    %907 = vmatpush1.msra.mxu0 %v668
    %908 = vmatprep.subr.mxu0 0.0
    %909 = vmatpush1.msra.mxu0 %v898
    %910 = vmatprep.subr.mxu0 0.0
    %911 = vmatpush1.msra.mxu0 0.0
    %912 = vmatprep.subr.mxu0 0.0
    %913 = vmatpush1.msra.mxu0 0.0
    %914 = vmatprep.subr.mxu0 0.0
    %915 = vmatpush1.msra.mxu0 0.0
    %916 = vmatprep.subr.mxu0 0.0
    %917 = vmatpush1.msra.mxu0 0.0
    %918 = vmatprep.subr.mxu0 0.0
    %919 = vmatpush1.msra.mxu0 0.0
    %920 = vmatprep.subr.mxu0 0.0
    %921 = vmatpush1.msra.mxu0 0.0
    %922 = vmatprep.subr.mxu0 0.0
    %923 = vmatpush1.msra.mxu0 0.0
    %924 = vmatprep.subr.mxu0 0.0
    %925 = vmatpush1.msra.mxu0 0.0
    %926 = vmatprep.subr.mxu0 0.0
    %927 = vmatpush1.msra.mxu0 0.0
    %928 = vmatprep.subr.mxu0 0.0
    %929 = vmatpush1.msra.mxu0 0.0
    %930 = vmatprep.subr.mxu0 0.0
    %931 = vmatpush1.msra.mxu0 0.0
    %932 = vmatprep.subr.mxu0 0.0
    %933 = vmatpush1.msra.mxu0 0.0
    %934 = vmatprep.subr.mxu0 0.0
    %935 = vmatpush1.msra.mxu0 0.0
    %936 = vmatprep.subr.mxu0 0.0
    %937 = vmatpush1.msra.mxu0 0.0
    %938 = vmatprep.subr.mxu0 0.0
    %939 = vmatpush1.msra.mxu0 0.0
    %940 = vmatprep.subr.mxu0 0.0
    %941 = vmatpush1.msra.mxu0 0.0
    %942 = vmatprep.subr.mxu0 0.0
    %943 = vmatpush1.msra.mxu0 0.0
    %944 = vmatprep.subr.mxu0 0.0
    %945 = vmatpush1.msra.mxu0 0.0
    %946 = vmatprep.subr.mxu0 0.0
    %947 = vmatpush1.msra.mxu0 0.0
    %948 = vmatprep.subr.mxu0 0.0
    %949 = vmatpush1.msra.mxu0 0.0
    %950 = vmatprep.subr.mxu0 0.0
    %951 = vmatpush1.msra.mxu0 0.0
    %952 = vmatprep.subr.mxu0 0.0
    %953 = vmatpush1.msra.mxu0 0.0
    %954 = vmatprep.subr.mxu0 0.0
    %955 = vmatpush1.msra.mxu0 0.0
    %956 = vmatprep.subr.mxu0 0.0
    %957 = vmatpush1.msra.mxu0 0.0
    %958 = vmatprep.subr.mxu0 0.0
    %959 = vmatpush1.msra.mxu0 0.0
    %960 = vmatprep.subr.mxu0 0.0
    %961 = vmatpush1.msra.mxu0 0.0
    %962 = vmatprep.subr.mxu0 0.0
    %963 = vmatpush1.msra.mxu0 0.0
    %964 = vmatprep.mubr.f32.mxu0 0.0
    %965 = vmatmul.mubr.f32.gmra.mrb[0].mxu0 %v882
    %v966 = vpop.f32.mrb[0].mxu0
    %v967 = vadd.f32 0.0, %v966
    %v968 = vpop.f32.mrb[0].mxu0
    %969 = vmatprep.mubr.f32.mxu0 0.0
    %970 = vmatmul.mubr.f32.gmra.mrb[0].mxu0 %v885
    %v971 = vpop.f32.mrb[0].mxu0
    %v972 = vadd.f32 0.0, %v971
    %v973 = vpop.f32.mrb[0].mxu0
    %974 = vmatprep.mubr.f32.mxu0 0.0
    %975 = vmatmul.mubr.f32.gmra.mrb[0].mxu0 %v888
    %v976 = vpop.f32.mrb[0].mxu0
    %v977 = vadd.f32 0.0, %v976
    %v978 = vpop.f32.mrb[0].mxu0
    %979 = vmatprep.mubr.f32.mxu0 0.0
    %980 = vmatmul.mubr.f32.gmra.mrb[0].mxu0 %v891
    %v981 = vpop.f32.mrb[0].mxu0
    %v982 = vadd.f32 0.0, %v981
    %v983 = vpop.f32.mrb[0].mxu0
    %984 = vmatprep.mubr.f32.mxu0 0.0
    %985 = vmatmul.mubr.f32.gmra.mrb[0].mxu0 %v894
    %v986 = vpop.f32.mrb[0].mxu0
    %v987 = vadd.f32 0.0, %v986
    %v988 = vpop.f32.mrb[0].mxu0
    %989 = vdwg.mxu0
    %v991 = vsel %vm693, %v967, 0
    %v994 = vsel %vm693, %v972, 0
    %v997 = vsel %vm693, %v977, 0
    %v1000 = vsel %vm693, %v982, 0
    %v1003 = vsel %vm693, %v987, 0
    %1005 = vmatprep.subr.mxu0 0.0
    %1006 = vmatpush1.msra.mxu0 %v676
    %1007 = vmatprep.subr.mxu0 0.0
    %1008 = vmatpush1.msra.mxu0 %v677
    %1009 = vmatprep.subr.mxu0 0.0
    %1010 = vmatpush1.msra.mxu0 %v678
    %1011 = vmatprep.subr.mxu0 0.0
    %1012 = vmatpush1.msra.mxu0 %v679
    %1013 = vmatprep.subr.mxu0 0.0
    %1014 = vmatpush1.msra.mxu0 %v680
    %1015 = vmatprep.subr.mxu0 0.0
    %1016 = vmatpush1.msra.mxu0 %v681
    %1017 = vmatprep.subr.mxu0 0.0
    %1018 = vmatpush1.msra.mxu0 %v682
    %1019 = vmatprep.subr.mxu0 0.0
    %1020 = vmatpush1.msra.mxu0 %v683
    %1021 = vmatprep.subr.mxu0 0.0
    %1022 = vmatpush1.msra.mxu0 0.0
    %1023 = vmatprep.subr.mxu0 0.0
    %1024 = vmatpush1.msra.mxu0 0.0
    %1025 = vmatprep.subr.mxu0 0.0
    %1026 = vmatpush1.msra.mxu0 0.0
    %1027 = vmatprep.subr.mxu0 0.0
    %1028 = vmatpush1.msra.mxu0 0.0
    %1029 = vmatprep.subr.mxu0 0.0
    %1030 = vmatpush1.msra.mxu0 0.0
    %1031 = vmatprep.subr.mxu0 0.0
    %1032 = vmatpush1.msra.mxu0 0.0
    %1033 = vmatprep.subr.mxu0 0.0
    %1034 = vmatpush1.msra.mxu0 0.0
    %1035 = vmatprep.subr.mxu0 0.0
    %1036 = vmatpush1.msra.mxu0 0.0
    %1037 = vmatprep.subr.mxu0 0.0
    %1038 = vmatpush1.msra.mxu0 0.0
    %1039 = vmatprep.subr.mxu0 0.0
    %1040 = vmatpush1.msra.mxu0 0.0
    %1041 = vmatprep.subr.mxu0 0.0
    %1042 = vmatpush1.msra.mxu0 0.0
    %1043 = vmatprep.subr.mxu0 0.0
    %1044 = vmatpush1.msra.mxu0 0.0
    %1045 = vmatprep.subr.mxu0 0.0
    %1046 = vmatpush1.msra.mxu0 0.0
    %1047 = vmatprep.subr.mxu0 0.0
    %1048 = vmatpush1.msra.mxu0 0.0
    %1049 = vmatprep.subr.mxu0 0.0
    %1050 = vmatpush1.msra.mxu0 0.0
    %1051 = vmatprep.subr.mxu0 0.0
    %1052 = vmatpush1.msra.mxu0 0.0
    %1053 = vmatprep.subr.mxu0 0.0
    %1054 = vmatpush1.msra.mxu0 0.0
    %1055 = vmatprep.subr.mxu0 0.0
    %1056 = vmatpush1.msra.mxu0 0.0
    %1057 = vmatprep.subr.mxu0 0.0
    %1058 = vmatpush1.msra.mxu0 0.0
    %1059 = vmatprep.subr.mxu0 0.0
    %1060 = vmatpush1.msra.mxu0 0.0
    %1061 = vmatprep.subr.mxu0 0.0
    %1062 = vmatpush1.msra.mxu0 0.0
    %1063 = vmatprep.subr.mxu0 0.0
    %1064 = vmatpush1.msra.mxu0 0.0
    %1065 = vmatprep.subr.mxu0 0.0
    %1066 = vmatpush1.msra.mxu0 0.0
    %1067 = vmatprep.subr.mxu0 0.0
    %1068 = vmatpush1.msra.mxu0 0.0
    %1069 = vmatprep.mubr.f32.mxu0 0.0
    %1070 = vmatmul.mubr.f32.gmra.mrb[0].mxu0 %v991
    %v1071 = vpop.f32.mrb[0].mxu0
    %v1072 = vadd.f32 0.0, %v1071
    %v1073 = vpop.f32.mrb[0].mxu0
    %1074 = vmatprep.mubr.f32.mxu0 0.0
    %1075 = vmatmul.mubr.f32.gmra.mrb[0].mxu0 %v994
    %v1076 = vpop.f32.mrb[0].mxu0
    %v1077 = vadd.f32 0.0, %v1076
    %v1078 = vpop.f32.mrb[0].mxu0
    %1079 = vmatprep.mubr.f32.mxu0 0.0
    %1080 = vmatmul.mubr.f32.gmra.mrb[0].mxu0 %v997
    %v1081 = vpop.f32.mrb[0].mxu0
    %v1082 = vadd.f32 0.0, %v1081
    %v1083 = vpop.f32.mrb[0].mxu0
    %1084 = vmatprep.mubr.f32.mxu0 0.0
    %1085 = vmatmul.mubr.f32.gmra.mrb[0].mxu0 %v1000
    %v1086 = vpop.f32.mrb[0].mxu0
    %v1087 = vadd.f32 0.0, %v1086
    %v1088 = vpop.f32.mrb[0].mxu0
    %1089 = vmatprep.mubr.f32.mxu0 0.0
    %1090 = vmatmul.mubr.f32.gmra.mrb[0].mxu0 %v1003
    %v1091 = vpop.f32.mrb[0].mxu0
    %v1092 = vadd.f32 0.0, %v1091
    %v1093 = vpop.f32.mrb[0].mxu0
    %1094 = vdwg.mxu0
    %v1096 = vlaneseq
    %v1097 = vshrl.u32 %v1096, 7
    %v1098 = vsub.s32 0, %v1097
    %v1099 = vrot.slane %v692, %v1098
    %v1101 = vadd.f32 %v1099, %v1072
    %v1102 = vadd.f32 %v1099, %v1077
    %v1103 = vadd.f32 %v1099, %v1082
    %v1104 = vadd.f32 %v1099, %v1087
    %v1105 = vadd.f32 %v1099, %v1092
    %1106 = vrot.lane.b32.xlu0 %v558, 64
    %v1107 = vpop.permute.xlu0 %1106
    %1108 = vrot.lane.b32.xlu0 %v564, 64
    %v1109 = vpop.permute.xlu0 %1108
    %1110 = vrot.lane.b32.xlu0 %v570, 64
    %v1111 = vpop.permute.xlu0 %1110
    %1112 = vrot.lane.b32.xlu0 %v576, 64
    %v1113 = vpop.permute.xlu0 %1112
    %1114 = vrot.lane.b32.xlu0 %v582, 64
    %v1115 = vpop.permute.xlu0 %1114
    %1116 = vrot.lane.b32.xlu0 %v560, 64
    %v1117 = vpop.permute.xlu0 %1116
    %1118 = vrot.lane.b32.xlu0 %v566, 64
    %v1119 = vpop.permute.xlu0 %1118
    %1120 = vrot.lane.b32.xlu0 %v572, 64
    %v1121 = vpop.permute.xlu0 %1120
    %1122 = vrot.lane.b32.xlu0 %v578, 64
    %v1123 = vpop.permute.xlu0 %1122
    %1124 = vrot.lane.b32.xlu0 %v584, 64
    %v1125 = vpop.permute.xlu0 %1124
    %v1126 = vsel %vm693, %v1107, 0
    %v1128 = vsel %vm693, %v1109, 0
    %v1130 = vsel %vm693, %v1111, 0
    %v1132 = vsel %vm693, %v1113, 0
    %v1134 = vsel %vm693, %v1115, 0
    %v1136 = vsel %vm693, %v1117, 0
    %v1138 = vsel %vm693, %v1119, 0
    %v1140 = vsel %vm693, %v1121, 0
    %v1142 = vsel %vm693, %v1123, 0
    %v1144 = vsel %vm693, %v1125, 0
    %1146 = vmatprep.subr.mxu0 0.0
    %1147 = vmatpush1.xpose.msra.mxu0 %v1136
    %1148 = vmatprep.subr.mxu0 0.0
    %1149 = vmatpush1.xpose.msra.mxu0 %v1138
    %1150 = vmatprep.subr.mxu0 0.0
    %1151 = vmatpush1.xpose.msra.mxu0 %v1140
    %1152 = vmatprep.subr.mxu0 0.0
    %1153 = vmatpush1.xpose.msra.mxu0 %v1142
    %1154 = vmatprep.subr.mxu0 0.0
    %1155 = vmatpush1.xpose.msra.mxu0 %v1144
    %1156 = vmatprep.subr.mxu0 0.0
    %1157 = vmatpush1.xpose.msra.mxu0 0.0
    %1158 = vmatprep.subr.mxu0 0.0
    %1159 = vmatpush1.xpose.msra.mxu0 0.0
    %1160 = vmatprep.subr.mxu0 0.0
    %1161 = vmatpush1.xpose.msra.mxu0 0.0
    %1162 = vmatprep.subr.mxu0 0.0
    %1163 = vmatpush1.xpose.msra.mxu0 0.0
    %1164 = vmatprep.subr.mxu0 0.0
    %1165 = vmatpush1.xpose.msra.mxu0 0.0
    %1166 = vmatprep.subr.mxu0 0.0
    %1167 = vmatpush1.xpose.msra.mxu0 0.0
    %1168 = vmatprep.subr.mxu0 0.0
    %1169 = vmatpush1.xpose.msra.mxu0 0.0
    %1170 = vmatprep.subr.mxu0 0.0
    %1171 = vmatpush1.xpose.msra.mxu0 0.0
    %1172 = vmatprep.subr.mxu0 0.0
    %1173 = vmatpush1.xpose.msra.mxu0 0.0
    %1174 = vmatprep.subr.mxu0 0.0
    %1175 = vmatpush1.xpose.msra.mxu0 0.0
    %1176 = vmatprep.subr.mxu0 0.0
    %1177 = vmatpush1.xpose.msra.mxu0 0.0
    %1178 = vmatprep.subr.mxu0 0.0
    %1179 = vmatpush1.xpose.msra.mxu0 0.0
    %1180 = vmatprep.subr.mxu0 0.0
    %1181 = vmatpush1.xpose.msra.mxu0 0.0
    %1182 = vmatprep.subr.mxu0 0.0
    %1183 = vmatpush1.xpose.msra.mxu0 0.0
    %1184 = vmatprep.subr.mxu0 0.0
    %1185 = vmatpush1.xpose.msra.mxu0 0.0
    %1186 = vmatprep.subr.mxu0 0.0
    %1187 = vmatpush1.xpose.msra.mxu0 0.0
    %1188 = vmatprep.subr.mxu0 0.0
    %1189 = vmatpush1.xpose.msra.mxu0 0.0
    %1190 = vmatprep.subr.mxu0 0.0
    %1191 = vmatpush1.xpose.msra.mxu0 0.0
    %1192 = vmatprep.subr.mxu0 0.0
    %1193 = vmatpush1.xpose.msra.mxu0 0.0
    %1194 = vmatprep.subr.mxu0 0.0
    %1195 = vmatpush1.xpose.msra.mxu0 0.0
    %1196 = vmatprep.subr.mxu0 0.0
    %1197 = vmatpush1.xpose.msra.mxu0 0.0
    %1198 = vmatprep.subr.mxu0 0.0
    %1199 = vmatpush1.xpose.msra.mxu0 0.0
    %1200 = vmatprep.subr.mxu0 0.0
    %1201 = vmatpush1.xpose.msra.mxu0 0.0
    %1202 = vmatprep.subr.mxu0 0.0
    %1203 = vmatpush1.xpose.msra.mxu0 0.0
    %1204 = vmatprep.subr.mxu0 0.0
    %1205 = vmatpush1.xpose.msra.mxu0 0.0
    %1206 = vmatprep.subr.mxu0 0.0
    %1207 = vmatpush1.xpose.msra.mxu0 0.0
    %1208 = vmatprep.subr.mxu0 0.0
    %1209 = vmatpush1.xpose.msra.mxu0 0.0
    %1210 = vmatprep.mubr.f32.mxu0 0.0
    %1211 = vmatmul.mubr.f32.gmra.mrb[0].mxu0 %v1126
    %v1212 = vpop.f32.mrb[0].mxu0
    %v1213 = vadd.f32 0.0, %v1212
    %v1214 = vpop.f32.mrb[0].mxu0
    %1215 = vmatprep.mubr.f32.mxu0 0.0
    %1216 = vmatmul.mubr.f32.gmra.mrb[0].mxu0 %v1128
    %v1217 = vpop.f32.mrb[0].mxu0
    %v1218 = vadd.f32 0.0, %v1217
    %v1219 = vpop.f32.mrb[0].mxu0
    %1220 = vmatprep.mubr.f32.mxu0 0.0
    %1221 = vmatmul.mubr.f32.gmra.mrb[0].mxu0 %v1130
    %v1222 = vpop.f32.mrb[0].mxu0
    %v1223 = vadd.f32 0.0, %v1222
    %v1224 = vpop.f32.mrb[0].mxu0
    %1225 = vmatprep.mubr.f32.mxu0 0.0
    %1226 = vmatmul.mubr.f32.gmra.mrb[0].mxu0 %v1132
    %v1227 = vpop.f32.mrb[0].mxu0
    %v1228 = vadd.f32 0.0, %v1227
    %v1229 = vpop.f32.mrb[0].mxu0
    %1230 = vmatprep.mubr.f32.mxu0 0.0
    %1231 = vmatmul.mubr.f32.gmra.mrb[0].mxu0 %v1134
    %v1232 = vpop.f32.mrb[0].mxu0
    %v1233 = vadd.f32 0.0, %v1232
    %v1234 = vpop.f32.mrb[0].mxu0
    %1235 = vdwg.mxu0
    %v1236 = vmul.f32 %v1213, 0.125
    %v1237 = vmul.f32 %v1218, 0.125
    %v1238 = vmul.f32 %v1223, 0.125
    %v1239 = vmul.f32 %v1228, 0.125
    %v1240 = vmul.f32 %v1233, 0.125
    %v1241 = vadd.f32 %v1236, %v369
    %v1242 = vadd.f32 %v1237, %v370
    %v1243 = vadd.f32 %v1238, %v371
    %v1244 = vadd.f32 %v1239, %v372
    %v1245 = vadd.f32 %v1240, %v373
    %v1246 = vsel %vm824, %v1241, -inf
    %1247 = vmax.xlane.f32.xlu0 %v1246
    %v1248 = vpop.xlane.xlu0 %1247
    %v1249 = vsel %vm824, %v1242, -inf
    %1250 = vmax.xlane.f32.xlu0 %v1249
    %v1251 = vpop.xlane.xlu0 %1250
    %v1252 = vsel %vm824, %v1243, -inf
    %1253 = vmax.xlane.f32.xlu0 %v1252
    %v1254 = vpop.xlane.xlu0 %1253
    %v1255 = vsel %vm824, %v1244, -inf
    %1256 = vmax.xlane.f32.xlu0 %v1255
    %v1257 = vpop.xlane.xlu0 %1256
    %v1258 = vsel %vm837, %v1245, -inf
    %1259 = vmax.xlane.f32.xlu0 %v1258
    %v1260 = vpop.xlane.xlu0 %1259
    %v1261 = vsub.f32 %v1241, %v1248
    %v1262 = vsub.f32 %v1242, %v1251
    %v1263 = vsub.f32 %v1243, %v1254
    %v1264 = vsub.f32 %v1244, %v1257
    %v1265 = vsub.f32 %v1245, %v1260
    %v1266 = vmul.f32 %v1261, 1.442695
    %v1267 = vpow.pop %v1266
    %v1268 = vmul.f32 %v1262, 1.442695
    %v1269 = vpow.pop %v1268
    %v1270 = vmul.f32 %v1263, 1.442695
    %v1271 = vpow.pop %v1270
    %v1272 = vmul.f32 %v1264, 1.442695
    %v1273 = vpow.pop %v1272
    %v1274 = vmul.f32 %v1265, 1.442695
    %v1275 = vpow.pop %v1274
    %v1276 = vsel %vm824, %v1267, 0.0
    %1277 = vadd.xlane.f32.xlu0 %v1276
    %v1278 = vpop.xlane.xlu0 %1277
    %v1279 = vsel %vm824, %v1269, 0.0
    %1280 = vadd.xlane.f32.xlu0 %v1279
    %v1281 = vpop.xlane.xlu0 %1280
    %v1282 = vsel %vm824, %v1271, 0.0
    %1283 = vadd.xlane.f32.xlu0 %v1282
    %v1284 = vpop.xlane.xlu0 %1283
    %v1285 = vsel %vm824, %v1273, 0.0
    %1286 = vadd.xlane.f32.xlu0 %v1285
    %v1287 = vpop.xlane.xlu0 %1286
    %v1288 = vsel %vm837, %v1275, 0.0
    %1289 = vadd.xlane.f32.xlu0 %v1288
    %v1290 = vpop.xlane.xlu0 %1289
    %v1291 = vrcp.pop %v1278
    %v1292 = vrcp.pop %v1281
    %v1293 = vrcp.pop %v1284
    %v1294 = vrcp.pop %v1287
    %v1295 = vrcp.pop %v1290
    %v1296 = vmul.f32 %v1267, %v1291
    %v1297 = vmul.f32 %v1269, %v1292
    %v1298 = vmul.f32 %v1271, %v1293
    %v1299 = vmul.f32 %v1273, %v1294
    %v1300 = vmul.f32 %v1275, %v1295
    %1305 = vrot.lane.b32.xlu0 %v653, 64
    %v1306 = vpop.permute.xlu0 %1305
    %1307 = vrot.lane.b32.xlu0 %v658, 64
    %v1308 = vpop.permute.xlu0 %1307
    %1309 = vrot.lane.b32.xlu0 %v663, 64
    %v1310 = vpop.permute.xlu0 %1309
    %1311 = vrot.lane.b32.xlu0 %v668, 64
    %v1312 = vpop.permute.xlu0 %1311
    %1313 = vrot.lane.b32.xlu0 %v673, 64
    %v1314 = vpop.permute.xlu0 %1313
    %v1320 = vsel %vm824, %v1296, 0
    %v1323 = vsel %vm824, %v1297, 0
    %v1326 = vsel %vm824, %v1298, 0
    %v1329 = vsel %vm824, %v1299, 0
    %v1332 = vsel %vm824, %v1300, 0
    %v1334 = vsel %vm896, %v1314, 0
    %1336 = vmatprep.subr.mxu0 0.0
    %1337 = vmatpush1.msra.mxu0 %v1306
    %1338 = vmatprep.subr.mxu0 0.0
    %1339 = vmatpush1.msra.mxu0 %v1308
    %1340 = vmatprep.subr.mxu0 0.0
    %1341 = vmatpush1.msra.mxu0 %v1310
    %1342 = vmatprep.subr.mxu0 0.0
    %1343 = vmatpush1.msra.mxu0 %v1312
    %1344 = vmatprep.subr.mxu0 0.0
    %1345 = vmatpush1.msra.mxu0 %v1334
    %1346 = vmatprep.subr.mxu0 0.0
    %1347 = vmatpush1.msra.mxu0 0.0
    %1348 = vmatprep.subr.mxu0 0.0
    %1349 = vmatpush1.msra.mxu0 0.0
    %1350 = vmatprep.subr.mxu0 0.0
    %1351 = vmatpush1.msra.mxu0 0.0
    %1352 = vmatprep.subr.mxu0 0.0
    %1353 = vmatpush1.msra.mxu0 0.0
    %1354 = vmatprep.subr.mxu0 0.0
    %1355 = vmatpush1.msra.mxu0 0.0
    %1356 = vmatprep.subr.mxu0 0.0
    %1357 = vmatpush1.msra.mxu0 0.0
    %1358 = vmatprep.subr.mxu0 0.0
    %1359 = vmatpush1.msra.mxu0 0.0
    %1360 = vmatprep.subr.mxu0 0.0
    %1361 = vmatpush1.msra.mxu0 0.0
    %1362 = vmatprep.subr.mxu0 0.0
    %1363 = vmatpush1.msra.mxu0 0.0
    %1364 = vmatprep.subr.mxu0 0.0
    %1365 = vmatpush1.msra.mxu0 0.0
    %1366 = vmatprep.subr.mxu0 0.0
    %1367 = vmatpush1.msra.mxu0 0.0
    %1368 = vmatprep.subr.mxu0 0.0
    %1369 = vmatpush1.msra.mxu0 0.0
    %1370 = vmatprep.subr.mxu0 0.0
    %1371 = vmatpush1.msra.mxu0 0.0
    %1372 = vmatprep.subr.mxu0 0.0
    %1373 = vmatpush1.msra.mxu0 0.0
    %1374 = vmatprep.subr.mxu0 0.0
    %1375 = vmatpush1.msra.mxu0 0.0
    %1376 = vmatprep.subr.mxu0 0.0
    %1377 = vmatpush1.msra.mxu0 0.0
    %1378 = vmatprep.subr.mxu0 0.0
    %1379 = vmatpush1.msra.mxu0 0.0
    %1380 = vmatprep.subr.mxu0 0.0
    %1381 = vmatpush1.msra.mxu0 0.0
    %1382 = vmatprep.subr.mxu0 0.0
    %1383 = vmatpush1.msra.mxu0 0.0
    %1384 = vmatprep.subr.mxu0 0.0
    %1385 = vmatpush1.msra.mxu0 0.0
    %1386 = vmatprep.subr.mxu0 0.0
    %1387 = vmatpush1.msra.mxu0 0.0
    %1388 = vmatprep.subr.mxu0 0.0
    %1389 = vmatpush1.msra.mxu0 0.0
    %1390 = vmatprep.subr.mxu0 0.0
    %1391 = vmatpush1.msra.mxu0 0.0
    %1392 = vmatprep.subr.mxu0 0.0
    %1393 = vmatpush1.msra.mxu0 0.0
    %1394 = vmatprep.subr.mxu0 0.0
    %1395 = vmatpush1.msra.mxu0 0.0
    %1396 = vmatprep.subr.mxu0 0.0
    %1397 = vmatpush1.msra.mxu0 0.0
    %1398 = vmatprep.subr.mxu0 0.0
    %1399 = vmatpush1.msra.mxu0 0.0
    %1400 = vmatprep.mubr.f32.mxu0 0.0
    %1401 = vmatmul.mubr.f32.gmra.mrb[0].mxu0 %v1320
    %v1402 = vpop.f32.mrb[0].mxu0
    %v1403 = vadd.f32 0.0, %v1402
    %v1404 = vpop.f32.mrb[0].mxu0
    %1405 = vmatprep.mubr.f32.mxu0 0.0
    %1406 = vmatmul.mubr.f32.gmra.mrb[0].mxu0 %v1323
    %v1407 = vpop.f32.mrb[0].mxu0
    %v1408 = vadd.f32 0.0, %v1407
    %v1409 = vpop.f32.mrb[0].mxu0
    %1410 = vmatprep.mubr.f32.mxu0 0.0
    %1411 = vmatmul.mubr.f32.gmra.mrb[0].mxu0 %v1326
    %v1412 = vpop.f32.mrb[0].mxu0
    %v1413 = vadd.f32 0.0, %v1412
    %v1414 = vpop.f32.mrb[0].mxu0
    %1415 = vmatprep.mubr.f32.mxu0 0.0
    %1416 = vmatmul.mubr.f32.gmra.mrb[0].mxu0 %v1329
    %v1417 = vpop.f32.mrb[0].mxu0
    %v1418 = vadd.f32 0.0, %v1417
    %v1419 = vpop.f32.mrb[0].mxu0
    %1420 = vmatprep.mubr.f32.mxu0 0.0
    %1421 = vmatmul.mubr.f32.gmra.mrb[0].mxu0 %v1332
    %v1422 = vpop.f32.mrb[0].mxu0
    %v1423 = vadd.f32 0.0, %v1422
    %v1424 = vpop.f32.mrb[0].mxu0
    %1425 = vdwg.mxu0
    %v1427 = vsel %vm693, %v1403, 0
    %v1430 = vsel %vm693, %v1408, 0
    %v1433 = vsel %vm693, %v1413, 0
    %v1436 = vsel %vm693, %v1418, 0
    %v1439 = vsel %vm693, %v1423, 0
    %1441 = vmatprep.subr.mxu0 0.0
    %1442 = vmatpush1.msra.mxu0 %v684
    %1443 = vmatprep.subr.mxu0 0.0
    %1444 = vmatpush1.msra.mxu0 %v685
    %1445 = vmatprep.subr.mxu0 0.0
    %1446 = vmatpush1.msra.mxu0 %v686
    %1447 = vmatprep.subr.mxu0 0.0
    %1448 = vmatpush1.msra.mxu0 %v687
    %1449 = vmatprep.subr.mxu0 0.0
    %1450 = vmatpush1.msra.mxu0 %v688
    %1451 = vmatprep.subr.mxu0 0.0
    %1452 = vmatpush1.msra.mxu0 %v689
    %1453 = vmatprep.subr.mxu0 0.0
    %1454 = vmatpush1.msra.mxu0 %v690
    %1455 = vmatprep.subr.mxu0 0.0
    %1456 = vmatpush1.msra.mxu0 %v691
    %1457 = vmatprep.subr.mxu0 0.0
    %1458 = vmatpush1.msra.mxu0 0.0
    %1459 = vmatprep.subr.mxu0 0.0
    %1460 = vmatpush1.msra.mxu0 0.0
    %1461 = vmatprep.subr.mxu0 0.0
    %1462 = vmatpush1.msra.mxu0 0.0
    %1463 = vmatprep.subr.mxu0 0.0
    %1464 = vmatpush1.msra.mxu0 0.0
    %1465 = vmatprep.subr.mxu0 0.0
    %1466 = vmatpush1.msra.mxu0 0.0
    %1467 = vmatprep.subr.mxu0 0.0
    %1468 = vmatpush1.msra.mxu0 0.0
    %1469 = vmatprep.subr.mxu0 0.0
    %1470 = vmatpush1.msra.mxu0 0.0
    %1471 = vmatprep.subr.mxu0 0.0
    %1472 = vmatpush1.msra.mxu0 0.0
    %1473 = vmatprep.subr.mxu0 0.0
    %1474 = vmatpush1.msra.mxu0 0.0
    %1475 = vmatprep.subr.mxu0 0.0
    %1476 = vmatpush1.msra.mxu0 0.0
    %1477 = vmatprep.subr.mxu0 0.0
    %1478 = vmatpush1.msra.mxu0 0.0
    %1479 = vmatprep.subr.mxu0 0.0
    %1480 = vmatpush1.msra.mxu0 0.0
    %1481 = vmatprep.subr.mxu0 0.0
    %1482 = vmatpush1.msra.mxu0 0.0
    %1483 = vmatprep.subr.mxu0 0.0
    %1484 = vmatpush1.msra.mxu0 0.0
    %1485 = vmatprep.subr.mxu0 0.0
    %1486 = vmatpush1.msra.mxu0 0.0
    %1487 = vmatprep.subr.mxu0 0.0
    %1488 = vmatpush1.msra.mxu0 0.0
    %1489 = vmatprep.subr.mxu0 0.0
    %1490 = vmatpush1.msra.mxu0 0.0
    %1491 = vmatprep.subr.mxu0 0.0
    %1492 = vmatpush1.msra.mxu0 0.0
    %1493 = vmatprep.subr.mxu0 0.0
    %1494 = vmatpush1.msra.mxu0 0.0
    %1495 = vmatprep.subr.mxu0 0.0
    %1496 = vmatpush1.msra.mxu0 0.0
    %1497 = vmatprep.subr.mxu0 0.0
    %1498 = vmatpush1.msra.mxu0 0.0
    %1499 = vmatprep.subr.mxu0 0.0
    %1500 = vmatpush1.msra.mxu0 0.0
    %1501 = vmatprep.subr.mxu0 0.0
    %1502 = vmatpush1.msra.mxu0 0.0
    %1503 = vmatprep.subr.mxu0 0.0
    %1504 = vmatpush1.msra.mxu0 0.0
    %1505 = vmatprep.mubr.f32.mxu0 0.0
    %1506 = vmatmul.mubr.f32.gmra.mrb[0].mxu0 %v1427
    %v1507 = vpop.f32.mrb[0].mxu0
    %v1508 = vadd.f32 0.0, %v1507
    %v1509 = vpop.f32.mrb[0].mxu0
    %1510 = vmatprep.mubr.f32.mxu0 0.0
    %1511 = vmatmul.mubr.f32.gmra.mrb[0].mxu0 %v1430
    %v1512 = vpop.f32.mrb[0].mxu0
    %v1513 = vadd.f32 0.0, %v1512
    %v1514 = vpop.f32.mrb[0].mxu0
    %1515 = vmatprep.mubr.f32.mxu0 0.0
    %1516 = vmatmul.mubr.f32.gmra.mrb[0].mxu0 %v1433
    %v1517 = vpop.f32.mrb[0].mxu0
    %v1518 = vadd.f32 0.0, %v1517
    %v1519 = vpop.f32.mrb[0].mxu0
    %1520 = vmatprep.mubr.f32.mxu0 0.0
    %1521 = vmatmul.mubr.f32.gmra.mrb[0].mxu0 %v1436
    %v1522 = vpop.f32.mrb[0].mxu0
    %v1523 = vadd.f32 0.0, %v1522
    %v1524 = vpop.f32.mrb[0].mxu0
    %1525 = vmatprep.mubr.f32.mxu0 0.0
    %1526 = vmatmul.mubr.f32.gmra.mrb[0].mxu0 %v1439
    %v1527 = vpop.f32.mrb[0].mxu0
    %v1528 = vadd.f32 0.0, %v1527
    %v1529 = vpop.f32.mrb[0].mxu0
    %1530 = vdwg.mxu0
    %v1531 = vadd.f32 %v1101, %v1508
    %v1532 = vadd.f32 %v1102, %v1513
    %v1533 = vadd.f32 %v1103, %v1518
    %v1534 = vadd.f32 %v1104, %v1523
    %v1535 = vadd.f32 %v1105, %v1528
    %v1536 = vadd.f32 %v364, %v1531
    %v1537 = vadd.f32 %v365, %v1532
    %v1538 = vadd.f32 %v366, %v1533
    %v1539 = vadd.f32 %v367, %v1534
    %v1540 = vadd.f32 %v368, %v1535
    %v1541 = vld [vmem:[%s15] sm:$0x1]
    %v1542 = vld [vmem:[%s16] sm:$0x1]
    %v1543 = vsel %vm269, %v1536, 0.0
    %1544 = vadd.xlane.f32.xlu0 %v1543
    %v1545 = vpop.xlane.xlu0 %1544
    %v1546 = vsel %vm269, %v1537, 0.0
    %1547 = vadd.xlane.f32.xlu0 %v1546
    %v1548 = vpop.xlane.xlu0 %1547
    %v1549 = vsel %vm269, %v1538, 0.0
    %1550 = vadd.xlane.f32.xlu0 %v1549
    %v1551 = vpop.xlane.xlu0 %1550
    %v1552 = vsel %vm269, %v1539, 0.0
    %1553 = vadd.xlane.f32.xlu0 %v1552
    %v1554 = vpop.xlane.xlu0 %1553
    %v1555 = vsel %vm388, %v1540, 0.0
    %1556 = vadd.xlane.f32.xlu0 %v1555
    %v1557 = vpop.xlane.xlu0 %1556
    %v1558 = vmul.f32 %v1545, %v282
    %v1559 = vmul.f32 %v1548, %v282
    %v1560 = vmul.f32 %v1551, %v282
    %v1561 = vmul.f32 %v1554, %v282
    %v1562 = vmul.f32 %v1557, %v282
    %v1563 = vsub.f32 %v1536, %v1558
    %v1564 = vsub.f32 %v1537, %v1559
    %v1565 = vsub.f32 %v1538, %v1560
    %v1566 = vsub.f32 %v1539, %v1561
    %v1567 = vsub.f32 %v1540, %v1562
    %v1568 = vmul.f32 %v1563, %v1563
    %v1569 = vmul.f32 %v1564, %v1564
    %v1570 = vmul.f32 %v1565, %v1565
    %v1571 = vmul.f32 %v1566, %v1566
    %v1572 = vmul.f32 %v1567, %v1567
    %v1573 = vsel %vm269, %v1568, 0.0
    %1574 = vadd.xlane.f32.xlu0 %v1573
    %v1575 = vpop.xlane.xlu0 %1574
    %v1576 = vsel %vm269, %v1569, 0.0
    %1577 = vadd.xlane.f32.xlu0 %v1576
    %v1578 = vpop.xlane.xlu0 %1577
    %v1579 = vsel %vm269, %v1570, 0.0
    %1580 = vadd.xlane.f32.xlu0 %v1579
    %v1581 = vpop.xlane.xlu0 %1580
    %v1582 = vsel %vm269, %v1571, 0.0
    %1583 = vadd.xlane.f32.xlu0 %v1582
    %v1584 = vpop.xlane.xlu0 %1583
    %v1585 = vsel %vm388, %v1572, 0.0
    %1586 = vadd.xlane.f32.xlu0 %v1585
    %v1587 = vpop.xlane.xlu0 %1586
    %v1588 = vmul.f32 %v1575, %v282
    %v1589 = vmul.f32 %v1578, %v282
    %v1590 = vmul.f32 %v1581, %v282
    %v1591 = vmul.f32 %v1584, %v282
    %v1592 = vmul.f32 %v1587, %v282
    %v1593 = vadd.f32 %v1588, 1e-05
    %v1594 = vadd.f32 %v1589, 1e-05
    %v1595 = vadd.f32 %v1590, 1e-05
    %v1596 = vadd.f32 %v1591, 1e-05
    %v1597 = vadd.f32 %v1592, 1e-05
    %v1598 = vrsqrt.pop %v1593
    %v1599 = vrsqrt.pop %v1594
    %v1600 = vrsqrt.pop %v1595
    %v1601 = vrsqrt.pop %v1596
    %v1602 = vrsqrt.pop %v1597
    %v1603 = vmul.f32 %v1563, %v1598
    %v1604 = vmul.f32 %v1564, %v1599
    %v1605 = vmul.f32 %v1565, %v1600
    %v1606 = vmul.f32 %v1566, %v1601
    %v1607 = vmul.f32 %v1567, %v1602
    %v1609 = vlaneseq
    %v1610 = vshrl.u32 %v1609, 7
    %v1611 = vsub.s32 0, %v1610
    %v1612 = vrot.slane %v1541, %v1611
    %v1614 = vmul.f32 %v1603, %v1612
    %v1615 = vmul.f32 %v1604, %v1612
    %v1616 = vmul.f32 %v1605, %v1612
    %v1617 = vmul.f32 %v1606, %v1612
    %v1618 = vmul.f32 %v1607, %v1612
    %v1620 = vlaneseq
    %v1621 = vshrl.u32 %v1620, 7
    %v1622 = vsub.s32 0, %v1621
    %v1623 = vrot.slane %v1542, %v1622
    %v1625 = vadd.f32 %v1614, %v1623
    %v1626 = vadd.f32 %v1615, %v1623
    %v1627 = vadd.f32 %v1616, %v1623
    %v1628 = vadd.f32 %v1617, %v1623
    %v1629 = vadd.f32 %v1618, %v1623
    %v1630 = vld [vmem:[%s17] sm:$0xff]
    %v1631 = vld [vmem:[%s17 + $0x8] sm:$0xff]
    %v1632 = vld [vmem:[%s17 + $0x10] sm:$0xff]
    %v1633 = vld [vmem:[%s17 + $0x18] sm:$0xff]
    %v1634 = vld [vmem:[%s18] sm:$0x1]
    %v1636 = vlaneseq
    %v1637 = vshrl.u32 %v1636, 7
    %v1638 = vsub.s32 0, %v1637
    %v1639 = vrot.slane %v1634, %v1638
    %v1642 = vsel %vm269, %v1625, 0
    %v1645 = vsel %vm269, %v1626, 0
    %v1648 = vsel %vm269, %v1627, 0
    %v1651 = vsel %vm269, %v1628, 0
    %v1654 = vsel %vm269, %v1629, 0
    %1656 = vmatprep.subr.mxu0 0.0
    %1657 = vmatpush1.msra.mxu0 %v1630
    %1658 = vmatprep.subr.mxu0 0.0
    %1659 = vmatpush1.msra.mxu0 %v1631
    %1660 = vmatprep.subr.mxu0 0.0
    %1661 = vmatpush1.msra.mxu0 %v1632
    %1662 = vmatprep.subr.mxu0 0.0
    %1663 = vmatpush1.msra.mxu0 %v1633
    %1664 = vmatprep.subr.mxu0 0.0
    %1665 = vmatpush1.msra.mxu0 0.0
    %1666 = vmatprep.subr.mxu0 0.0
    %1667 = vmatpush1.msra.mxu0 0.0
    %1668 = vmatprep.subr.mxu0 0.0
    %1669 = vmatpush1.msra.mxu0 0.0
    %1670 = vmatprep.subr.mxu0 0.0
    %1671 = vmatpush1.msra.mxu0 0.0
    %1672 = vmatprep.subr.mxu0 0.0
    %1673 = vmatpush1.msra.mxu0 0.0
    %1674 = vmatprep.subr.mxu0 0.0
    %1675 = vmatpush1.msra.mxu0 0.0
    %1676 = vmatprep.subr.mxu0 0.0
    %1677 = vmatpush1.msra.mxu0 0.0
    %1678 = vmatprep.subr.mxu0 0.0
    %1679 = vmatpush1.msra.mxu0 0.0
    %1680 = vmatprep.subr.mxu0 0.0
    %1681 = vmatpush1.msra.mxu0 0.0
    %1682 = vmatprep.subr.mxu0 0.0
    %1683 = vmatpush1.msra.mxu0 0.0
    %1684 = vmatprep.subr.mxu0 0.0
    %1685 = vmatpush1.msra.mxu0 0.0
    %1686 = vmatprep.subr.mxu0 0.0
    %1687 = vmatpush1.msra.mxu0 0.0
    %1688 = vmatprep.subr.mxu0 0.0
    %1689 = vmatpush1.msra.mxu0 0.0
    %1690 = vmatprep.subr.mxu0 0.0
    %1691 = vmatpush1.msra.mxu0 0.0
    %1692 = vmatprep.subr.mxu0 0.0
    %1693 = vmatpush1.msra.mxu0 0.0
    %1694 = vmatprep.subr.mxu0 0.0
    %1695 = vmatpush1.msra.mxu0 0.0
    %1696 = vmatprep.subr.mxu0 0.0
    %1697 = vmatpush1.msra.mxu0 0.0
    %1698 = vmatprep.subr.mxu0 0.0
    %1699 = vmatpush1.msra.mxu0 0.0
    %1700 = vmatprep.subr.mxu0 0.0
    %1701 = vmatpush1.msra.mxu0 0.0
    %1702 = vmatprep.subr.mxu0 0.0
    %1703 = vmatpush1.msra.mxu0 0.0
    %1704 = vmatprep.subr.mxu0 0.0
    %1705 = vmatpush1.msra.mxu0 0.0
    %1706 = vmatprep.subr.mxu0 0.0
    %1707 = vmatpush1.msra.mxu0 0.0
    %1708 = vmatprep.subr.mxu0 0.0
    %1709 = vmatpush1.msra.mxu0 0.0
    %1710 = vmatprep.subr.mxu0 0.0
    %1711 = vmatpush1.msra.mxu0 0.0
    %1712 = vmatprep.subr.mxu0 0.0
    %1713 = vmatpush1.msra.mxu0 0.0
    %1714 = vmatprep.subr.mxu0 0.0
    %1715 = vmatpush1.msra.mxu0 0.0
    %1716 = vmatprep.subr.mxu0 0.0
    %1717 = vmatpush1.msra.mxu0 0.0
    %1718 = vmatprep.subr.mxu0 0.0
    %1719 = vmatpush1.msra.mxu0 0.0
    %1720 = vmatprep.mubr.f32.mxu0 0.0
    %1721 = vmatmul.mubr.f32.gmra.mrb[0].mxu0 %v1642
    %v1722 = vpop.f32.mrb[0].mxu0
    %v1723 = vadd.f32 %v1639, %v1722
    %v1724 = vpop.f32.mrb[0].mxu0
    %1725 = vmatprep.mubr.f32.mxu0 0.0
    %1726 = vmatmul.mubr.f32.gmra.mrb[0].mxu0 %v1645
    %v1727 = vpop.f32.mrb[0].mxu0
    %v1728 = vadd.f32 %v1639, %v1727
    %v1729 = vpop.f32.mrb[0].mxu0
    %1730 = vmatprep.mubr.f32.mxu0 0.0
    %1731 = vmatmul.mubr.f32.gmra.mrb[0].mxu0 %v1648
    %v1732 = vpop.f32.mrb[0].mxu0
    %v1733 = vadd.f32 %v1639, %v1732
    %v1734 = vpop.f32.mrb[0].mxu0
    %1735 = vmatprep.mubr.f32.mxu0 0.0
    %1736 = vmatmul.mubr.f32.gmra.mrb[0].mxu0 %v1651
    %v1737 = vpop.f32.mrb[0].mxu0
    %v1738 = vadd.f32 %v1639, %v1737
    %v1739 = vpop.f32.mrb[0].mxu0
    %1740 = vmatprep.mubr.f32.mxu0 0.0
    %1741 = vmatmul.mubr.f32.gmra.mrb[0].mxu0 %v1654
    %v1742 = vpop.f32.mrb[0].mxu0
    %v1743 = vadd.f32 %v1639, %v1742
    %v1744 = vpop.f32.mrb[0].mxu0
    %1745 = vdwg.mxu0
    %v1746 = vmul.f32 %v1723, 0.5
    %v1747 = vmul.f32 %v1728, 0.5
    %v1748 = vmul.f32 %v1733, 0.5
    %v1749 = vmul.f32 %v1738, 0.5
    %v1750 = vmul.f32 %v1743, 0.5
    %v1751 = vrcp.pop 1.4142135
    %v1752 = vmul.f32 %v1723, %v1751
    %v1753 = vmul.f32 %v1728, %v1751
    %v1754 = vmul.f32 %v1733, %v1751
    %v1755 = vmul.f32 %v1738, %v1751
    %v1756 = vmul.f32 %v1743, %v1751
    %v1757 = verf.f32.pop %v1752
    %v1758 = verf.f32.pop %v1753
    %v1759 = verf.f32.pop %v1754
    %v1760 = verf.f32.pop %v1755
    %v1761 = verf.f32.pop %v1756
    %v1762 = vadd.f32 %v1757, 1.0
    %v1763 = vadd.f32 %v1758, 1.0
    %v1764 = vadd.f32 %v1759, 1.0
    %v1765 = vadd.f32 %v1760, 1.0
    %v1766 = vadd.f32 %v1761, 1.0
    %v1767 = vmul.f32 %v1746, %v1762
    %v1768 = vmul.f32 %v1747, %v1763
    %v1769 = vmul.f32 %v1748, %v1764
    %v1770 = vmul.f32 %v1749, %v1765
    %v1771 = vmul.f32 %v1750, %v1766
    %v1772 = vld [vmem:[%s19] sm:$0xff]
    %v1773 = vld [vmem:[%s19 + $0x8] sm:$0xff]
    %v1774 = vld [vmem:[%s19 + $0x10] sm:$0xff]
    %v1775 = vld [vmem:[%s19 + $0x18] sm:$0xff]
    %v1776 = vld [vmem:[%s19 + $0x20] sm:$0xff]
    %v1777 = vld [vmem:[%s19 + $0x28] sm:$0xff]
    %v1778 = vld [vmem:[%s19 + $0x30] sm:$0xff]
    %v1779 = vld [vmem:[%s19 + $0x38] sm:$0xff]
    %v1781 = vsel %vm693, %v1767, 0
    %v1784 = vsel %vm693, %v1768, 0
    %v1787 = vsel %vm693, %v1769, 0
    %v1790 = vsel %vm693, %v1770, 0
    %v1793 = vsel %vm693, %v1771, 0
    %1795 = vmatprep.subr.mxu0 0.0
    %1796 = vmatpush1.msra.mxu0 %v1772
    %1797 = vmatprep.subr.mxu0 0.0
    %1798 = vmatpush1.msra.mxu0 %v1773
    %1799 = vmatprep.subr.mxu0 0.0
    %1800 = vmatpush1.msra.mxu0 %v1774
    %1801 = vmatprep.subr.mxu0 0.0
    %1802 = vmatpush1.msra.mxu0 %v1775
    %1803 = vmatprep.subr.mxu0 0.0
    %1804 = vmatpush1.msra.mxu0 %v1776
    %1805 = vmatprep.subr.mxu0 0.0
    %1806 = vmatpush1.msra.mxu0 %v1777
    %1807 = vmatprep.subr.mxu0 0.0
    %1808 = vmatpush1.msra.mxu0 %v1778
    %1809 = vmatprep.subr.mxu0 0.0
    %1810 = vmatpush1.msra.mxu0 %v1779
    %1811 = vmatprep.subr.mxu0 0.0
    %1812 = vmatpush1.msra.mxu0 0.0
    %1813 = vmatprep.subr.mxu0 0.0
    %1814 = vmatpush1.msra.mxu0 0.0
    %1815 = vmatprep.subr.mxu0 0.0
    %1816 = vmatpush1.msra.mxu0 0.0
    %1817 = vmatprep.subr.mxu0 0.0
    %1818 = vmatpush1.msra.mxu0 0.0
    %1819 = vmatprep.subr.mxu0 0.0
    %1820 = vmatpush1.msra.mxu0 0.0
    %1821 = vmatprep.subr.mxu0 0.0
    %1822 = vmatpush1.msra.mxu0 0.0
    %1823 = vmatprep.subr.mxu0 0.0
    %1824 = vmatpush1.msra.mxu0 0.0
    %1825 = vmatprep.subr.mxu0 0.0
    %1826 = vmatpush1.msra.mxu0 0.0
    %1827 = vmatprep.subr.mxu0 0.0
    %1828 = vmatpush1.msra.mxu0 0.0
    %1829 = vmatprep.subr.mxu0 0.0
    %1830 = vmatpush1.msra.mxu0 0.0
    %1831 = vmatprep.subr.mxu0 0.0
    %1832 = vmatpush1.msra.mxu0 0.0
    %1833 = vmatprep.subr.mxu0 0.0
    %1834 = vmatpush1.msra.mxu0 0.0
    %1835 = vmatprep.subr.mxu0 0.0
    %1836 = vmatpush1.msra.mxu0 0.0
    %1837 = vmatprep.subr.mxu0 0.0
    %1838 = vmatpush1.msra.mxu0 0.0
    %1839 = vmatprep.subr.mxu0 0.0
    %1840 = vmatpush1.msra.mxu0 0.0
    %1841 = vmatprep.subr.mxu0 0.0
    %1842 = vmatpush1.msra.mxu0 0.0
    %1843 = vmatprep.subr.mxu0 0.0
    %1844 = vmatpush1.msra.mxu0 0.0
    %1845 = vmatprep.subr.mxu0 0.0
    %1846 = vmatpush1.msra.mxu0 0.0
    %1847 = vmatprep.subr.mxu0 0.0
    %1848 = vmatpush1.msra.mxu0 0.0
    %1849 = vmatprep.subr.mxu0 0.0
    %1850 = vmatpush1.msra.mxu0 0.0
    %1851 = vmatprep.subr.mxu0 0.0
    %1852 = vmatpush1.msra.mxu0 0.0
    %1853 = vmatprep.subr.mxu0 0.0
    %1854 = vmatpush1.msra.mxu0 0.0
    %1855 = vmatprep.subr.mxu0 0.0
    %1856 = vmatpush1.msra.mxu0 0.0
    %1857 = vmatprep.subr.mxu0 0.0
    %1858 = vmatpush1.msra.mxu0 0.0
    %1859 = vmatprep.mubr.f32.mxu0 0.0
    %1860 = vmatmul.mubr.f32.gmra.mrb[0].mxu0 %v1781
    %v1861 = vpop.f32.mrb[0].mxu0
    %v1862 = vadd.f32 0.0, %v1861
    %v1863 = vpop.f32.mrb[0].mxu0
    %1864 = vmatprep.mubr.f32.mxu0 0.0
    %1865 = vmatmul.mubr.f32.gmra.mrb[0].mxu0 %v1784
    %v1866 = vpop.f32.mrb[0].mxu0
    %v1867 = vadd.f32 0.0, %v1866
    %v1868 = vpop.f32.mrb[0].mxu0
    %1869 = vmatprep.mubr.f32.mxu0 0.0
    %1870 = vmatmul.mubr.f32.gmra.mrb[0].mxu0 %v1787
    %v1871 = vpop.f32.mrb[0].mxu0
    %v1872 = vadd.f32 0.0, %v1871
    %v1873 = vpop.f32.mrb[0].mxu0
    %1874 = vmatprep.mubr.f32.mxu0 0.0
    %1875 = vmatmul.mubr.f32.gmra.mrb[0].mxu0 %v1790
    %v1876 = vpop.f32.mrb[0].mxu0
    %v1877 = vadd.f32 0.0, %v1876
    %v1878 = vpop.f32.mrb[0].mxu0
    %1879 = vmatprep.mubr.f32.mxu0 0.0
    %1880 = vmatmul.mubr.f32.gmra.mrb[0].mxu0 %v1793
    %v1881 = vpop.f32.mrb[0].mxu0
    %v1882 = vadd.f32 0.0, %v1881
    %v1883 = vpop.f32.mrb[0].mxu0
    %1884 = vdwg.mxu0
    %v1885 = vadd.f32 %v1536, %v1862
    %v1886 = vadd.f32 %v1537, %v1867
    %v1887 = vadd.f32 %v1538, %v1872
    %v1888 = vadd.f32 %v1539, %v1877
    %v1889 = vadd.f32 %v1540, %v1882
    %v1890 = vld [vmem:[%s20] sm:$0x1]
    %v1892 = vlaneseq
    %v1893 = vshrl.u32 %v1892, 7
    %v1894 = vsub.s32 0, %v1893
    %v1895 = vrot.slane %v1890, %v1894
    %v1897 = vadd.f32 %v1885, %v1895
    %v1898 = vadd.f32 %v1886, %v1895
    %v1899 = vadd.f32 %v1887, %v1895
    %v1900 = vadd.f32 %v1888, %v1895
    %v1901 = vadd.f32 %v1889, %v1895
    %s1902 = scalar_lea.vmem %s10, 1
    %v1903 = vld [vmem:[%s1902] sm:$0x1]
    %s1904 = scalar_lea.vmem %s11, 1
    %v1905 = vld [vmem:[%s1904] sm:$0x1]
    %v1906 = vsel %vm269, %v1897, 0.0
    %1907 = vadd.xlane.f32.xlu0 %v1906
    %v1908 = vpop.xlane.xlu0 %1907
    %v1909 = vsel %vm269, %v1898, 0.0
    %1910 = vadd.xlane.f32.xlu0 %v1909
    %v1911 = vpop.xlane.xlu0 %1910
    %v1912 = vsel %vm269, %v1899, 0.0
    %1913 = vadd.xlane.f32.xlu0 %v1912
    %v1914 = vpop.xlane.xlu0 %1913
    %v1915 = vsel %vm269, %v1900, 0.0
    %1916 = vadd.xlane.f32.xlu0 %v1915
    %v1917 = vpop.xlane.xlu0 %1916
    %v1918 = vsel %vm388, %v1901, 0.0
    %1919 = vadd.xlane.f32.xlu0 %v1918
    %v1920 = vpop.xlane.xlu0 %1919
    %v1921 = vmul.f32 %v1908, %v282
    %v1922 = vmul.f32 %v1911, %v282
    %v1923 = vmul.f32 %v1914, %v282
    %v1924 = vmul.f32 %v1917, %v282
    %v1925 = vmul.f32 %v1920, %v282
    %v1926 = vsub.f32 %v1897, %v1921
    %v1927 = vsub.f32 %v1898, %v1922
    %v1928 = vsub.f32 %v1899, %v1923
    %v1929 = vsub.f32 %v1900, %v1924
    %v1930 = vsub.f32 %v1901, %v1925
    %v1931 = vmul.f32 %v1926, %v1926
    %v1932 = vmul.f32 %v1927, %v1927
    %v1933 = vmul.f32 %v1928, %v1928
    %v1934 = vmul.f32 %v1929, %v1929
    %v1935 = vmul.f32 %v1930, %v1930
    %v1936 = vsel %vm269, %v1931, 0.0
    %1937 = vadd.xlane.f32.xlu0 %v1936
    %v1938 = vpop.xlane.xlu0 %1937
    %v1939 = vsel %vm269, %v1932, 0.0
    %1940 = vadd.xlane.f32.xlu0 %v1939
    %v1941 = vpop.xlane.xlu0 %1940
    %v1942 = vsel %vm269, %v1933, 0.0
    %1943 = vadd.xlane.f32.xlu0 %v1942
    %v1944 = vpop.xlane.xlu0 %1943
    %v1945 = vsel %vm269, %v1934, 0.0
    %1946 = vadd.xlane.f32.xlu0 %v1945
    %v1947 = vpop.xlane.xlu0 %1946
    %v1948 = vsel %vm388, %v1935, 0.0
    %1949 = vadd.xlane.f32.xlu0 %v1948
    %v1950 = vpop.xlane.xlu0 %1949
    %v1951 = vmul.f32 %v1938, %v282
    %v1952 = vmul.f32 %v1941, %v282
    %v1953 = vmul.f32 %v1944, %v282
    %v1954 = vmul.f32 %v1947, %v282
    %v1955 = vmul.f32 %v1950, %v282
    %v1956 = vadd.f32 %v1951, 1e-05
    %v1957 = vadd.f32 %v1952, 1e-05
    %v1958 = vadd.f32 %v1953, 1e-05
    %v1959 = vadd.f32 %v1954, 1e-05
    %v1960 = vadd.f32 %v1955, 1e-05
    %v1961 = vrsqrt.pop %v1956
    %v1962 = vrsqrt.pop %v1957
    %v1963 = vrsqrt.pop %v1958
    %v1964 = vrsqrt.pop %v1959
    %v1965 = vrsqrt.pop %v1960
    %v1966 = vmul.f32 %v1926, %v1961
    %v1967 = vmul.f32 %v1927, %v1962
    %v1968 = vmul.f32 %v1928, %v1963
    %v1969 = vmul.f32 %v1929, %v1964
    %v1970 = vmul.f32 %v1930, %v1965
    %v1972 = vlaneseq
    %v1973 = vshrl.u32 %v1972, 7
    %v1974 = vsub.s32 0, %v1973
    %v1975 = vrot.slane %v1903, %v1974
    %v1977 = vmul.f32 %v1966, %v1975
    %v1978 = vmul.f32 %v1967, %v1975
    %v1979 = vmul.f32 %v1968, %v1975
    %v1980 = vmul.f32 %v1969, %v1975
    %v1981 = vmul.f32 %v1970, %v1975
    %v1983 = vlaneseq
    %v1984 = vshrl.u32 %v1983, 7
    %v1985 = vsub.s32 0, %v1984
    %v1986 = vrot.slane %v1905, %v1985
    %v1988 = vadd.f32 %v1977, %v1986
    %v1989 = vadd.f32 %v1978, %v1986
    %v1990 = vadd.f32 %v1979, %v1986
    %v1991 = vadd.f32 %v1980, %v1986
    %v1992 = vadd.f32 %v1981, %v1986
    %s1993 = scalar_lea.vmem %s12, 96
    %v1994 = vld [vmem:[%s1993] sm:$0xff]
    %v1995 = vld [vmem:[%s1993 + $0x8] sm:$0xff]
    %v1996 = vld [vmem:[%s1993 + $0x10] sm:$0xff]
    %v1997 = vld [vmem:[%s1993 + $0x18] sm:$0xff]
    %v1998 = vld [vmem:[%s1993 + $0x20] sm:$0xff]
    %v1999 = vld [vmem:[%s1993 + $0x28] sm:$0xff]
    %v2000 = vld [vmem:[%s1993 + $0x30] sm:$0xff]
    %v2001 = vld [vmem:[%s1993 + $0x38] sm:$0xff]
    %v2002 = vld [vmem:[%s1993 + $0x40] sm:$0xff]
    %v2003 = vld [vmem:[%s1993 + $0x48] sm:$0xff]
    %v2004 = vld [vmem:[%s1993 + $0x50] sm:$0xff]
    %v2005 = vld [vmem:[%s1993 + $0x58] sm:$0xff]
    %v2007 = vsel %vm269, %v1988, 0
    %v2010 = vsel %vm269, %v1989, 0
    %v2013 = vsel %vm269, %v1990, 0
    %v2016 = vsel %vm269, %v1991, 0
    %v2019 = vsel %vm269, %v1992, 0
    %2021 = vmatprep.subr.mxu0 %v1995
    %2022 = vmatpush1.msra.mxu0 %v1994
    %2023 = vmatprep.subr.mxu0 %v1998
    %2024 = vmatpush1.msra.mxu0 %v1997
    %2025 = vmatprep.subr.mxu0 %v2001
    %2026 = vmatpush1.msra.mxu0 %v2000
    %2027 = vmatprep.subr.mxu0 %v2004
    %2028 = vmatpush1.msra.mxu0 %v2003
    %2029 = vmatprep.subr.mxu0 0.0
    %2030 = vmatpush1.msra.mxu0 0.0
    %2031 = vmatprep.subr.mxu0 0.0
    %2032 = vmatpush1.msra.mxu0 0.0
    %2033 = vmatprep.subr.mxu0 0.0
    %2034 = vmatpush1.msra.mxu0 0.0
    %2035 = vmatprep.subr.mxu0 0.0
    %2036 = vmatpush1.msra.mxu0 0.0
    %2037 = vmatprep.subr.mxu0 0.0
    %2038 = vmatpush1.msra.mxu0 0.0
    %2039 = vmatprep.subr.mxu0 0.0
    %2040 = vmatpush1.msra.mxu0 0.0
    %2041 = vmatprep.subr.mxu0 0.0
    %2042 = vmatpush1.msra.mxu0 0.0
    %2043 = vmatprep.subr.mxu0 0.0
    %2044 = vmatpush1.msra.mxu0 0.0
    %2045 = vmatprep.subr.mxu0 0.0
    %2046 = vmatpush1.msra.mxu0 0.0
    %2047 = vmatprep.subr.mxu0 0.0
    %2048 = vmatpush1.msra.mxu0 0.0
    %2049 = vmatprep.subr.mxu0 0.0
    %2050 = vmatpush1.msra.mxu0 0.0
    %2051 = vmatprep.subr.mxu0 0.0
    %2052 = vmatpush1.msra.mxu0 0.0
    %2053 = vmatprep.subr.mxu0 0.0
    %2054 = vmatpush1.msra.mxu0 0.0
    %2055 = vmatprep.subr.mxu0 0.0
    %2056 = vmatpush1.msra.mxu0 0.0
    %2057 = vmatprep.subr.mxu0 0.0
    %2058 = vmatpush1.msra.mxu0 0.0
    %2059 = vmatprep.subr.mxu0 0.0
    %2060 = vmatpush1.msra.mxu0 0.0
    %2061 = vmatprep.subr.mxu0 0.0
    %2062 = vmatpush1.msra.mxu0 0.0
    %2063 = vmatprep.subr.mxu0 0.0
    %2064 = vmatpush1.msra.mxu0 0.0
    %2065 = vmatprep.subr.mxu0 0.0
    %2066 = vmatpush1.msra.mxu0 0.0
    %2067 = vmatprep.subr.mxu0 0.0
    %2068 = vmatpush1.msra.mxu0 0.0
    %2069 = vmatprep.subr.mxu0 0.0
    %2070 = vmatpush1.msra.mxu0 0.0
    %2071 = vmatprep.subr.mxu0 0.0
    %2072 = vmatpush1.msra.mxu0 0.0
    %2073 = vmatprep.subr.mxu0 0.0
    %2074 = vmatpush1.msra.mxu0 0.0
    %2075 = vmatprep.subr.mxu0 0.0
    %2076 = vmatpush1.msra.mxu0 0.0
    %2077 = vmatprep.subr.mxu0 0.0
    %2078 = vmatpush1.msra.mxu0 0.0
    %2079 = vmatprep.subr.mxu0 0.0
    %2080 = vmatpush1.msra.mxu0 0.0
    %2081 = vmatprep.subr.mxu0 0.0
    %2082 = vmatpush1.msra.mxu0 0.0
    %2083 = vmatprep.subr.mxu0 0.0
    %2084 = vmatpush1.msra.mxu0 0.0
    %2085 = vmatprep.mubr.f32.mxu0 0.0
    %2086 = vmatmul.mubr.f32.gmra.mrb[0].mxu0 %v2007
    %v2087 = vpop.f32.mrb[0].mxu0
    %v2088 = vadd.f32 0.0, %v2087
    %v2089 = vpop.f32.mrb[0].mxu0
    %v2090 = vadd.f32 0.0, %v2089
    %2091 = vmatprep.mubr.f32.mxu0 0.0
    %2092 = vmatmul.mubr.f32.gmra.mrb[0].mxu0 %v2010
    %v2093 = vpop.f32.mrb[0].mxu0
    %v2094 = vadd.f32 0.0, %v2093
    %v2095 = vpop.f32.mrb[0].mxu0
    %v2096 = vadd.f32 0.0, %v2095
    %2097 = vmatprep.mubr.f32.mxu0 0.0
    %2098 = vmatmul.mubr.f32.gmra.mrb[0].mxu0 %v2013
    %v2099 = vpop.f32.mrb[0].mxu0
    %v2100 = vadd.f32 0.0, %v2099
    %v2101 = vpop.f32.mrb[0].mxu0
    %v2102 = vadd.f32 0.0, %v2101
    %2103 = vmatprep.mubr.f32.mxu0 0.0
    %2104 = vmatmul.mubr.f32.gmra.mrb[0].mxu0 %v2016
    %v2105 = vpop.f32.mrb[0].mxu0
    %v2106 = vadd.f32 0.0, %v2105
    %v2107 = vpop.f32.mrb[0].mxu0
    %v2108 = vadd.f32 0.0, %v2107
    %2109 = vmatprep.mubr.f32.mxu0 0.0
    %2110 = vmatmul.mubr.f32.gmra.mrb[0].mxu0 %v2019
    %v2111 = vpop.f32.mrb[0].mxu0
    %v2112 = vadd.f32 0.0, %v2111
    %v2113 = vpop.f32.mrb[0].mxu0
    %v2114 = vadd.f32 0.0, %v2113
    %2115 = vdwg.mxu0
    %2116 = vmatprep.subr.mxu0 0.0
    %2117 = vmatpush1.msra.mxu0 %v1996
    %2118 = vmatprep.subr.mxu0 0.0
    %2119 = vmatpush1.msra.mxu0 %v1999
    %2120 = vmatprep.subr.mxu0 0.0
    %2121 = vmatpush1.msra.mxu0 %v2002
    %2122 = vmatprep.subr.mxu0 0.0
    %2123 = vmatpush1.msra.mxu0 %v2005
    %2124 = vmatprep.subr.mxu0 0.0
    %2125 = vmatpush1.msra.mxu0 0.0
    %2126 = vmatprep.subr.mxu0 0.0
    %2127 = vmatpush1.msra.mxu0 0.0
    %2128 = vmatprep.subr.mxu0 0.0
    %2129 = vmatpush1.msra.mxu0 0.0
    %2130 = vmatprep.subr.mxu0 0.0
    %2131 = vmatpush1.msra.mxu0 0.0
    %2132 = vmatprep.subr.mxu0 0.0
    %2133 = vmatpush1.msra.mxu0 0.0
    %2134 = vmatprep.subr.mxu0 0.0
    %2135 = vmatpush1.msra.mxu0 0.0
    %2136 = vmatprep.subr.mxu0 0.0
    %2137 = vmatpush1.msra.mxu0 0.0
    %2138 = vmatprep.subr.mxu0 0.0
    %2139 = vmatpush1.msra.mxu0 0.0
    %2140 = vmatprep.subr.mxu0 0.0
    %2141 = vmatpush1.msra.mxu0 0.0
    %2142 = vmatprep.subr.mxu0 0.0
    %2143 = vmatpush1.msra.mxu0 0.0
    %2144 = vmatprep.subr.mxu0 0.0
    %2145 = vmatpush1.msra.mxu0 0.0
    %2146 = vmatprep.subr.mxu0 0.0
    %2147 = vmatpush1.msra.mxu0 0.0
    %2148 = vmatprep.subr.mxu0 0.0
    %2149 = vmatpush1.msra.mxu0 0.0
    %2150 = vmatprep.subr.mxu0 0.0
    %2151 = vmatpush1.msra.mxu0 0.0
    %2152 = vmatprep.subr.mxu0 0.0
    %2153 = vmatpush1.msra.mxu0 0.0
    %2154 = vmatprep.subr.mxu0 0.0
    %2155 = vmatpush1.msra.mxu0 0.0
    %2156 = vmatprep.subr.mxu0 0.0
    %2157 = vmatpush1.msra.mxu0 0.0
    %2158 = vmatprep.subr.mxu0 0.0
    %2159 = vmatpush1.msra.mxu0 0.0
    %2160 = vmatprep.subr.mxu0 0.0
    %2161 = vmatpush1.msra.mxu0 0.0
    %2162 = vmatprep.subr.mxu0 0.0
    %2163 = vmatpush1.msra.mxu0 0.0
    %2164 = vmatprep.subr.mxu0 0.0
    %2165 = vmatpush1.msra.mxu0 0.0
    %2166 = vmatprep.subr.mxu0 0.0
    %2167 = vmatpush1.msra.mxu0 0.0
    %2168 = vmatprep.subr.mxu0 0.0
    %2169 = vmatpush1.msra.mxu0 0.0
    %2170 = vmatprep.subr.mxu0 0.0
    %2171 = vmatpush1.msra.mxu0 0.0
    %2172 = vmatprep.subr.mxu0 0.0
    %2173 = vmatpush1.msra.mxu0 0.0
    %2174 = vmatprep.subr.mxu0 0.0
    %2175 = vmatpush1.msra.mxu0 0.0
    %2176 = vmatprep.subr.mxu0 0.0
    %2177 = vmatpush1.msra.mxu0 0.0
    %2178 = vmatprep.subr.mxu0 0.0
    %2179 = vmatpush1.msra.mxu0 0.0
    %2180 = vmatprep.mubr.f32.mxu0 0.0
    %2181 = vmatmul.mubr.f32.gmra.mrb[0].mxu0 %v2007
    %v2182 = vpop.f32.mrb[0].mxu0
    %v2183 = vadd.f32 0.0, %v2182
    %v2184 = vpop.f32.mrb[0].mxu0
    %2185 = vmatprep.mubr.f32.mxu0 0.0
    %2186 = vmatmul.mubr.f32.gmra.mrb[0].mxu0 %v2010
    %v2187 = vpop.f32.mrb[0].mxu0
    %v2188 = vadd.f32 0.0, %v2187
    %v2189 = vpop.f32.mrb[0].mxu0
    %2190 = vmatprep.mubr.f32.mxu0 0.0
    %2191 = vmatmul.mubr.f32.gmra.mrb[0].mxu0 %v2013
    %v2192 = vpop.f32.mrb[0].mxu0
    %v2193 = vadd.f32 0.0, %v2192
    %v2194 = vpop.f32.mrb[0].mxu0
    %2195 = vmatprep.mubr.f32.mxu0 0.0
    %2196 = vmatmul.mubr.f32.gmra.mrb[0].mxu0 %v2016
    %v2197 = vpop.f32.mrb[0].mxu0
    %v2198 = vadd.f32 0.0, %v2197
    %v2199 = vpop.f32.mrb[0].mxu0
    %2200 = vmatprep.mubr.f32.mxu0 0.0
    %2201 = vmatmul.mubr.f32.gmra.mrb[0].mxu0 %v2019
    %v2202 = vpop.f32.mrb[0].mxu0
    %v2203 = vadd.f32 0.0, %v2202
    %v2204 = vpop.f32.mrb[0].mxu0
    %2205 = vdwg.mxu0
    %s2206 = scalar_lea.vmem %s13, 128
    %v2207 = vld [vmem:[%s2206] sm:$0xff]
    %v2208 = vld [vmem:[%s2206 + $0x8] sm:$0xff]
    %v2209 = vld [vmem:[%s2206 + $0x10] sm:$0xff]
    %v2210 = vld [vmem:[%s2206 + $0x18] sm:$0xff]
    %v2211 = vld [vmem:[%s2206 + $0x20] sm:$0xff]
    %v2212 = vld [vmem:[%s2206 + $0x28] sm:$0xff]
    %v2213 = vld [vmem:[%s2206 + $0x30] sm:$0xff]
    %v2214 = vld [vmem:[%s2206 + $0x38] sm:$0xff]
    %v2215 = vld [vmem:[%s2206 + $0x40] sm:$0xff]
    %v2216 = vld [vmem:[%s2206 + $0x48] sm:$0xff]
    %v2217 = vld [vmem:[%s2206 + $0x50] sm:$0xff]
    %v2218 = vld [vmem:[%s2206 + $0x58] sm:$0xff]
    %v2219 = vld [vmem:[%s2206 + $0x60] sm:$0xff]
    %v2220 = vld [vmem:[%s2206 + $0x68] sm:$0xff]
    %v2221 = vld [vmem:[%s2206 + $0x70] sm:$0xff]
    %v2222 = vld [vmem:[%s2206 + $0x78] sm:$0xff]
    %s2223 = scalar_lea.vmem %s14, 1
    %v2224 = vld [vmem:[%s2223] sm:$0x1]
    %v2226 = vsel %vm693, %v2088, 0
    %v2229 = vsel %vm693, %v2094, 0
    %v2232 = vsel %vm693, %v2100, 0
    %v2235 = vsel %vm693, %v2106, 0
    %v2238 = vsel %vm693, %v2112, 0
    %v2241 = vsel %vm693, %v2090, 0
    %v2244 = vsel %vm693, %v2096, 0
    %v2247 = vsel %vm693, %v2102, 0
    %v2250 = vsel %vm693, %v2108, 0
    %v2253 = vsel %vm693, %v2114, 0
    %2255 = vmatprep.subr.mxu0 0.0
    %2256 = vmatpush1.xpose.msra.mxu0 %v2241
    %2257 = vmatprep.subr.mxu0 0.0
    %2258 = vmatpush1.xpose.msra.mxu0 %v2244
    %2259 = vmatprep.subr.mxu0 0.0
    %2260 = vmatpush1.xpose.msra.mxu0 %v2247
    %2261 = vmatprep.subr.mxu0 0.0
    %2262 = vmatpush1.xpose.msra.mxu0 %v2250
    %2263 = vmatprep.subr.mxu0 0.0
    %2264 = vmatpush1.xpose.msra.mxu0 %v2253
    %2265 = vmatprep.subr.mxu0 0.0
    %2266 = vmatpush1.xpose.msra.mxu0 0.0
    %2267 = vmatprep.subr.mxu0 0.0
    %2268 = vmatpush1.xpose.msra.mxu0 0.0
    %2269 = vmatprep.subr.mxu0 0.0
    %2270 = vmatpush1.xpose.msra.mxu0 0.0
    %2271 = vmatprep.subr.mxu0 0.0
    %2272 = vmatpush1.xpose.msra.mxu0 0.0
    %2273 = vmatprep.subr.mxu0 0.0
    %2274 = vmatpush1.xpose.msra.mxu0 0.0
    %2275 = vmatprep.subr.mxu0 0.0
    %2276 = vmatpush1.xpose.msra.mxu0 0.0
    %2277 = vmatprep.subr.mxu0 0.0
    %2278 = vmatpush1.xpose.msra.mxu0 0.0
    %2279 = vmatprep.subr.mxu0 0.0
    %2280 = vmatpush1.xpose.msra.mxu0 0.0
    %2281 = vmatprep.subr.mxu0 0.0
    %2282 = vmatpush1.xpose.msra.mxu0 0.0
    %2283 = vmatprep.subr.mxu0 0.0
    %2284 = vmatpush1.xpose.msra.mxu0 0.0
    %2285 = vmatprep.subr.mxu0 0.0
    %2286 = vmatpush1.xpose.msra.mxu0 0.0
    %2287 = vmatprep.subr.mxu0 0.0
    %2288 = vmatpush1.xpose.msra.mxu0 0.0
    %2289 = vmatprep.subr.mxu0 0.0
    %2290 = vmatpush1.xpose.msra.mxu0 0.0
    %2291 = vmatprep.subr.mxu0 0.0
    %2292 = vmatpush1.xpose.msra.mxu0 0.0
    %2293 = vmatprep.subr.mxu0 0.0
    %2294 = vmatpush1.xpose.msra.mxu0 0.0
    %2295 = vmatprep.subr.mxu0 0.0
    %2296 = vmatpush1.xpose.msra.mxu0 0.0
    %2297 = vmatprep.subr.mxu0 0.0
    %2298 = vmatpush1.xpose.msra.mxu0 0.0
    %2299 = vmatprep.subr.mxu0 0.0
    %2300 = vmatpush1.xpose.msra.mxu0 0.0
    %2301 = vmatprep.subr.mxu0 0.0
    %2302 = vmatpush1.xpose.msra.mxu0 0.0
    %2303 = vmatprep.subr.mxu0 0.0
    %2304 = vmatpush1.xpose.msra.mxu0 0.0
    %2305 = vmatprep.subr.mxu0 0.0
    %2306 = vmatpush1.xpose.msra.mxu0 0.0
    %2307 = vmatprep.subr.mxu0 0.0
    %2308 = vmatpush1.xpose.msra.mxu0 0.0
    %2309 = vmatprep.subr.mxu0 0.0
    %2310 = vmatpush1.xpose.msra.mxu0 0.0
    %2311 = vmatprep.subr.mxu0 0.0
    %2312 = vmatpush1.xpose.msra.mxu0 0.0
    %2313 = vmatprep.subr.mxu0 0.0
    %2314 = vmatpush1.xpose.msra.mxu0 0.0
    %2315 = vmatprep.subr.mxu0 0.0
    %2316 = vmatpush1.xpose.msra.mxu0 0.0
    %2317 = vmatprep.subr.mxu0 0.0
    %2318 = vmatpush1.xpose.msra.mxu0 0.0
    %2319 = vmatprep.mubr.f32.mxu0 0.0
    %2320 = vmatmul.mubr.f32.gmra.mrb[0].mxu0 %v2226
    %v2321 = vpop.f32.mrb[0].mxu0
    %v2322 = vadd.f32 0.0, %v2321
    %v2323 = vpop.f32.mrb[0].mxu0
    %2324 = vmatprep.mubr.f32.mxu0 0.0
    %2325 = vmatmul.mubr.f32.gmra.mrb[0].mxu0 %v2229
    %v2326 = vpop.f32.mrb[0].mxu0
    %v2327 = vadd.f32 0.0, %v2326
    %v2328 = vpop.f32.mrb[0].mxu0
    %2329 = vmatprep.mubr.f32.mxu0 0.0
    %2330 = vmatmul.mubr.f32.gmra.mrb[0].mxu0 %v2232
    %v2331 = vpop.f32.mrb[0].mxu0
    %v2332 = vadd.f32 0.0, %v2331
    %v2333 = vpop.f32.mrb[0].mxu0
    %2334 = vmatprep.mubr.f32.mxu0 0.0
    %2335 = vmatmul.mubr.f32.gmra.mrb[0].mxu0 %v2235
    %v2336 = vpop.f32.mrb[0].mxu0
    %v2337 = vadd.f32 0.0, %v2336
    %v2338 = vpop.f32.mrb[0].mxu0
    %2339 = vmatprep.mubr.f32.mxu0 0.0
    %2340 = vmatmul.mubr.f32.gmra.mrb[0].mxu0 %v2238
    %v2341 = vpop.f32.mrb[0].mxu0
    %v2342 = vadd.f32 0.0, %v2341
    %v2343 = vpop.f32.mrb[0].mxu0
    %2344 = vdwg.mxu0
    %v2345 = vmul.f32 %v2322, 0.125
    %v2346 = vmul.f32 %v2327, 0.125
    %v2347 = vmul.f32 %v2332, 0.125
    %v2348 = vmul.f32 %v2337, 0.125
    %v2349 = vmul.f32 %v2342, 0.125
    %v2350 = vadd.f32 %v2345, %v369
    %v2351 = vadd.f32 %v2346, %v370
    %v2352 = vadd.f32 %v2347, %v371
    %v2353 = vadd.f32 %v2348, %v372
    %v2354 = vadd.f32 %v2349, %v373
    %v2355 = vsel %vm824, %v2350, -inf
    %2356 = vmax.xlane.f32.xlu0 %v2355
    %v2357 = vpop.xlane.xlu0 %2356
    %v2358 = vsel %vm824, %v2351, -inf
    %2359 = vmax.xlane.f32.xlu0 %v2358
    %v2360 = vpop.xlane.xlu0 %2359
    %v2361 = vsel %vm824, %v2352, -inf
    %2362 = vmax.xlane.f32.xlu0 %v2361
    %v2363 = vpop.xlane.xlu0 %2362
    %v2364 = vsel %vm824, %v2353, -inf
    %2365 = vmax.xlane.f32.xlu0 %v2364
    %v2366 = vpop.xlane.xlu0 %2365
    %v2367 = vsel %vm837, %v2354, -inf
    %2368 = vmax.xlane.f32.xlu0 %v2367
    %v2369 = vpop.xlane.xlu0 %2368
    %v2370 = vsub.f32 %v2350, %v2357
    %v2371 = vsub.f32 %v2351, %v2360
    %v2372 = vsub.f32 %v2352, %v2363
    %v2373 = vsub.f32 %v2353, %v2366
    %v2374 = vsub.f32 %v2354, %v2369
    %v2375 = vmul.f32 %v2370, 1.442695
    %v2376 = vpow.pop %v2375
    %v2377 = vmul.f32 %v2371, 1.442695
    %v2378 = vpow.pop %v2377
    %v2379 = vmul.f32 %v2372, 1.442695
    %v2380 = vpow.pop %v2379
    %v2381 = vmul.f32 %v2373, 1.442695
    %v2382 = vpow.pop %v2381
    %v2383 = vmul.f32 %v2374, 1.442695
    %v2384 = vpow.pop %v2383
    %v2385 = vsel %vm824, %v2376, 0.0
    %2386 = vadd.xlane.f32.xlu0 %v2385
    %v2387 = vpop.xlane.xlu0 %2386
    %v2388 = vsel %vm824, %v2378, 0.0
    %2389 = vadd.xlane.f32.xlu0 %v2388
    %v2390 = vpop.xlane.xlu0 %2389
    %v2391 = vsel %vm824, %v2380, 0.0
    %2392 = vadd.xlane.f32.xlu0 %v2391
    %v2393 = vpop.xlane.xlu0 %2392
    %v2394 = vsel %vm824, %v2382, 0.0
    %2395 = vadd.xlane.f32.xlu0 %v2394
    %v2396 = vpop.xlane.xlu0 %2395
    %v2397 = vsel %vm837, %v2384, 0.0
    %2398 = vadd.xlane.f32.xlu0 %v2397
    %v2399 = vpop.xlane.xlu0 %2398
    %v2400 = vrcp.pop %v2387
    %v2401 = vrcp.pop %v2390
    %v2402 = vrcp.pop %v2393
    %v2403 = vrcp.pop %v2396
    %v2404 = vrcp.pop %v2399
    %v2405 = vmul.f32 %v2376, %v2400
    %v2406 = vmul.f32 %v2378, %v2401
    %v2407 = vmul.f32 %v2380, %v2402
    %v2408 = vmul.f32 %v2382, %v2403
    %v2409 = vmul.f32 %v2384, %v2404
    %v2411 = vsel %vm824, %v2405, 0
    %v2414 = vsel %vm824, %v2406, 0
    %v2417 = vsel %vm824, %v2407, 0
    %v2420 = vsel %vm824, %v2408, 0
    %v2423 = vsel %vm824, %v2409, 0
    %v2426 = vsel %vm896, %v2203, 0
    %2428 = vmatprep.subr.mxu0 0.0
    %2429 = vmatpush1.msra.mxu0 %v2183
    %2430 = vmatprep.subr.mxu0 0.0
    %2431 = vmatpush1.msra.mxu0 %v2188
    %2432 = vmatprep.subr.mxu0 0.0
    %2433 = vmatpush1.msra.mxu0 %v2193
    %2434 = vmatprep.subr.mxu0 0.0
    %2435 = vmatpush1.msra.mxu0 %v2198
    %2436 = vmatprep.subr.mxu0 0.0
    %2437 = vmatpush1.msra.mxu0 %v2426
    %2438 = vmatprep.subr.mxu0 0.0
    %2439 = vmatpush1.msra.mxu0 0.0
    %2440 = vmatprep.subr.mxu0 0.0
    %2441 = vmatpush1.msra.mxu0 0.0
    %2442 = vmatprep.subr.mxu0 0.0
    %2443 = vmatpush1.msra.mxu0 0.0
    %2444 = vmatprep.subr.mxu0 0.0
    %2445 = vmatpush1.msra.mxu0 0.0
    %2446 = vmatprep.subr.mxu0 0.0
    %2447 = vmatpush1.msra.mxu0 0.0
    %2448 = vmatprep.subr.mxu0 0.0
    %2449 = vmatpush1.msra.mxu0 0.0
    %2450 = vmatprep.subr.mxu0 0.0
    %2451 = vmatpush1.msra.mxu0 0.0
    %2452 = vmatprep.subr.mxu0 0.0
    %2453 = vmatpush1.msra.mxu0 0.0
    %2454 = vmatprep.subr.mxu0 0.0
    %2455 = vmatpush1.msra.mxu0 0.0
    %2456 = vmatprep.subr.mxu0 0.0
    %2457 = vmatpush1.msra.mxu0 0.0
    %2458 = vmatprep.subr.mxu0 0.0
    %2459 = vmatpush1.msra.mxu0 0.0
    %2460 = vmatprep.subr.mxu0 0.0
    %2461 = vmatpush1.msra.mxu0 0.0
    %2462 = vmatprep.subr.mxu0 0.0
    %2463 = vmatpush1.msra.mxu0 0.0
    %2464 = vmatprep.subr.mxu0 0.0
    %2465 = vmatpush1.msra.mxu0 0.0
    %2466 = vmatprep.subr.mxu0 0.0
    %2467 = vmatpush1.msra.mxu0 0.0
    %2468 = vmatprep.subr.mxu0 0.0
    %2469 = vmatpush1.msra.mxu0 0.0
    %2470 = vmatprep.subr.mxu0 0.0
    %2471 = vmatpush1.msra.mxu0 0.0
    %2472 = vmatprep.subr.mxu0 0.0
    %2473 = vmatpush1.msra.mxu0 0.0
    %2474 = vmatprep.subr.mxu0 0.0
    %2475 = vmatpush1.msra.mxu0 0.0
    %2476 = vmatprep.subr.mxu0 0.0
    %2477 = vmatpush1.msra.mxu0 0.0
    %2478 = vmatprep.subr.mxu0 0.0
    %2479 = vmatpush1.msra.mxu0 0.0
    %2480 = vmatprep.subr.mxu0 0.0
    %2481 = vmatpush1.msra.mxu0 0.0
    %2482 = vmatprep.subr.mxu0 0.0
    %2483 = vmatpush1.msra.mxu0 0.0
    %2484 = vmatprep.subr.mxu0 0.0
    %2485 = vmatpush1.msra.mxu0 0.0
    %2486 = vmatprep.subr.mxu0 0.0
    %2487 = vmatpush1.msra.mxu0 0.0
    %2488 = vmatprep.subr.mxu0 0.0
    %2489 = vmatpush1.msra.mxu0 0.0
    %2490 = vmatprep.subr.mxu0 0.0
    %2491 = vmatpush1.msra.mxu0 0.0
    %2492 = vmatprep.mubr.f32.mxu0 0.0
    %2493 = vmatmul.mubr.f32.gmra.mrb[0].mxu0 %v2411
    %v2494 = vpop.f32.mrb[0].mxu0
    %v2495 = vadd.f32 0.0, %v2494
    %v2496 = vpop.f32.mrb[0].mxu0
    %2497 = vmatprep.mubr.f32.mxu0 0.0
    %2498 = vmatmul.mubr.f32.gmra.mrb[0].mxu0 %v2414
    %v2499 = vpop.f32.mrb[0].mxu0
    %v2500 = vadd.f32 0.0, %v2499
    %v2501 = vpop.f32.mrb[0].mxu0
    %2502 = vmatprep.mubr.f32.mxu0 0.0
    %2503 = vmatmul.mubr.f32.gmra.mrb[0].mxu0 %v2417
    %v2504 = vpop.f32.mrb[0].mxu0
    %v2505 = vadd.f32 0.0, %v2504
    %v2506 = vpop.f32.mrb[0].mxu0
    %2507 = vmatprep.mubr.f32.mxu0 0.0
    %2508 = vmatmul.mubr.f32.gmra.mrb[0].mxu0 %v2420
    %v2509 = vpop.f32.mrb[0].mxu0
    %v2510 = vadd.f32 0.0, %v2509
    %v2511 = vpop.f32.mrb[0].mxu0
    %2512 = vmatprep.mubr.f32.mxu0 0.0
    %2513 = vmatmul.mubr.f32.gmra.mrb[0].mxu0 %v2423
    %v2514 = vpop.f32.mrb[0].mxu0
    %v2515 = vadd.f32 0.0, %v2514
    %v2516 = vpop.f32.mrb[0].mxu0
    %2517 = vdwg.mxu0
    %v2519 = vsel %vm693, %v2495, 0
    %v2522 = vsel %vm693, %v2500, 0
    %v2525 = vsel %vm693, %v2505, 0
    %v2528 = vsel %vm693, %v2510, 0
    %v2531 = vsel %vm693, %v2515, 0
    %2533 = vmatprep.subr.mxu0 0.0
    %2534 = vmatpush1.msra.mxu0 %v2207
    %2535 = vmatprep.subr.mxu0 0.0
    %2536 = vmatpush1.msra.mxu0 %v2208
    %2537 = vmatprep.subr.mxu0 0.0
    %2538 = vmatpush1.msra.mxu0 %v2209
    %2539 = vmatprep.subr.mxu0 0.0
    %2540 = vmatpush1.msra.mxu0 %v2210
    %2541 = vmatprep.subr.mxu0 0.0
    %2542 = vmatpush1.msra.mxu0 %v2211
    %2543 = vmatprep.subr.mxu0 0.0
    %2544 = vmatpush1.msra.mxu0 %v2212
    %2545 = vmatprep.subr.mxu0 0.0
    %2546 = vmatpush1.msra.mxu0 %v2213
    %2547 = vmatprep.subr.mxu0 0.0
    %2548 = vmatpush1.msra.mxu0 %v2214
    %2549 = vmatprep.subr.mxu0 0.0
    %2550 = vmatpush1.msra.mxu0 0.0
    %2551 = vmatprep.subr.mxu0 0.0
    %2552 = vmatpush1.msra.mxu0 0.0
    %2553 = vmatprep.subr.mxu0 0.0
    %2554 = vmatpush1.msra.mxu0 0.0
    %2555 = vmatprep.subr.mxu0 0.0
    %2556 = vmatpush1.msra.mxu0 0.0
    %2557 = vmatprep.subr.mxu0 0.0
    %2558 = vmatpush1.msra.mxu0 0.0
    %2559 = vmatprep.subr.mxu0 0.0
    %2560 = vmatpush1.msra.mxu0 0.0
    %2561 = vmatprep.subr.mxu0 0.0
    %2562 = vmatpush1.msra.mxu0 0.0
    %2563 = vmatprep.subr.mxu0 0.0
    %2564 = vmatpush1.msra.mxu0 0.0
    %2565 = vmatprep.subr.mxu0 0.0
    %2566 = vmatpush1.msra.mxu0 0.0
    %2567 = vmatprep.subr.mxu0 0.0
    %2568 = vmatpush1.msra.mxu0 0.0
    %2569 = vmatprep.subr.mxu0 0.0
    %2570 = vmatpush1.msra.mxu0 0.0
    %2571 = vmatprep.subr.mxu0 0.0
    %2572 = vmatpush1.msra.mxu0 0.0
    %2573 = vmatprep.subr.mxu0 0.0
    %2574 = vmatpush1.msra.mxu0 0.0
    %2575 = vmatprep.subr.mxu0 0.0
    %2576 = vmatpush1.msra.mxu0 0.0
    %2577 = vmatprep.subr.mxu0 0.0
    %2578 = vmatpush1.msra.mxu0 0.0
    %2579 = vmatprep.subr.mxu0 0.0
    %2580 = vmatpush1.msra.mxu0 0.0
    %2581 = vmatprep.subr.mxu0 0.0
    %2582 = vmatpush1.msra.mxu0 0.0
    %2583 = vmatprep.subr.mxu0 0.0
    %2584 = vmatpush1.msra.mxu0 0.0
    %2585 = vmatprep.subr.mxu0 0.0
    %2586 = vmatpush1.msra.mxu0 0.0
    %2587 = vmatprep.subr.mxu0 0.0
    %2588 = vmatpush1.msra.mxu0 0.0
    %2589 = vmatprep.subr.mxu0 0.0
    %2590 = vmatpush1.msra.mxu0 0.0
    %2591 = vmatprep.subr.mxu0 0.0
    %2592 = vmatpush1.msra.mxu0 0.0
    %2593 = vmatprep.subr.mxu0 0.0
    %2594 = vmatpush1.msra.mxu0 0.0
    %2595 = vmatprep.subr.mxu0 0.0
    %2596 = vmatpush1.msra.mxu0 0.0
    %2597 = vmatprep.mubr.f32.mxu0 0.0
    %2598 = vmatmul.mubr.f32.gmra.mrb[0].mxu0 %v2519
    %v2599 = vpop.f32.mrb[0].mxu0
    %v2600 = vadd.f32 0.0, %v2599
    %v2601 = vpop.f32.mrb[0].mxu0
    %2602 = vmatprep.mubr.f32.mxu0 0.0
    %2603 = vmatmul.mubr.f32.gmra.mrb[0].mxu0 %v2522
    %v2604 = vpop.f32.mrb[0].mxu0
    %v2605 = vadd.f32 0.0, %v2604
    %v2606 = vpop.f32.mrb[0].mxu0
    %2607 = vmatprep.mubr.f32.mxu0 0.0
    %2608 = vmatmul.mubr.f32.gmra.mrb[0].mxu0 %v2525
    %v2609 = vpop.f32.mrb[0].mxu0
    %v2610 = vadd.f32 0.0, %v2609
    %v2611 = vpop.f32.mrb[0].mxu0
    %2612 = vmatprep.mubr.f32.mxu0 0.0
    %2613 = vmatmul.mubr.f32.gmra.mrb[0].mxu0 %v2528
    %v2614 = vpop.f32.mrb[0].mxu0
    %v2615 = vadd.f32 0.0, %v2614
    %v2616 = vpop.f32.mrb[0].mxu0
    %2617 = vmatprep.mubr.f32.mxu0 0.0
    %2618 = vmatmul.mubr.f32.gmra.mrb[0].mxu0 %v2531
    %v2619 = vpop.f32.mrb[0].mxu0
    %v2620 = vadd.f32 0.0, %v2619
    %v2621 = vpop.f32.mrb[0].mxu0
    %2622 = vdwg.mxu0
    %v2624 = vlaneseq
    %v2625 = vshrl.u32 %v2624, 7
    %v2626 = vsub.s32 0, %v2625
    %v2627 = vrot.slane %v2224, %v2626
    %v2629 = vadd.f32 %v2627, %v2600
    %v2630 = vadd.f32 %v2627, %v2605
    %v2631 = vadd.f32 %v2627, %v2610
    %v2632 = vadd.f32 %v2627, %v2615
    %v2633 = vadd.f32 %v2627, %v2620
    %2634 = vrot.lane.b32.xlu0 %v2088, 64
    %v2635 = vpop.permute.xlu0 %2634
    %2636 = vrot.lane.b32.xlu0 %v2094, 64
    %v2637 = vpop.permute.xlu0 %2636
    %2638 = vrot.lane.b32.xlu0 %v2100, 64
    %v2639 = vpop.permute.xlu0 %2638
    %2640 = vrot.lane.b32.xlu0 %v2106, 64
    %v2641 = vpop.permute.xlu0 %2640
    %2642 = vrot.lane.b32.xlu0 %v2112, 64
    %v2643 = vpop.permute.xlu0 %2642
    %2644 = vrot.lane.b32.xlu0 %v2090, 64
    %v2645 = vpop.permute.xlu0 %2644
    %2646 = vrot.lane.b32.xlu0 %v2096, 64
    %v2647 = vpop.permute.xlu0 %2646
    %2648 = vrot.lane.b32.xlu0 %v2102, 64
    %v2649 = vpop.permute.xlu0 %2648
    %2650 = vrot.lane.b32.xlu0 %v2108, 64
    %v2651 = vpop.permute.xlu0 %2650
    %2652 = vrot.lane.b32.xlu0 %v2114, 64
    %v2653 = vpop.permute.xlu0 %2652
    %v2654 = vsel %vm693, %v2635, 0
    %v2656 = vsel %vm693, %v2637, 0
    %v2658 = vsel %vm693, %v2639, 0
    %v2660 = vsel %vm693, %v2641, 0
    %v2662 = vsel %vm693, %v2643, 0
    %v2664 = vsel %vm693, %v2645, 0
    %v2666 = vsel %vm693, %v2647, 0
    %v2668 = vsel %vm693, %v2649, 0
    %v2670 = vsel %vm693, %v2651, 0
    %v2672 = vsel %vm693, %v2653, 0
    %2674 = vmatprep.subr.mxu0 0.0
    %2675 = vmatpush1.xpose.msra.mxu0 %v2664
    %2676 = vmatprep.subr.mxu0 0.0
    %2677 = vmatpush1.xpose.msra.mxu0 %v2666
    %2678 = vmatprep.subr.mxu0 0.0
    %2679 = vmatpush1.xpose.msra.mxu0 %v2668
    %2680 = vmatprep.subr.mxu0 0.0
    %2681 = vmatpush1.xpose.msra.mxu0 %v2670
    %2682 = vmatprep.subr.mxu0 0.0
    %2683 = vmatpush1.xpose.msra.mxu0 %v2672
    %2684 = vmatprep.subr.mxu0 0.0
    %2685 = vmatpush1.xpose.msra.mxu0 0.0
    %2686 = vmatprep.subr.mxu0 0.0
    %2687 = vmatpush1.xpose.msra.mxu0 0.0
    %2688 = vmatprep.subr.mxu0 0.0
    %2689 = vmatpush1.xpose.msra.mxu0 0.0
    %2690 = vmatprep.subr.mxu0 0.0
    %2691 = vmatpush1.xpose.msra.mxu0 0.0
    %2692 = vmatprep.subr.mxu0 0.0
    %2693 = vmatpush1.xpose.msra.mxu0 0.0
    %2694 = vmatprep.subr.mxu0 0.0
    %2695 = vmatpush1.xpose.msra.mxu0 0.0
    %2696 = vmatprep.subr.mxu0 0.0
    %2697 = vmatpush1.xpose.msra.mxu0 0.0
    %2698 = vmatprep.subr.mxu0 0.0
    %2699 = vmatpush1.xpose.msra.mxu0 0.0
    %2700 = vmatprep.subr.mxu0 0.0
    %2701 = vmatpush1.xpose.msra.mxu0 0.0
    %2702 = vmatprep.subr.mxu0 0.0
    %2703 = vmatpush1.xpose.msra.mxu0 0.0
    %2704 = vmatprep.subr.mxu0 0.0
    %2705 = vmatpush1.xpose.msra.mxu0 0.0
    %2706 = vmatprep.subr.mxu0 0.0
    %2707 = vmatpush1.xpose.msra.mxu0 0.0
    %2708 = vmatprep.subr.mxu0 0.0
    %2709 = vmatpush1.xpose.msra.mxu0 0.0
    %2710 = vmatprep.subr.mxu0 0.0
    %2711 = vmatpush1.xpose.msra.mxu0 0.0
    %2712 = vmatprep.subr.mxu0 0.0
    %2713 = vmatpush1.xpose.msra.mxu0 0.0
    %2714 = vmatprep.subr.mxu0 0.0
    %2715 = vmatpush1.xpose.msra.mxu0 0.0
    %2716 = vmatprep.subr.mxu0 0.0
    %2717 = vmatpush1.xpose.msra.mxu0 0.0
    %2718 = vmatprep.subr.mxu0 0.0
    %2719 = vmatpush1.xpose.msra.mxu0 0.0
    %2720 = vmatprep.subr.mxu0 0.0
    %2721 = vmatpush1.xpose.msra.mxu0 0.0
    %2722 = vmatprep.subr.mxu0 0.0
    %2723 = vmatpush1.xpose.msra.mxu0 0.0
    %2724 = vmatprep.subr.mxu0 0.0
    %2725 = vmatpush1.xpose.msra.mxu0 0.0
    %2726 = vmatprep.subr.mxu0 0.0
    %2727 = vmatpush1.xpose.msra.mxu0 0.0
    %2728 = vmatprep.subr.mxu0 0.0
    %2729 = vmatpush1.xpose.msra.mxu0 0.0
    %2730 = vmatprep.subr.mxu0 0.0
    %2731 = vmatpush1.xpose.msra.mxu0 0.0
    %2732 = vmatprep.subr.mxu0 0.0
    %2733 = vmatpush1.xpose.msra.mxu0 0.0
    %2734 = vmatprep.subr.mxu0 0.0
    %2735 = vmatpush1.xpose.msra.mxu0 0.0
    %2736 = vmatprep.subr.mxu0 0.0
    %2737 = vmatpush1.xpose.msra.mxu0 0.0
    %2738 = vmatprep.mubr.f32.mxu0 0.0
    %2739 = vmatmul.mubr.f32.gmra.mrb[0].mxu0 %v2654
    %v2740 = vpop.f32.mrb[0].mxu0
    %v2741 = vadd.f32 0.0, %v2740
    %v2742 = vpop.f32.mrb[0].mxu0
    %2743 = vmatprep.mubr.f32.mxu0 0.0
    %2744 = vmatmul.mubr.f32.gmra.mrb[0].mxu0 %v2656
    %v2745 = vpop.f32.mrb[0].mxu0
    %v2746 = vadd.f32 0.0, %v2745
    %v2747 = vpop.f32.mrb[0].mxu0
    %2748 = vmatprep.mubr.f32.mxu0 0.0
    %2749 = vmatmul.mubr.f32.gmra.mrb[0].mxu0 %v2658
    %v2750 = vpop.f32.mrb[0].mxu0
    %v2751 = vadd.f32 0.0, %v2750
    %v2752 = vpop.f32.mrb[0].mxu0
    %2753 = vmatprep.mubr.f32.mxu0 0.0
    %2754 = vmatmul.mubr.f32.gmra.mrb[0].mxu0 %v2660
    %v2755 = vpop.f32.mrb[0].mxu0
    %v2756 = vadd.f32 0.0, %v2755
    %v2757 = vpop.f32.mrb[0].mxu0
    %2758 = vmatprep.mubr.f32.mxu0 0.0
    %2759 = vmatmul.mubr.f32.gmra.mrb[0].mxu0 %v2662
    %v2760 = vpop.f32.mrb[0].mxu0
    %v2761 = vadd.f32 0.0, %v2760
    %v2762 = vpop.f32.mrb[0].mxu0
    %2763 = vdwg.mxu0
    %v2764 = vmul.f32 %v2741, 0.125
    %v2765 = vmul.f32 %v2746, 0.125
    %v2766 = vmul.f32 %v2751, 0.125
    %v2767 = vmul.f32 %v2756, 0.125
    %v2768 = vmul.f32 %v2761, 0.125
    %v2769 = vadd.f32 %v2764, %v369
    %v2770 = vadd.f32 %v2765, %v370
    %v2771 = vadd.f32 %v2766, %v371
    %v2772 = vadd.f32 %v2767, %v372
    %v2773 = vadd.f32 %v2768, %v373
    %v2774 = vsel %vm824, %v2769, -inf
    %2775 = vmax.xlane.f32.xlu0 %v2774
    %v2776 = vpop.xlane.xlu0 %2775
    %v2777 = vsel %vm824, %v2770, -inf
    %2778 = vmax.xlane.f32.xlu0 %v2777
    %v2779 = vpop.xlane.xlu0 %2778
    %v2780 = vsel %vm824, %v2771, -inf
    %2781 = vmax.xlane.f32.xlu0 %v2780
    %v2782 = vpop.xlane.xlu0 %2781
    %v2783 = vsel %vm824, %v2772, -inf
    %2784 = vmax.xlane.f32.xlu0 %v2783
    %v2785 = vpop.xlane.xlu0 %2784
    %v2786 = vsel %vm837, %v2773, -inf
    %2787 = vmax.xlane.f32.xlu0 %v2786
    %v2788 = vpop.xlane.xlu0 %2787
    %v2789 = vsub.f32 %v2769, %v2776
    %v2790 = vsub.f32 %v2770, %v2779
    %v2791 = vsub.f32 %v2771, %v2782
    %v2792 = vsub.f32 %v2772, %v2785
    %v2793 = vsub.f32 %v2773, %v2788
    %v2794 = vmul.f32 %v2789, 1.442695
    %v2795 = vpow.pop %v2794
    %v2796 = vmul.f32 %v2790, 1.442695
    %v2797 = vpow.pop %v2796
    %v2798 = vmul.f32 %v2791, 1.442695
    %v2799 = vpow.pop %v2798
    %v2800 = vmul.f32 %v2792, 1.442695
    %v2801 = vpow.pop %v2800
    %v2802 = vmul.f32 %v2793, 1.442695
    %v2803 = vpow.pop %v2802
    %v2804 = vsel %vm824, %v2795, 0.0
    %2805 = vadd.xlane.f32.xlu0 %v2804
    %v2806 = vpop.xlane.xlu0 %2805
    %v2807 = vsel %vm824, %v2797, 0.0
    %2808 = vadd.xlane.f32.xlu0 %v2807
    %v2809 = vpop.xlane.xlu0 %2808
    %v2810 = vsel %vm824, %v2799, 0.0
    %2811 = vadd.xlane.f32.xlu0 %v2810
    %v2812 = vpop.xlane.xlu0 %2811
    %v2813 = vsel %vm824, %v2801, 0.0
    %2814 = vadd.xlane.f32.xlu0 %v2813
    %v2815 = vpop.xlane.xlu0 %2814
    %v2816 = vsel %vm837, %v2803, 0.0
    %2817 = vadd.xlane.f32.xlu0 %v2816
    %v2818 = vpop.xlane.xlu0 %2817
    %v2819 = vrcp.pop %v2806
    %v2820 = vrcp.pop %v2809
    %v2821 = vrcp.pop %v2812
    %v2822 = vrcp.pop %v2815
    %v2823 = vrcp.pop %v2818
    %v2824 = vmul.f32 %v2795, %v2819
    %v2825 = vmul.f32 %v2797, %v2820
    %v2826 = vmul.f32 %v2799, %v2821
    %v2827 = vmul.f32 %v2801, %v2822
    %v2828 = vmul.f32 %v2803, %v2823
    %2833 = vrot.lane.b32.xlu0 %v2183, 64
    %v2834 = vpop.permute.xlu0 %2833
    %2835 = vrot.lane.b32.xlu0 %v2188, 64
    %v2836 = vpop.permute.xlu0 %2835
    %2837 = vrot.lane.b32.xlu0 %v2193, 64
    %v2838 = vpop.permute.xlu0 %2837
    %2839 = vrot.lane.b32.xlu0 %v2198, 64
    %v2840 = vpop.permute.xlu0 %2839
    %2841 = vrot.lane.b32.xlu0 %v2203, 64
    %v2842 = vpop.permute.xlu0 %2841
    %v2848 = vsel %vm824, %v2824, 0
    %v2851 = vsel %vm824, %v2825, 0
    %v2854 = vsel %vm824, %v2826, 0
    %v2857 = vsel %vm824, %v2827, 0
    %v2860 = vsel %vm824, %v2828, 0
    %v2862 = vsel %vm896, %v2842, 0
    %2864 = vmatprep.subr.mxu0 0.0
    %2865 = vmatpush1.msra.mxu0 %v2834
    %2866 = vmatprep.subr.mxu0 0.0
    %2867 = vmatpush1.msra.mxu0 %v2836
    %2868 = vmatprep.subr.mxu0 0.0
    %2869 = vmatpush1.msra.mxu0 %v2838
    %2870 = vmatprep.subr.mxu0 0.0
    %2871 = vmatpush1.msra.mxu0 %v2840
    %2872 = vmatprep.subr.mxu0 0.0
    %2873 = vmatpush1.msra.mxu0 %v2862
    %2874 = vmatprep.subr.mxu0 0.0
    %2875 = vmatpush1.msra.mxu0 0.0
    %2876 = vmatprep.subr.mxu0 0.0
    %2877 = vmatpush1.msra.mxu0 0.0
    %2878 = vmatprep.subr.mxu0 0.0
    %2879 = vmatpush1.msra.mxu0 0.0
    %2880 = vmatprep.subr.mxu0 0.0
    %2881 = vmatpush1.msra.mxu0 0.0
    %2882 = vmatprep.subr.mxu0 0.0
    %2883 = vmatpush1.msra.mxu0 0.0
    %2884 = vmatprep.subr.mxu0 0.0
    %2885 = vmatpush1.msra.mxu0 0.0
    %2886 = vmatprep.subr.mxu0 0.0
    %2887 = vmatpush1.msra.mxu0 0.0
    %2888 = vmatprep.subr.mxu0 0.0
    %2889 = vmatpush1.msra.mxu0 0.0
    %2890 = vmatprep.subr.mxu0 0.0
    %2891 = vmatpush1.msra.mxu0 0.0
    %2892 = vmatprep.subr.mxu0 0.0
    %2893 = vmatpush1.msra.mxu0 0.0
    %2894 = vmatprep.subr.mxu0 0.0
    %2895 = vmatpush1.msra.mxu0 0.0
    %2896 = vmatprep.subr.mxu0 0.0
    %2897 = vmatpush1.msra.mxu0 0.0
    %2898 = vmatprep.subr.mxu0 0.0
    %2899 = vmatpush1.msra.mxu0 0.0
    %2900 = vmatprep.subr.mxu0 0.0
    %2901 = vmatpush1.msra.mxu0 0.0
    %2902 = vmatprep.subr.mxu0 0.0
    %2903 = vmatpush1.msra.mxu0 0.0
    %2904 = vmatprep.subr.mxu0 0.0
    %2905 = vmatpush1.msra.mxu0 0.0
    %2906 = vmatprep.subr.mxu0 0.0
    %2907 = vmatpush1.msra.mxu0 0.0
    %2908 = vmatprep.subr.mxu0 0.0
    %2909 = vmatpush1.msra.mxu0 0.0
    %2910 = vmatprep.subr.mxu0 0.0
    %2911 = vmatpush1.msra.mxu0 0.0
    %2912 = vmatprep.subr.mxu0 0.0
    %2913 = vmatpush1.msra.mxu0 0.0
    %2914 = vmatprep.subr.mxu0 0.0
    %2915 = vmatpush1.msra.mxu0 0.0
    %2916 = vmatprep.subr.mxu0 0.0
    %2917 = vmatpush1.msra.mxu0 0.0
    %2918 = vmatprep.subr.mxu0 0.0
    %2919 = vmatpush1.msra.mxu0 0.0
    %2920 = vmatprep.subr.mxu0 0.0
    %2921 = vmatpush1.msra.mxu0 0.0
    %2922 = vmatprep.subr.mxu0 0.0
    %2923 = vmatpush1.msra.mxu0 0.0
    %2924 = vmatprep.subr.mxu0 0.0
    %2925 = vmatpush1.msra.mxu0 0.0
    %2926 = vmatprep.subr.mxu0 0.0
    %2927 = vmatpush1.msra.mxu0 0.0
    %2928 = vmatprep.mubr.f32.mxu0 0.0
    %2929 = vmatmul.mubr.f32.gmra.mrb[0].mxu0 %v2848
    %v2930 = vpop.f32.mrb[0].mxu0
    %v2931 = vadd.f32 0.0, %v2930
    %v2932 = vpop.f32.mrb[0].mxu0
    %2933 = vmatprep.mubr.f32.mxu0 0.0
    %2934 = vmatmul.mubr.f32.gmra.mrb[0].mxu0 %v2851
    %v2935 = vpop.f32.mrb[0].mxu0
    %v2936 = vadd.f32 0.0, %v2935
    %v2937 = vpop.f32.mrb[0].mxu0
    %2938 = vmatprep.mubr.f32.mxu0 0.0
    %2939 = vmatmul.mubr.f32.gmra.mrb[0].mxu0 %v2854
    %v2940 = vpop.f32.mrb[0].mxu0
    %v2941 = vadd.f32 0.0, %v2940
    %v2942 = vpop.f32.mrb[0].mxu0
    %2943 = vmatprep.mubr.f32.mxu0 0.0
    %2944 = vmatmul.mubr.f32.gmra.mrb[0].mxu0 %v2857
    %v2945 = vpop.f32.mrb[0].mxu0
    %v2946 = vadd.f32 0.0, %v2945
    %v2947 = vpop.f32.mrb[0].mxu0
    %2948 = vmatprep.mubr.f32.mxu0 0.0
    %2949 = vmatmul.mubr.f32.gmra.mrb[0].mxu0 %v2860
    %v2950 = vpop.f32.mrb[0].mxu0
    %v2951 = vadd.f32 0.0, %v2950
    %v2952 = vpop.f32.mrb[0].mxu0
    %2953 = vdwg.mxu0
    %v2955 = vsel %vm693, %v2931, 0
    %v2958 = vsel %vm693, %v2936, 0
    %v2961 = vsel %vm693, %v2941, 0
    %v2964 = vsel %vm693, %v2946, 0
    %v2967 = vsel %vm693, %v2951, 0
    %2969 = vmatprep.subr.mxu0 0.0
    %2970 = vmatpush1.msra.mxu0 %v2215
    %2971 = vmatprep.subr.mxu0 0.0
    %2972 = vmatpush1.msra.mxu0 %v2216
    %2973 = vmatprep.subr.mxu0 0.0
    %2974 = vmatpush1.msra.mxu0 %v2217
    %2975 = vmatprep.subr.mxu0 0.0
    %2976 = vmatpush1.msra.mxu0 %v2218
    %2977 = vmatprep.subr.mxu0 0.0
    %2978 = vmatpush1.msra.mxu0 %v2219
    %2979 = vmatprep.subr.mxu0 0.0
    %2980 = vmatpush1.msra.mxu0 %v2220
    %2981 = vmatprep.subr.mxu0 0.0
    %2982 = vmatpush1.msra.mxu0 %v2221
    %2983 = vmatprep.subr.mxu0 0.0
    %2984 = vmatpush1.msra.mxu0 %v2222
    %2985 = vmatprep.subr.mxu0 0.0
    %2986 = vmatpush1.msra.mxu0 0.0
    %2987 = vmatprep.subr.mxu0 0.0
    %2988 = vmatpush1.msra.mxu0 0.0
    %2989 = vmatprep.subr.mxu0 0.0
    %2990 = vmatpush1.msra.mxu0 0.0
    %2991 = vmatprep.subr.mxu0 0.0
    %2992 = vmatpush1.msra.mxu0 0.0
    %2993 = vmatprep.subr.mxu0 0.0
    %2994 = vmatpush1.msra.mxu0 0.0
    %2995 = vmatprep.subr.mxu0 0.0
    %2996 = vmatpush1.msra.mxu0 0.0
    %2997 = vmatprep.subr.mxu0 0.0
    %2998 = vmatpush1.msra.mxu0 0.0
    %2999 = vmatprep.subr.mxu0 0.0
    %3000 = vmatpush1.msra.mxu0 0.0
    %3001 = vmatprep.subr.mxu0 0.0
    %3002 = vmatpush1.msra.mxu0 0.0
    %3003 = vmatprep.subr.mxu0 0.0
    %3004 = vmatpush1.msra.mxu0 0.0
    %3005 = vmatprep.subr.mxu0 0.0
    %3006 = vmatpush1.msra.mxu0 0.0
    %3007 = vmatprep.subr.mxu0 0.0
    %3008 = vmatpush1.msra.mxu0 0.0
    %3009 = vmatprep.subr.mxu0 0.0
    %3010 = vmatpush1.msra.mxu0 0.0
    %3011 = vmatprep.subr.mxu0 0.0
    %3012 = vmatpush1.msra.mxu0 0.0
    %3013 = vmatprep.subr.mxu0 0.0
    %3014 = vmatpush1.msra.mxu0 0.0
    %3015 = vmatprep.subr.mxu0 0.0
    %3016 = vmatpush1.msra.mxu0 0.0
    %3017 = vmatprep.subr.mxu0 0.0
    %3018 = vmatpush1.msra.mxu0 0.0
    %3019 = vmatprep.subr.mxu0 0.0
    %3020 = vmatpush1.msra.mxu0 0.0
    %3021 = vmatprep.subr.mxu0 0.0
    %3022 = vmatpush1.msra.mxu0 0.0
    %3023 = vmatprep.subr.mxu0 0.0
    %3024 = vmatpush1.msra.mxu0 0.0
    %3025 = vmatprep.subr.mxu0 0.0
    %3026 = vmatpush1.msra.mxu0 0.0
    %3027 = vmatprep.subr.mxu0 0.0
    %3028 = vmatpush1.msra.mxu0 0.0
    %3029 = vmatprep.subr.mxu0 0.0
    %3030 = vmatpush1.msra.mxu0 0.0
    %3031 = vmatprep.subr.mxu0 0.0
    %3032 = vmatpush1.msra.mxu0 0.0
    %3033 = vmatprep.mubr.f32.mxu0 0.0
    %3034 = vmatmul.mubr.f32.gmra.mrb[0].mxu0 %v2955
    %v3035 = vpop.f32.mrb[0].mxu0
    %v3036 = vadd.f32 0.0, %v3035
    %v3037 = vpop.f32.mrb[0].mxu0
    %3038 = vmatprep.mubr.f32.mxu0 0.0
    %3039 = vmatmul.mubr.f32.gmra.mrb[0].mxu0 %v2958
    %v3040 = vpop.f32.mrb[0].mxu0
    %v3041 = vadd.f32 0.0, %v3040
    %v3042 = vpop.f32.mrb[0].mxu0
    %3043 = vmatprep.mubr.f32.mxu0 0.0
    %3044 = vmatmul.mubr.f32.gmra.mrb[0].mxu0 %v2961
    %v3045 = vpop.f32.mrb[0].mxu0
    %v3046 = vadd.f32 0.0, %v3045
    %v3047 = vpop.f32.mrb[0].mxu0
    %3048 = vmatprep.mubr.f32.mxu0 0.0
    %3049 = vmatmul.mubr.f32.gmra.mrb[0].mxu0 %v2964
    %v3050 = vpop.f32.mrb[0].mxu0
    %v3051 = vadd.f32 0.0, %v3050
    %v3052 = vpop.f32.mrb[0].mxu0
    %3053 = vmatprep.mubr.f32.mxu0 0.0
    %3054 = vmatmul.mubr.f32.gmra.mrb[0].mxu0 %v2967
    %v3055 = vpop.f32.mrb[0].mxu0
    %v3056 = vadd.f32 0.0, %v3055
    %v3057 = vpop.f32.mrb[0].mxu0
    %3058 = vdwg.mxu0
    %v3059 = vadd.f32 %v2629, %v3036
    %v3060 = vadd.f32 %v2630, %v3041
    %v3061 = vadd.f32 %v2631, %v3046
    %v3062 = vadd.f32 %v2632, %v3051
    %v3063 = vadd.f32 %v2633, %v3056
    %v3064 = vadd.f32 %v1897, %v3059
    %v3065 = vadd.f32 %v1898, %v3060
    %v3066 = vadd.f32 %v1899, %v3061
    %v3067 = vadd.f32 %v1900, %v3062
    %v3068 = vadd.f32 %v1901, %v3063
    %s3069 = scalar_lea.vmem %s15, 1
    %v3070 = vld [vmem:[%s3069] sm:$0x1]
    %s3071 = scalar_lea.vmem %s16, 1
    %v3072 = vld [vmem:[%s3071] sm:$0x1]
    %v3073 = vsel %vm269, %v3064, 0.0
    %3074 = vadd.xlane.f32.xlu0 %v3073
    %v3075 = vpop.xlane.xlu0 %3074
    %v3076 = vsel %vm269, %v3065, 0.0
    %3077 = vadd.xlane.f32.xlu0 %v3076
    %v3078 = vpop.xlane.xlu0 %3077
    %v3079 = vsel %vm269, %v3066, 0.0
    %3080 = vadd.xlane.f32.xlu0 %v3079
    %v3081 = vpop.xlane.xlu0 %3080
    %v3082 = vsel %vm269, %v3067, 0.0
    %3083 = vadd.xlane.f32.xlu0 %v3082
    %v3084 = vpop.xlane.xlu0 %3083
    %v3085 = vsel %vm388, %v3068, 0.0
    %3086 = vadd.xlane.f32.xlu0 %v3085
    %v3087 = vpop.xlane.xlu0 %3086
    %v3088 = vmul.f32 %v3075, %v282
    %v3089 = vmul.f32 %v3078, %v282
    %v3090 = vmul.f32 %v3081, %v282
    %v3091 = vmul.f32 %v3084, %v282
    %v3092 = vmul.f32 %v3087, %v282
    %v3093 = vsub.f32 %v3064, %v3088
    %v3094 = vsub.f32 %v3065, %v3089
    %v3095 = vsub.f32 %v3066, %v3090
    %v3096 = vsub.f32 %v3067, %v3091
    %v3097 = vsub.f32 %v3068, %v3092
    %v3098 = vmul.f32 %v3093, %v3093
    %v3099 = vmul.f32 %v3094, %v3094
    %v3100 = vmul.f32 %v3095, %v3095
    %v3101 = vmul.f32 %v3096, %v3096
    %v3102 = vmul.f32 %v3097, %v3097
    %v3103 = vsel %vm269, %v3098, 0.0
    %3104 = vadd.xlane.f32.xlu0 %v3103
    %v3105 = vpop.xlane.xlu0 %3104
    %v3106 = vsel %vm269, %v3099, 0.0
    %3107 = vadd.xlane.f32.xlu0 %v3106
    %v3108 = vpop.xlane.xlu0 %3107
    %v3109 = vsel %vm269, %v3100, 0.0
    %3110 = vadd.xlane.f32.xlu0 %v3109
    %v3111 = vpop.xlane.xlu0 %3110
    %v3112 = vsel %vm269, %v3101, 0.0
    %3113 = vadd.xlane.f32.xlu0 %v3112
    %v3114 = vpop.xlane.xlu0 %3113
    %v3115 = vsel %vm388, %v3102, 0.0
    %3116 = vadd.xlane.f32.xlu0 %v3115
    %v3117 = vpop.xlane.xlu0 %3116
    %v3118 = vmul.f32 %v3105, %v282
    %v3119 = vmul.f32 %v3108, %v282
    %v3120 = vmul.f32 %v3111, %v282
    %v3121 = vmul.f32 %v3114, %v282
    %v3122 = vmul.f32 %v3117, %v282
    %v3123 = vadd.f32 %v3118, 1e-05
    %v3124 = vadd.f32 %v3119, 1e-05
    %v3125 = vadd.f32 %v3120, 1e-05
    %v3126 = vadd.f32 %v3121, 1e-05
    %v3127 = vadd.f32 %v3122, 1e-05
    %v3128 = vrsqrt.pop %v3123
    %v3129 = vrsqrt.pop %v3124
    %v3130 = vrsqrt.pop %v3125
    %v3131 = vrsqrt.pop %v3126
    %v3132 = vrsqrt.pop %v3127
    %v3133 = vmul.f32 %v3093, %v3128
    %v3134 = vmul.f32 %v3094, %v3129
    %v3135 = vmul.f32 %v3095, %v3130
    %v3136 = vmul.f32 %v3096, %v3131
    %v3137 = vmul.f32 %v3097, %v3132
    %v3139 = vlaneseq
    %v3140 = vshrl.u32 %v3139, 7
    %v3141 = vsub.s32 0, %v3140
    %v3142 = vrot.slane %v3070, %v3141
    %v3144 = vmul.f32 %v3133, %v3142
    %v3145 = vmul.f32 %v3134, %v3142
    %v3146 = vmul.f32 %v3135, %v3142
    %v3147 = vmul.f32 %v3136, %v3142
    %v3148 = vmul.f32 %v3137, %v3142
    %v3150 = vlaneseq
    %v3151 = vshrl.u32 %v3150, 7
    %v3152 = vsub.s32 0, %v3151
    %v3153 = vrot.slane %v3072, %v3152
    %v3155 = vadd.f32 %v3144, %v3153
    %v3156 = vadd.f32 %v3145, %v3153
    %v3157 = vadd.f32 %v3146, %v3153
    %v3158 = vadd.f32 %v3147, %v3153
    %v3159 = vadd.f32 %v3148, %v3153
    %s3160 = scalar_lea.vmem %s17, 32
    %v3161 = vld [vmem:[%s3160] sm:$0xff]
    %v3162 = vld [vmem:[%s3160 + $0x8] sm:$0xff]
    %v3163 = vld [vmem:[%s3160 + $0x10] sm:$0xff]
    %v3164 = vld [vmem:[%s3160 + $0x18] sm:$0xff]
    %s3165 = scalar_lea.vmem %s18, 1
    %v3166 = vld [vmem:[%s3165] sm:$0x1]
    %v3168 = vlaneseq
    %v3169 = vshrl.u32 %v3168, 7
    %v3170 = vsub.s32 0, %v3169
    %v3171 = vrot.slane %v3166, %v3170
    %v3174 = vsel %vm269, %v3155, 0
    %v3177 = vsel %vm269, %v3156, 0
    %v3180 = vsel %vm269, %v3157, 0
    %v3183 = vsel %vm269, %v3158, 0
    %v3186 = vsel %vm269, %v3159, 0
    %3188 = vmatprep.subr.mxu0 0.0
    %3189 = vmatpush1.msra.mxu0 %v3161
    %3190 = vmatprep.subr.mxu0 0.0
    %3191 = vmatpush1.msra.mxu0 %v3162
    %3192 = vmatprep.subr.mxu0 0.0
    %3193 = vmatpush1.msra.mxu0 %v3163
    %3194 = vmatprep.subr.mxu0 0.0
    %3195 = vmatpush1.msra.mxu0 %v3164
    %3196 = vmatprep.subr.mxu0 0.0
    %3197 = vmatpush1.msra.mxu0 0.0
    %3198 = vmatprep.subr.mxu0 0.0
    %3199 = vmatpush1.msra.mxu0 0.0
    %3200 = vmatprep.subr.mxu0 0.0
    %3201 = vmatpush1.msra.mxu0 0.0
    %3202 = vmatprep.subr.mxu0 0.0
    %3203 = vmatpush1.msra.mxu0 0.0
    %3204 = vmatprep.subr.mxu0 0.0
    %3205 = vmatpush1.msra.mxu0 0.0
    %3206 = vmatprep.subr.mxu0 0.0
    %3207 = vmatpush1.msra.mxu0 0.0
    %3208 = vmatprep.subr.mxu0 0.0
    %3209 = vmatpush1.msra.mxu0 0.0
    %3210 = vmatprep.subr.mxu0 0.0
    %3211 = vmatpush1.msra.mxu0 0.0
    %3212 = vmatprep.subr.mxu0 0.0
    %3213 = vmatpush1.msra.mxu0 0.0
    %3214 = vmatprep.subr.mxu0 0.0
    %3215 = vmatpush1.msra.mxu0 0.0
    %3216 = vmatprep.subr.mxu0 0.0
    %3217 = vmatpush1.msra.mxu0 0.0
    %3218 = vmatprep.subr.mxu0 0.0
    %3219 = vmatpush1.msra.mxu0 0.0
    %3220 = vmatprep.subr.mxu0 0.0
    %3221 = vmatpush1.msra.mxu0 0.0
    %3222 = vmatprep.subr.mxu0 0.0
    %3223 = vmatpush1.msra.mxu0 0.0
    %3224 = vmatprep.subr.mxu0 0.0
    %3225 = vmatpush1.msra.mxu0 0.0
    %3226 = vmatprep.subr.mxu0 0.0
    %3227 = vmatpush1.msra.mxu0 0.0
    %3228 = vmatprep.subr.mxu0 0.0
    %3229 = vmatpush1.msra.mxu0 0.0
    %3230 = vmatprep.subr.mxu0 0.0
    %3231 = vmatpush1.msra.mxu0 0.0
    %3232 = vmatprep.subr.mxu0 0.0
    %3233 = vmatpush1.msra.mxu0 0.0
    %3234 = vmatprep.subr.mxu0 0.0
    %3235 = vmatpush1.msra.mxu0 0.0
    %3236 = vmatprep.subr.mxu0 0.0
    %3237 = vmatpush1.msra.mxu0 0.0
    %3238 = vmatprep.subr.mxu0 0.0
    %3239 = vmatpush1.msra.mxu0 0.0
    %3240 = vmatprep.subr.mxu0 0.0
    %3241 = vmatpush1.msra.mxu0 0.0
    %3242 = vmatprep.subr.mxu0 0.0
    %3243 = vmatpush1.msra.mxu0 0.0
    %3244 = vmatprep.subr.mxu0 0.0
    %3245 = vmatpush1.msra.mxu0 0.0
    %3246 = vmatprep.subr.mxu0 0.0
    %3247 = vmatpush1.msra.mxu0 0.0
    %3248 = vmatprep.subr.mxu0 0.0
    %3249 = vmatpush1.msra.mxu0 0.0
    %3250 = vmatprep.subr.mxu0 0.0
    %3251 = vmatpush1.msra.mxu0 0.0
    %3252 = vmatprep.mubr.f32.mxu0 0.0
    %3253 = vmatmul.mubr.f32.gmra.mrb[0].mxu0 %v3174
    %v3254 = vpop.f32.mrb[0].mxu0
    %v3255 = vadd.f32 %v3171, %v3254
    %v3256 = vpop.f32.mrb[0].mxu0
    %3257 = vmatprep.mubr.f32.mxu0 0.0
    %3258 = vmatmul.mubr.f32.gmra.mrb[0].mxu0 %v3177
    %v3259 = vpop.f32.mrb[0].mxu0
    %v3260 = vadd.f32 %v3171, %v3259
    %v3261 = vpop.f32.mrb[0].mxu0
    %3262 = vmatprep.mubr.f32.mxu0 0.0
    %3263 = vmatmul.mubr.f32.gmra.mrb[0].mxu0 %v3180
    %v3264 = vpop.f32.mrb[0].mxu0
    %v3265 = vadd.f32 %v3171, %v3264
    %v3266 = vpop.f32.mrb[0].mxu0
    %3267 = vmatprep.mubr.f32.mxu0 0.0
    %3268 = vmatmul.mubr.f32.gmra.mrb[0].mxu0 %v3183
    %v3269 = vpop.f32.mrb[0].mxu0
    %v3270 = vadd.f32 %v3171, %v3269
    %v3271 = vpop.f32.mrb[0].mxu0
    %3272 = vmatprep.mubr.f32.mxu0 0.0
    %3273 = vmatmul.mubr.f32.gmra.mrb[0].mxu0 %v3186
    %v3274 = vpop.f32.mrb[0].mxu0
    %v3275 = vadd.f32 %v3171, %v3274
    %v3276 = vpop.f32.mrb[0].mxu0
    %3277 = vdwg.mxu0
    %v3278 = vmul.f32 %v3255, 0.5
    %v3279 = vmul.f32 %v3260, 0.5
    %v3280 = vmul.f32 %v3265, 0.5
    %v3281 = vmul.f32 %v3270, 0.5
    %v3282 = vmul.f32 %v3275, 0.5
    %v3283 = vmul.f32 %v3255, %v1751
    %v3284 = vmul.f32 %v3260, %v1751
    %v3285 = vmul.f32 %v3265, %v1751
    %v3286 = vmul.f32 %v3270, %v1751
    %v3287 = vmul.f32 %v3275, %v1751
    %v3288 = verf.f32.pop %v3283
    %v3289 = verf.f32.pop %v3284
    %v3290 = verf.f32.pop %v3285
    %v3291 = verf.f32.pop %v3286
    %v3292 = verf.f32.pop %v3287
    %v3293 = vadd.f32 %v3288, 1.0
    %v3294 = vadd.f32 %v3289, 1.0
    %v3295 = vadd.f32 %v3290, 1.0
    %v3296 = vadd.f32 %v3291, 1.0
    %v3297 = vadd.f32 %v3292, 1.0
    %v3298 = vmul.f32 %v3278, %v3293
    %v3299 = vmul.f32 %v3279, %v3294
    %v3300 = vmul.f32 %v3280, %v3295
    %v3301 = vmul.f32 %v3281, %v3296
    %v3302 = vmul.f32 %v3282, %v3297
    %s3303 = scalar_lea.vmem %s19, 64
    %v3304 = vld [vmem:[%s3303] sm:$0xff]
    %v3305 = vld [vmem:[%s3303 + $0x8] sm:$0xff]
    %v3306 = vld [vmem:[%s3303 + $0x10] sm:$0xff]
    %v3307 = vld [vmem:[%s3303 + $0x18] sm:$0xff]
    %v3308 = vld [vmem:[%s3303 + $0x20] sm:$0xff]
    %v3309 = vld [vmem:[%s3303 + $0x28] sm:$0xff]
    %v3310 = vld [vmem:[%s3303 + $0x30] sm:$0xff]
    %v3311 = vld [vmem:[%s3303 + $0x38] sm:$0xff]
    %v3313 = vsel %vm693, %v3298, 0
    %v3316 = vsel %vm693, %v3299, 0
    %v3319 = vsel %vm693, %v3300, 0
    %v3322 = vsel %vm693, %v3301, 0
    %v3325 = vsel %vm693, %v3302, 0
    %3327 = vmatprep.subr.mxu0 0.0
    %3328 = vmatpush1.msra.mxu0 %v3304
    %3329 = vmatprep.subr.mxu0 0.0
    %3330 = vmatpush1.msra.mxu0 %v3305
    %3331 = vmatprep.subr.mxu0 0.0
    %3332 = vmatpush1.msra.mxu0 %v3306
    %3333 = vmatprep.subr.mxu0 0.0
    %3334 = vmatpush1.msra.mxu0 %v3307
    %3335 = vmatprep.subr.mxu0 0.0
    %3336 = vmatpush1.msra.mxu0 %v3308
    %3337 = vmatprep.subr.mxu0 0.0
    %3338 = vmatpush1.msra.mxu0 %v3309
    %3339 = vmatprep.subr.mxu0 0.0
    %3340 = vmatpush1.msra.mxu0 %v3310
    %3341 = vmatprep.subr.mxu0 0.0
    %3342 = vmatpush1.msra.mxu0 %v3311
    %3343 = vmatprep.subr.mxu0 0.0
    %3344 = vmatpush1.msra.mxu0 0.0
    %3345 = vmatprep.subr.mxu0 0.0
    %3346 = vmatpush1.msra.mxu0 0.0
    %3347 = vmatprep.subr.mxu0 0.0
    %3348 = vmatpush1.msra.mxu0 0.0
    %3349 = vmatprep.subr.mxu0 0.0
    %3350 = vmatpush1.msra.mxu0 0.0
    %3351 = vmatprep.subr.mxu0 0.0
    %3352 = vmatpush1.msra.mxu0 0.0
    %3353 = vmatprep.subr.mxu0 0.0
    %3354 = vmatpush1.msra.mxu0 0.0
    %3355 = vmatprep.subr.mxu0 0.0
    %3356 = vmatpush1.msra.mxu0 0.0
    %3357 = vmatprep.subr.mxu0 0.0
    %3358 = vmatpush1.msra.mxu0 0.0
    %3359 = vmatprep.subr.mxu0 0.0
    %3360 = vmatpush1.msra.mxu0 0.0
    %3361 = vmatprep.subr.mxu0 0.0
    %3362 = vmatpush1.msra.mxu0 0.0
    %3363 = vmatprep.subr.mxu0 0.0
    %3364 = vmatpush1.msra.mxu0 0.0
    %3365 = vmatprep.subr.mxu0 0.0
    %3366 = vmatpush1.msra.mxu0 0.0
    %3367 = vmatprep.subr.mxu0 0.0
    %3368 = vmatpush1.msra.mxu0 0.0
    %3369 = vmatprep.subr.mxu0 0.0
    %3370 = vmatpush1.msra.mxu0 0.0
    %3371 = vmatprep.subr.mxu0 0.0
    %3372 = vmatpush1.msra.mxu0 0.0
    %3373 = vmatprep.subr.mxu0 0.0
    %3374 = vmatpush1.msra.mxu0 0.0
    %3375 = vmatprep.subr.mxu0 0.0
    %3376 = vmatpush1.msra.mxu0 0.0
    %3377 = vmatprep.subr.mxu0 0.0
    %3378 = vmatpush1.msra.mxu0 0.0
    %3379 = vmatprep.subr.mxu0 0.0
    %3380 = vmatpush1.msra.mxu0 0.0
    %3381 = vmatprep.subr.mxu0 0.0
    %3382 = vmatpush1.msra.mxu0 0.0
    %3383 = vmatprep.subr.mxu0 0.0
    %3384 = vmatpush1.msra.mxu0 0.0
    %3385 = vmatprep.subr.mxu0 0.0
    %3386 = vmatpush1.msra.mxu0 0.0
    %3387 = vmatprep.subr.mxu0 0.0
    %3388 = vmatpush1.msra.mxu0 0.0
    %3389 = vmatprep.subr.mxu0 0.0
    %3390 = vmatpush1.msra.mxu0 0.0
    %3391 = vmatprep.mubr.f32.mxu0 0.0
    %3392 = vmatmul.mubr.f32.gmra.mrb[0].mxu0 %v3313
    %v3393 = vpop.f32.mrb[0].mxu0
    %v3394 = vadd.f32 0.0, %v3393
    %v3395 = vpop.f32.mrb[0].mxu0
    %3396 = vmatprep.mubr.f32.mxu0 0.0
    %3397 = vmatmul.mubr.f32.gmra.mrb[0].mxu0 %v3316
    %v3398 = vpop.f32.mrb[0].mxu0
    %v3399 = vpop.f32.mrb[0].mxu0
    %3400 = vmatprep.mubr.f32.mxu0 0.0
    %3401 = vmatmul.mubr.f32.gmra.mrb[0].mxu0 %v3319
    %v3402 = vpop.f32.mrb[0].mxu0
    %v3403 = vadd.f32 0.0, %v3402
    %v3404 = vpop.f32.mrb[0].mxu0
    %3405 = vmatprep.mubr.f32.mxu0 0.0
    %3406 = vmatmul.mubr.f32.gmra.mrb[0].mxu0 %v3322
    %v3407 = vpop.f32.mrb[0].mxu0
    %v3408 = vpop.f32.mrb[0].mxu0
    %3409 = vmatprep.mubr.f32.mxu0 0.0
    %3410 = vmatmul.mubr.f32.gmra.mrb[0].mxu0 %v3325
    %v3411 = vpop.f32.mrb[0].mxu0
    %v3412 = vpop.f32.mrb[0].mxu0
    %3413 = vdwg.mxu0
    %v3414 = vadd.f32 %v3064, %v3394
    %v3415 = vadd.f32 %v3066, %v3403
    %s3416 = scalar_lea.vmem %s20, 1
    %v3417 = vld [vmem:[%s3416] sm:$0x1]
    %v3419 = vlaneseq
    %v3420 = vshrl.u32 %v3419, 7
    %v3421 = vsub.s32 0, %v3420
    %v3422 = vrot.slane %v3417, %v3421
    %v3424 = vadd.f32 %v3414, %v3422
    %v3425 = vadd.f32 %v3415, %v3422
    %vm3426 = vcmask 1040384
    %v3427 = vsel %vm3426, %v3424, %v3425
    %v3428 = vld [vmem:[%s21] sm:$0x1]
    %v3429 = vld [vmem:[%s22] sm:$0x1]
    %v3430 = vsel %vm388, %v3427, 0.0
    %3431 = vadd.xlane.f32.xlu0 %v3430
    %v3432 = vpop.xlane.xlu0 %3431
    %v3433 = vmul.f32 %v3432, %v282
    %v3434 = vsub.f32 %v3427, %v3433
    %v3435 = vmul.f32 %v3434, %v3434
    %v3436 = vsel %vm388, %v3435, 0.0
    %3437 = vadd.xlane.f32.xlu0 %v3436
    %v3438 = vpop.xlane.xlu0 %3437
    %v3439 = vmul.f32 %v3438, %v282
    %v3440 = vadd.f32 %v3439, 1e-05
    %v3441 = vrsqrt.pop %v3440
    %v3442 = vmul.f32 %v3434, %v3441
    %v3444 = vlaneseq
    %v3445 = vshrl.u32 %v3444, 7
    %v3446 = vsub.s32 0, %v3445
    %v3447 = vrot.slane %v3428, %v3446
    %v3449 = vmul.f32 %v3442, %v3447
    %v3451 = vlaneseq
    %v3452 = vshrl.u32 %v3451, 7
    %v3453 = vsub.s32 0, %v3452
    %v3454 = vrot.slane %v3429, %v3453
    %v3456 = vadd.f32 %v3449, %v3454
    %v3457 = vld [vmem:[%s23] sm:$0xff]
    %v3458 = vld [vmem:[%s23 + $0x8] sm:$0xff]
    %v3459 = vld [vmem:[%s23 + $0x10] sm:$0xff]
    %v3460 = vld [vmem:[%s23 + $0x18] sm:$0xff]
    %v3461 = vld [vmem:[%s24] sm:$0x1]
    %v3463 = vlaneseq
    %v3464 = vshrl.u32 %v3463, 7
    %v3465 = vsub.s32 0, %v3464
    %v3466 = vrot.slane %v3461, %v3465
    %v3469 = vsel %vm269, %v3456, 0
    %3471 = vmatprep.subr.mxu0 0.0
    %3472 = vmatpush1.msra.mxu0 %v3457
    %3473 = vmatprep.subr.mxu0 0.0
    %3474 = vmatpush1.msra.mxu0 %v3458
    %3475 = vmatprep.subr.mxu0 0.0
    %3476 = vmatpush1.msra.mxu0 %v3459
    %3477 = vmatprep.subr.mxu0 0.0
    %3478 = vmatpush1.msra.mxu0 %v3460
    %3479 = vmatprep.subr.mxu0 0.0
    %3480 = vmatpush1.msra.mxu0 0.0
    %3481 = vmatprep.subr.mxu0 0.0
    %3482 = vmatpush1.msra.mxu0 0.0
    %3483 = vmatprep.subr.mxu0 0.0
    %3484 = vmatpush1.msra.mxu0 0.0
    %3485 = vmatprep.subr.mxu0 0.0
    %3486 = vmatpush1.msra.mxu0 0.0
    %3487 = vmatprep.subr.mxu0 0.0
    %3488 = vmatpush1.msra.mxu0 0.0
    %3489 = vmatprep.subr.mxu0 0.0
    %3490 = vmatpush1.msra.mxu0 0.0
    %3491 = vmatprep.subr.mxu0 0.0
    %3492 = vmatpush1.msra.mxu0 0.0
    %3493 = vmatprep.subr.mxu0 0.0
    %3494 = vmatpush1.msra.mxu0 0.0
    %3495 = vmatprep.subr.mxu0 0.0
    %3496 = vmatpush1.msra.mxu0 0.0
    %3497 = vmatprep.subr.mxu0 0.0
    %3498 = vmatpush1.msra.mxu0 0.0
    %3499 = vmatprep.subr.mxu0 0.0
    %3500 = vmatpush1.msra.mxu0 0.0
    %3501 = vmatprep.subr.mxu0 0.0
    %3502 = vmatpush1.msra.mxu0 0.0
    %3503 = vmatprep.subr.mxu0 0.0
    %3504 = vmatpush1.msra.mxu0 0.0
    %3505 = vmatprep.subr.mxu0 0.0
    %3506 = vmatpush1.msra.mxu0 0.0
    %3507 = vmatprep.subr.mxu0 0.0
    %3508 = vmatpush1.msra.mxu0 0.0
    %3509 = vmatprep.subr.mxu0 0.0
    %3510 = vmatpush1.msra.mxu0 0.0
    %3511 = vmatprep.subr.mxu0 0.0
    %3512 = vmatpush1.msra.mxu0 0.0
    %3513 = vmatprep.subr.mxu0 0.0
    %3514 = vmatpush1.msra.mxu0 0.0
    %3515 = vmatprep.subr.mxu0 0.0
    %3516 = vmatpush1.msra.mxu0 0.0
    %3517 = vmatprep.subr.mxu0 0.0
    %3518 = vmatpush1.msra.mxu0 0.0
    %3519 = vmatprep.subr.mxu0 0.0
    %3520 = vmatpush1.msra.mxu0 0.0
    %3521 = vmatprep.subr.mxu0 0.0
    %3522 = vmatpush1.msra.mxu0 0.0
    %3523 = vmatprep.subr.mxu0 0.0
    %3524 = vmatpush1.msra.mxu0 0.0
    %3525 = vmatprep.subr.mxu0 0.0
    %3526 = vmatpush1.msra.mxu0 0.0
    %3527 = vmatprep.subr.mxu0 0.0
    %3528 = vmatpush1.msra.mxu0 0.0
    %3529 = vmatprep.subr.mxu0 0.0
    %3530 = vmatpush1.msra.mxu0 0.0
    %3531 = vmatprep.subr.mxu0 0.0
    %3532 = vmatpush1.msra.mxu0 0.0
    %3533 = vmatprep.subr.mxu0 0.0
    %3534 = vmatpush1.msra.mxu0 0.0
    %3535 = vmatprep.mubr.f32.mxu0 0.0
    %3536 = vmatmul.mubr.f32.gmra.mrb[0].mxu0 %v3469
    %v3537 = vpop.f32.mrb[0].mxu0
    %v3538 = vadd.f32 %v3466, %v3537
    %v3539 = vpop.f32.mrb[0].mxu0
    %3540 = vdwg.mxu0
    %vm3541 = vcmask 9216
    %3542 = vst.msk [vmem:[#allocation3] sm:$0x3] %vm3541, %v3538
    // Predicated region
    $region102: #{vit_forward.1} parent=1 // pred_check
      _
    $region103: #{vit_forward.1} parent=1 // pred_check_branch
      %3544 = sbr.rel (0) target = $region105
    $region104: #{vit_forward.1} parent=1 // pred_region
      %s3546 = ssub.s32 32, 32
      %3547 = vsyncadd [#allocation4], %s3546
      %s3549 = sshll.u32 [#allocation3], 4
      %s3550 = int_to_ptr.vmem [resolvable:$true] %s3549
      %3552 = dma.vmem_to_hbm [thread:$0]  %s3550, 32, %s25, [#allocation4]
    $region105: #{vit_forward.1} parent=1 // pred_fallthru
      _
    // Predicated region
    $region106: #{vit_forward.1} parent=1 // pred_check
      _
    $region107: #{vit_forward.1} parent=1 // pred_check_branch
      %3554 = sbr.rel (0) target = $region109
    $region108: #{vit_forward.1} parent=1 // pred_region
      %3555 = dma.done [#allocation4], 32
    $region109: #{vit_forward.1} parent=1 // pred_fallthru
      _
    %3556 = vsyncpa [#allocation4], 1

</llo_original>
